<compile_context>
chip_gen: v7x
topology: tpu7x:2x2x1
jax: 0.10.0
libtpu: 0.0.40
codegen_flags: <defaults>
</compile_context>

<pallas_src>
import math

import jax
import jax.numpy as jnp
from jax.experimental import pallas as pl
from jax.experimental.pallas import tpu as pltpu

# ----------------------------- small SigLIP-like config -----------------------------
IMAGE_SIZE = 16
PATCH_SIZE = 2
CHANNELS = 3
HIDDEN = 32
HEADS = 2
HEAD_DIM = HIDDEN // HEADS
INTERMEDIATE = 64
NUM_LAYERS = 3
SELECT_LAYER = -2          # llava default: second-to-last hidden state
EPS = 1e-6

NUM_PATCHES_PER_SIDE = IMAGE_SIZE // PATCH_SIZE
NUM_PATCHES = NUM_PATCHES_PER_SIDE ** 2          # sequence length S
PATCH_DIM = CHANNELS * PATCH_SIZE * PATCH_SIZE   # contraction dim K
# number of encoder layers actually needed to produce hidden_states[SELECT_LAYER]
LAYERS_TO_RUN = NUM_LAYERS + 1 + SELECT_LAYER    # = 2 for select_layer=-2


# ----------------------------- fused Pallas kernel -----------------------------
def _layernorm(v, w, b):
    mu = jnp.mean(v, axis=-1, keepdims=True)
    var = jnp.mean((v - mu) ** 2, axis=-1, keepdims=True)
    return (v - mu) * jax.lax.rsqrt(var + EPS) * w + b


def fused_vit_kernel(patches_ref, pw_ref, pb_ref, pos_ref,
                     ln1w_ref, ln1b_ref, wqkv_ref, bqkv_ref, wo_ref, bo_ref,
                     ln2w_ref, ln2b_ref, w1_ref, b1_ref, w2_ref, b2_ref,
                     out_ref):
    # ---- patch embedding + positional embedding (one image per grid step) ----
    # patches_ref: [S, K], pw_ref: [K, D], pb_ref: [1, D], pos_ref: [S, D]
    x = jnp.dot(patches_ref[...], pw_ref[...], preferred_element_type=jnp.float32)
    x = x + pb_ref[...] + pos_ref[...]                      # [S, D]

    # ---- encoder layers: static unroll, activation stays resident in VMEM ----
    for li in range(LAYERS_TO_RUN):
        # --- self attention (pre-LN) ---
        h = _layernorm(x, ln1w_ref[li], ln1b_ref[li])
        # fused QKV projection; 1/sqrt(HEAD_DIM) is folded into the Q columns.
        qkv = jnp.dot(h, wqkv_ref[li],
                      preferred_element_type=jnp.float32) + bqkv_ref[li]   # [S, 3D]
        wo_l = wo_ref[li]                                    # [H, HEAD_DIM, D]
        attn = jnp.zeros((NUM_PATCHES, HIDDEN), jnp.float32)
        for hh in range(HEADS):                              # static unroll over heads
            q = qkv[:, hh * HEAD_DIM:(hh + 1) * HEAD_DIM]
            k = qkv[:, HIDDEN + hh * HEAD_DIM: HIDDEN + (hh + 1) * HEAD_DIM]
            v = qkv[:, 2 * HIDDEN + hh * HEAD_DIM: 2 * HIDDEN + (hh + 1) * HEAD_DIM]
            s = jax.lax.dot_general(q, k, (((1,), (1,)), ((), ())),
                                    preferred_element_type=jnp.float32)    # [S, S]
            m = jnp.max(s, axis=-1, keepdims=True)
            e = jnp.exp(s - m)
            p = e / jnp.sum(e, axis=-1, keepdims=True)
            ctx = jnp.dot(p, v, preferred_element_type=jnp.float32)        # [S, HEAD_DIM]
            # per-head output projection (no lane concat of heads)
            attn = attn + jnp.dot(ctx, wo_l[hh], preferred_element_type=jnp.float32)
        x = x + attn + bo_ref[li]

        # --- MLP (pre-LN, gelu_pytorch_tanh) ---
        h2 = _layernorm(x, ln2w_ref[li], ln2b_ref[li])
        m1 = jnp.dot(h2, w1_ref[li], preferred_element_type=jnp.float32) + b1_ref[li]
        g = 0.5 * m1 * (1.0 + jnp.tanh(0.7978845608028654 * (m1 + 0.044715 * m1 * m1 * m1)))
        x = x + jnp.dot(g, w2_ref[li], preferred_element_type=jnp.float32) + b2_ref[li]

    # single store per image; final-dtype cast fused into the store
    out_ref[...] = x.astype(out_ref.dtype)


# ----------------------------- wrappers -----------------------------
def extract_patches(images):
    """NCHW -> [B, num_patches, C*ph*pw] (row-major over patch grid, (c,kh,kw) order)."""
    B, C, H, W = images.shape
    ph = pw = PATCH_SIZE
    x = images.reshape(B, C, H // ph, ph, W // pw, pw)
    x = x.transpose(0, 2, 4, 1, 3, 5)  # B, Hp, Wp, C, ph, pw
    return x.reshape(B, (H // ph) * (W // pw), C * ph * pw)


def _fuse_and_stack(params):
    """Stack per-layer weights along a leading layer axis; fuse QKV; fold scale."""
    layers = params["layers"][:LAYERS_TO_RUN]
    scale = HEAD_DIM ** -0.5
    st = lambda name: jnp.stack([l[name] for l in layers], axis=0)
    wqkv = jnp.stack([jnp.concatenate([l["wq"] * scale, l["wk"], l["wv"]], axis=1)
                      for l in layers])                       # [L, D, 3D]
    bqkv = jnp.stack([jnp.concatenate([l["bq"] * scale, l["bk"], l["bv"]], axis=1)
                      for l in layers])                       # [L, 1, 3D]
    wo = jnp.stack([l["wo"].reshape(HEADS, HEAD_DIM, HIDDEN) for l in layers])  # [L,H,Hd,D]
    return dict(ln1_w=st("ln1_w"), ln1_b=st("ln1_b"),
                wqkv=wqkv, bqkv=bqkv, wo=wo, bo=st("bo"),
                ln2_w=st("ln2_w"), ln2_b=st("ln2_b"),
                w1=st("w1"), b1=st("b1"), w2=st("w2"), b2=st("b2"))


def siglip_vision_tower_forward(images, params):
    """Returns hidden_states[SELECT_LAYER] of the SigLIP vision transformer."""
    in_dtype = images.dtype
    patches = extract_patches(images.astype(jnp.float32))     # .to(self.dtype)
    B = patches.shape[0]
    S, K, D, I, L = NUM_PATCHES, PATCH_DIM, HIDDEN, INTERMEDIATE, LAYERS_TO_RUN
    sp = _fuse_and_stack(params)

    def full(*shape):
        n = len(shape)
        return pl.BlockSpec(shape, lambda b, _n=n: (0,) * _n)

    # TODO(synk): output_attentions=True path (mean of last-layer attention) not implemented.
    return pl.pallas_call(
        fused_vit_kernel,
        out_shape=jax.ShapeDtypeStruct((B, S, D), in_dtype),
        grid=(B,),
        in_specs=[
            pl.BlockSpec((None, S, K), lambda b: (b, 0, 0)),   # patches (one image)
            full(K, D), full(1, D), full(S, D),                 # patch w / b, pos emb
            full(L, 1, D), full(L, 1, D),                       # ln1 w / b
            full(L, D, 3 * D), full(L, 1, 3 * D),               # fused qkv w / b
            full(L, HEADS, HEAD_DIM, D), full(L, 1, D),         # out proj (per head), bo
            full(L, 1, D), full(L, 1, D),                       # ln2 w / b
            full(L, D, I), full(L, 1, I),                       # fc1 w / b
            full(L, I, D), full(L, 1, D),                       # fc2 w / b
        ],
        out_specs=pl.BlockSpec((None, S, D), lambda b: (b, 0, 0)),
        compiler_params=pltpu.CompilerParams(
            dimension_semantics=("parallel",)),                 # one image per TC on v7x
    )(patches, params["patch_w"], params["patch_b"], params["pos_emb"],
      sp["ln1_w"], sp["ln1_b"], sp["wqkv"], sp["bqkv"], sp["wo"], sp["bo"],
      sp["ln2_w"], sp["ln2_b"], sp["w1"], sp["b1"], sp["w2"], sp["b2"]).astype(in_dtype)


# ----------------------------- deterministic parameter init -----------------------------
def init_params(key):
    keys = iter(jax.random.split(key, 8 + 16 * NUM_LAYERS))
    nrm = lambda shape, s=0.02: (s * jax.random.normal(next(keys), shape)).astype(jnp.float32)

    conv_w = nrm((HIDDEN, CHANNELS, PATCH_SIZE, PATCH_SIZE))  # PyTorch Conv2d weight layout
    patch_w = conv_w.reshape(HIDDEN, PATCH_DIM).T             # [K, D]
    patch_b = nrm((1, HIDDEN), 0.01)
    pos_emb = nrm((NUM_PATCHES, HIDDEN))

    layers = []
    for _ in range(NUM_LAYERS):
        layers.append(dict(
            ln1_w=jnp.ones((1, HIDDEN), jnp.float32) + nrm((1, HIDDEN), 0.01),
            ln1_b=nrm((1, HIDDEN), 0.01),
            wq=nrm((HIDDEN, HIDDEN)), bq=nrm((1, HIDDEN), 0.01),
            wk=nrm((HIDDEN, HIDDEN)), bk=nrm((1, HIDDEN), 0.01),
            wv=nrm((HIDDEN, HIDDEN)), bv=nrm((1, HIDDEN), 0.01),
            wo=nrm((HIDDEN, HIDDEN)), bo=nrm((1, HIDDEN), 0.01),
            ln2_w=jnp.ones((1, HIDDEN), jnp.float32) + nrm((1, HIDDEN), 0.01),
            ln2_b=nrm((1, HIDDEN), 0.01),
            w1=nrm((HIDDEN, INTERMEDIATE)), b1=nrm((1, INTERMEDIATE), 0.01),
            w2=nrm((INTERMEDIATE, HIDDEN)), b2=nrm((1, HIDDEN), 0.01),
        ))
    return dict(patch_w=patch_w, patch_b=patch_b, pos_emb=pos_emb, layers=layers)


# ----------------------------- pure-JAX reference (sanity check) -----------------------------
def reference_forward(images, params):
    x = extract_patches(images.astype(jnp.float32))
    x = x @ params["patch_w"] + params["patch_b"] + params["pos_emb"]

    def ln(v, w, b):
        mu = v.mean(-1, keepdims=True)
        var = ((v - mu) ** 2).mean(-1, keepdims=True)
        return (v - mu) / jnp.sqrt(var + EPS) * w + b

    for li in range(LAYERS_TO_RUN):
        p = params["layers"][li]
        h = ln(x, p["ln1_w"], p["ln1_b"])
        q = h @ p["wq"] + p["bq"]
        k = h @ p["wk"] + p["bk"]
        v = h @ p["wv"] + p["bv"]
        B, S, D = q.shape
        qh = q.reshape(B, S, HEADS, HEAD_DIM).transpose(0, 2, 1, 3)
        kh = k.reshape(B, S, HEADS, HEAD_DIM).transpose(0, 2, 1, 3)
        vh = v.reshape(B, S, HEADS, HEAD_DIM).transpose(0, 2, 1, 3)
        s = jnp.einsum("bhqd,bhkd->bhqk", qh, kh) * (HEAD_DIM ** -0.5)
        pr = jax.nn.softmax(s, axis=-1)
        ctx = jnp.einsum("bhqk,bhkd->bhqd", pr, vh).transpose(0, 2, 1, 3).reshape(B, S, D)
        x = x + (ctx @ p["wo"] + p["bo"])
        h2 = ln(x, p["ln2_w"], p["ln2_b"])
        m1 = h2 @ p["w1"] + p["b1"]
        g = 0.5 * m1 * (1.0 + jnp.tanh(math.sqrt(2.0 / math.pi) * (m1 + 0.044715 * m1 ** 3)))
        x = x + (g @ p["w2"] + p["b2"])
    return x.astype(images.dtype)


# ----------------------------- main -----------------------------
if __name__ == "__main__":
    key = jax.random.PRNGKey(0)
    k_img, k_par = jax.random.split(key)
    images = jax.random.normal(k_img, (2, CHANNELS, IMAGE_SIZE, IMAGE_SIZE), dtype=jnp.float32)
    params = init_params(k_par)

    out = siglip_vision_tower_forward(images, params)
    out = jax.block_until_ready(out)

    assert out.shape == (2, NUM_PATCHES, HIDDEN), out.shape
    ref = jax.block_until_ready(reference_forward(images, params))
    assert jnp.allclose(out, ref, rtol=2e-3, atol=2e-3), float(jnp.max(jnp.abs(out - ref)))

    print("KERNEL_OK")
</pallas_src>

<mosaic_0001>
module attributes {stable_mosaic.version = 11 : i64} {
  func.func @fused_vit_kernel(%arg0: i32, %arg1: memref<1x64x12xf32, #tpu.memory_space<vmem>>, %arg2: memref<12x32xf32, #tpu.memory_space<vmem>>, %arg3: memref<1x32xf32, #tpu.memory_space<vmem>>, %arg4: memref<64x32xf32, #tpu.memory_space<vmem>>, %arg5: memref<2x1x32xf32, #tpu.memory_space<vmem>>, %arg6: memref<2x1x32xf32, #tpu.memory_space<vmem>>, %arg7: memref<2x32x96xf32, #tpu.memory_space<vmem>>, %arg8: memref<2x1x96xf32, #tpu.memory_space<vmem>>, %arg9: memref<2x2x16x32xf32, #tpu.memory_space<vmem>>, %arg10: memref<2x1x32xf32, #tpu.memory_space<vmem>>, %arg11: memref<2x1x32xf32, #tpu.memory_space<vmem>>, %arg12: memref<2x1x32xf32, #tpu.memory_space<vmem>>, %arg13: memref<2x32x64xf32, #tpu.memory_space<vmem>>, %arg14: memref<2x1x64xf32, #tpu.memory_space<vmem>>, %arg15: memref<2x64x32xf32, #tpu.memory_space<vmem>>, %arg16: memref<2x1x32xf32, #tpu.memory_space<vmem>>, %arg17: memref<1x64x32xf32, #tpu.memory_space<vmem>>) attributes {dimension_semantics = [#tpu.dimension_semantics<parallel>], iteration_bounds = array<i64: 2>, scalar_prefetch = 0 : i64, scratch_operands = 0 : i64, tpu.core_type = #tpu.core_type<tc>, window_params = [{transform_indices = @transform_0, window_bounds = array<i64: 1, 64, 12>}, {pipeline_mode = #tpu.pipeline_mode<synchronous>, transform_indices = @transform_1, window_bounds = array<i64: 12, 32>}, {pipeline_mode = #tpu.pipeline_mode<synchronous>, transform_indices = @transform_2, window_bounds = array<i64: 1, 32>}, {pipeline_mode = #tpu.pipeline_mode<synchronous>, transform_indices = @transform_3, window_bounds = array<i64: 64, 32>}, {pipeline_mode = #tpu.pipeline_mode<synchronous>, transform_indices = @transform_4, window_bounds = array<i64: 2, 1, 32>}, {pipeline_mode = #tpu.pipeline_mode<synchronous>, transform_indices = @transform_5, window_bounds = array<i64: 2, 1, 32>}, {pipeline_mode = #tpu.pipeline_mode<synchronous>, transform_indices = @transform_6, window_bounds = array<i64: 2, 32, 96>}, {pipeline_mode = #tpu.pipeline_mode<synchronous>, transform_indices = @transform_7, window_bounds = array<i64: 2, 1, 96>}, {pipeline_mode = #tpu.pipeline_mode<synchronous>, transform_indices = @transform_8, window_bounds = array<i64: 2, 2, 16, 32>}, {pipeline_mode = #tpu.pipeline_mode<synchronous>, transform_indices = @transform_9, window_bounds = array<i64: 2, 1, 32>}, {pipeline_mode = #tpu.pipeline_mode<synchronous>, transform_indices = @transform_10, window_bounds = array<i64: 2, 1, 32>}, {pipeline_mode = #tpu.pipeline_mode<synchronous>, transform_indices = @transform_11, window_bounds = array<i64: 2, 1, 32>}, {pipeline_mode = #tpu.pipeline_mode<synchronous>, transform_indices = @transform_12, window_bounds = array<i64: 2, 32, 64>}, {pipeline_mode = #tpu.pipeline_mode<synchronous>, transform_indices = @transform_13, window_bounds = array<i64: 2, 1, 64>}, {pipeline_mode = #tpu.pipeline_mode<synchronous>, transform_indices = @transform_14, window_bounds = array<i64: 2, 64, 32>}, {pipeline_mode = #tpu.pipeline_mode<synchronous>, transform_indices = @transform_15, window_bounds = array<i64: 2, 1, 32>}, {transform_indices = @transform_16, window_bounds = array<i64: 1, 64, 32>}]} {
    %c0 = arith.constant 0 : index
    %c0_0 = arith.constant 0 : index
    %c0_1 = arith.constant 0 : index
    %0 = vector.load %arg1[%c0, %c0_0, %c0_1] : memref<1x64x12xf32, #tpu.memory_space<vmem>>, vector<1x64x12xf32>
    %1 = vector.shape_cast %0 : vector<1x64x12xf32> to vector<64x12xf32>
    %c0_2 = arith.constant 0 : index
    %c0_3 = arith.constant 0 : index
    %2 = vector.load %arg2[%c0_2, %c0_3] : memref<12x32xf32, #tpu.memory_space<vmem>>, vector<12x32xf32>
    %cst = arith.constant dense<0.000000e+00> : vector<64x32xf32>
    %3 = tpu.matmul %1, %2, %cst {dimension_numbers = #tpu.dot_dimension_numbers<[1], [0], [0], [1], [0, 0, 1, 1], [], []>} : vector<64x12xf32>, vector<12x32xf32>, vector<64x32xf32> -> vector<64x32xf32>
    %c0_4 = arith.constant 0 : index
    %c0_5 = arith.constant 0 : index
    %4 = vector.load %arg3[%c0_4, %c0_5] : memref<1x32xf32, #tpu.memory_space<vmem>>, vector<1x32xf32>
    %5 = vector.broadcast %4 : vector<1x32xf32> to vector<64x32xf32>
    %6 = arith.addf %3, %5 : vector<64x32xf32>
    %c0_6 = arith.constant 0 : index
    %c0_7 = arith.constant 0 : index
    %7 = vector.load %arg4[%c0_6, %c0_7] : memref<64x32xf32, #tpu.memory_space<vmem>>, vector<64x32xf32>
    %8 = arith.addf %6, %7 : vector<64x32xf32>
    %c0_8 = arith.constant 0 : index
    %c0_9 = arith.constant 0 : index
    %c0_10 = arith.constant 0 : index
    %9 = vector.load %arg5[%c0_8, %c0_9, %c0_10] : memref<2x1x32xf32, #tpu.memory_space<vmem>>, vector<1x1x32xf32>
    %10 = vector.shape_cast %9 : vector<1x1x32xf32> to vector<1x32xf32>
    %c0_11 = arith.constant 0 : index
    %c0_12 = arith.constant 0 : index
    %c0_13 = arith.constant 0 : index
    %11 = vector.load %arg6[%c0_11, %c0_12, %c0_13] : memref<2x1x32xf32, #tpu.memory_space<vmem>>, vector<1x1x32xf32>
    %12 = vector.shape_cast %11 : vector<1x1x32xf32> to vector<1x32xf32>
    %cst_14 = arith.constant dense<0.000000e+00> : vector<64xf32>
    %13 = vector.multi_reduction <add>, %8, %cst_14 [1] : vector<64x32xf32> to vector<64xf32>
    %14 = vector.shape_cast %13 : vector<64xf32> to vector<64x1xf32>
    %cst_15 = arith.constant 3.200000e+01 : f32
    %15 = vector.broadcast %cst_15 : f32 to vector<64x1xf32>
    %16 = arith.divf %14, %15 : vector<64x1xf32>
    %17 = vector.broadcast %16 : vector<64x1xf32> to vector<64x32xf32>
    %18 = arith.subf %8, %17 : vector<64x32xf32>
    %19 = arith.mulf %18, %18 : vector<64x32xf32>
    %cst_16 = arith.constant dense<0.000000e+00> : vector<64xf32>
    %20 = vector.multi_reduction <add>, %19, %cst_16 [1] : vector<64x32xf32> to vector<64xf32>
    %21 = vector.shape_cast %20 : vector<64xf32> to vector<64x1xf32>
    %cst_17 = arith.constant 3.200000e+01 : f32
    %22 = vector.broadcast %cst_17 : f32 to vector<64x1xf32>
    %23 = arith.divf %21, %22 : vector<64x1xf32>
    %24 = vector.broadcast %16 : vector<64x1xf32> to vector<64x32xf32>
    %25 = arith.subf %8, %24 : vector<64x32xf32>
    %cst_18 = arith.constant 9.99999997E-7 : f32
    %26 = vector.broadcast %cst_18 : f32 to vector<64x1xf32>
    %27 = arith.addf %23, %26 : vector<64x1xf32>
    %28 = math.rsqrt %27 : vector<64x1xf32>
    %29 = vector.broadcast %28 : vector<64x1xf32> to vector<64x32xf32>
    %30 = arith.mulf %25, %29 : vector<64x32xf32>
    %31 = vector.broadcast %10 : vector<1x32xf32> to vector<64x32xf32>
    %32 = arith.mulf %30, %31 : vector<64x32xf32>
    %33 = vector.broadcast %12 : vector<1x32xf32> to vector<64x32xf32>
    %34 = arith.addf %32, %33 : vector<64x32xf32>
    %c0_19 = arith.constant 0 : index
    %c0_20 = arith.constant 0 : index
    %c0_21 = arith.constant 0 : index
    %35 = vector.load %arg7[%c0_19, %c0_20, %c0_21] : memref<2x32x96xf32, #tpu.memory_space<vmem>>, vector<1x32x96xf32>
    %36 = vector.shape_cast %35 : vector<1x32x96xf32> to vector<32x96xf32>
    %cst_22 = arith.constant dense<0.000000e+00> : vector<64x96xf32>
    %37 = tpu.matmul %34, %36, %cst_22 {dimension_numbers = #tpu.dot_dimension_numbers<[1], [0], [0], [1], [0, 0, 1, 1], [], []>} : vector<64x32xf32>, vector<32x96xf32>, vector<64x96xf32> -> vector<64x96xf32>
    %c0_23 = arith.constant 0 : index
    %c0_24 = arith.constant 0 : index
    %c0_25 = arith.constant 0 : index
    %38 = vector.load %arg8[%c0_23, %c0_24, %c0_25] : memref<2x1x96xf32, #tpu.memory_space<vmem>>, vector<1x1x96xf32>
    %39 = vector.shape_cast %38 : vector<1x1x96xf32> to vector<1x96xf32>
    %40 = vector.broadcast %39 : vector<1x96xf32> to vector<64x96xf32>
    %41 = arith.addf %37, %40 : vector<64x96xf32>
    %c0_26 = arith.constant 0 : index
    %c0_27 = arith.constant 0 : index
    %c0_28 = arith.constant 0 : index
    %c0_29 = arith.constant 0 : index
    %42 = vector.load %arg9[%c0_26, %c0_27, %c0_28, %c0_29] : memref<2x2x16x32xf32, #tpu.memory_space<vmem>>, vector<1x2x16x32xf32>
    %43 = vector.shape_cast %42 : vector<1x2x16x32xf32> to vector<2x16x32xf32>
    %cst_30 = arith.constant 0.000000e+00 : f32
    %44 = vector.broadcast %cst_30 : f32 to vector<64x32xf32>
    %45 = vector.extract_strided_slice %41 {offsets = [0, 0], sizes = [64, 16], strides = [1, 1]} : vector<64x96xf32> to vector<64x16xf32>
    %46 = vector.extract_strided_slice %41 {offsets = [0, 32], sizes = [64, 16], strides = [1, 1]} : vector<64x96xf32> to vector<64x16xf32>
    %47 = vector.extract_strided_slice %41 {offsets = [0, 64], sizes = [64, 16], strides = [1, 1]} : vector<64x96xf32> to vector<64x16xf32>
    %cst_31 = arith.constant dense<0.000000e+00> : vector<64x64xf32>
    %48 = tpu.matmul %45, %46, %cst_31 {dimension_numbers = #tpu.dot_dimension_numbers<[1], [1], [0], [0], [0, 0, 1, 0], [], []>} : vector<64x16xf32>, vector<64x16xf32>, vector<64x64xf32> -> vector<64x64xf32>
    %cst_32 = arith.constant dense<0xFF800000> : vector<64xf32>
    %49 = vector.multi_reduction <maximumf>, %48, %cst_32 [1] : vector<64x64xf32> to vector<64xf32>
    %50 = vector.shape_cast %49 : vector<64xf32> to vector<64x1xf32>
    %51 = vector.broadcast %50 : vector<64x1xf32> to vector<64x64xf32>
    %52 = arith.subf %48, %51 : vector<64x64xf32>
    %53 = math.exp %52 : vector<64x64xf32>
    %cst_33 = arith.constant dense<0.000000e+00> : vector<64xf32>
    %54 = vector.multi_reduction <add>, %53, %cst_33 [1] : vector<64x64xf32> to vector<64xf32>
    %55 = vector.shape_cast %54 : vector<64xf32> to vector<64x1xf32>
    %56 = vector.broadcast %55 : vector<64x1xf32> to vector<64x64xf32>
    %57 = arith.divf %53, %56 : vector<64x64xf32>
    %cst_34 = arith.constant dense<0.000000e+00> : vector<64x16xf32>
    %58 = tpu.matmul %57, %47, %cst_34 {dimension_numbers = #tpu.dot_dimension_numbers<[1], [0], [0], [1], [0, 0, 1, 1], [], []>} : vector<64x64xf32>, vector<64x16xf32>, vector<64x16xf32> -> vector<64x16xf32>
    %59 = vector.extract_strided_slice %43 {offsets = [0, 0, 0], sizes = [1, 16, 32], strides = [1, 1, 1]} : vector<2x16x32xf32> to vector<1x16x32xf32>
    %60 = vector.shape_cast %59 : vector<1x16x32xf32> to vector<16x32xf32>
    %cst_35 = arith.constant dense<0.000000e+00> : vector<64x32xf32>
    %61 = tpu.matmul %58, %60, %cst_35 {dimension_numbers = #tpu.dot_dimension_numbers<[1], [0], [0], [1], [0, 0, 1, 1], [], []>} : vector<64x16xf32>, vector<16x32xf32>, vector<64x32xf32> -> vector<64x32xf32>
    %62 = arith.addf %44, %61 : vector<64x32xf32>
    %63 = vector.extract_strided_slice %41 {offsets = [0, 16], sizes = [64, 16], strides = [1, 1]} : vector<64x96xf32> to vector<64x16xf32>
    %64 = vector.extract_strided_slice %41 {offsets = [0, 48], sizes = [64, 16], strides = [1, 1]} : vector<64x96xf32> to vector<64x16xf32>
    %65 = vector.extract_strided_slice %41 {offsets = [0, 80], sizes = [64, 16], strides = [1, 1]} : vector<64x96xf32> to vector<64x16xf32>
    %cst_36 = arith.constant dense<0.000000e+00> : vector<64x64xf32>
    %66 = tpu.matmul %63, %64, %cst_36 {dimension_numbers = #tpu.dot_dimension_numbers<[1], [1], [0], [0], [0, 0, 1, 0], [], []>} : vector<64x16xf32>, vector<64x16xf32>, vector<64x64xf32> -> vector<64x64xf32>
    %cst_37 = arith.constant dense<0xFF800000> : vector<64xf32>
    %67 = vector.multi_reduction <maximumf>, %66, %cst_37 [1] : vector<64x64xf32> to vector<64xf32>
    %68 = vector.shape_cast %67 : vector<64xf32> to vector<64x1xf32>
    %69 = vector.broadcast %68 : vector<64x1xf32> to vector<64x64xf32>
    %70 = arith.subf %66, %69 : vector<64x64xf32>
    %71 = math.exp %70 : vector<64x64xf32>
    %cst_38 = arith.constant dense<0.000000e+00> : vector<64xf32>
    %72 = vector.multi_reduction <add>, %71, %cst_38 [1] : vector<64x64xf32> to vector<64xf32>
    %73 = vector.shape_cast %72 : vector<64xf32> to vector<64x1xf32>
    %74 = vector.broadcast %73 : vector<64x1xf32> to vector<64x64xf32>
    %75 = arith.divf %71, %74 : vector<64x64xf32>
    %cst_39 = arith.constant dense<0.000000e+00> : vector<64x16xf32>
    %76 = tpu.matmul %75, %65, %cst_39 {dimension_numbers = #tpu.dot_dimension_numbers<[1], [0], [0], [1], [0, 0, 1, 1], [], []>} : vector<64x64xf32>, vector<64x16xf32>, vector<64x16xf32> -> vector<64x16xf32>
    %77 = vector.extract_strided_slice %43 {offsets = [1, 0, 0], sizes = [1, 16, 32], strides = [1, 1, 1]} : vector<2x16x32xf32> to vector<1x16x32xf32>
    %78 = vector.shape_cast %77 : vector<1x16x32xf32> to vector<16x32xf32>
    %cst_40 = arith.constant dense<0.000000e+00> : vector<64x32xf32>
    %79 = tpu.matmul %76, %78, %cst_40 {dimension_numbers = #tpu.dot_dimension_numbers<[1], [0], [0], [1], [0, 0, 1, 1], [], []>} : vector<64x16xf32>, vector<16x32xf32>, vector<64x32xf32> -> vector<64x32xf32>
    %80 = arith.addf %62, %79 : vector<64x32xf32>
    %81 = arith.addf %8, %80 : vector<64x32xf32>
    %c0_41 = arith.constant 0 : index
    %c0_42 = arith.constant 0 : index
    %c0_43 = arith.constant 0 : index
    %82 = vector.load %arg10[%c0_41, %c0_42, %c0_43] : memref<2x1x32xf32, #tpu.memory_space<vmem>>, vector<1x1x32xf32>
    %83 = vector.shape_cast %82 : vector<1x1x32xf32> to vector<1x32xf32>
    %84 = vector.broadcast %83 : vector<1x32xf32> to vector<64x32xf32>
    %85 = arith.addf %81, %84 : vector<64x32xf32>
    %c0_44 = arith.constant 0 : index
    %c0_45 = arith.constant 0 : index
    %c0_46 = arith.constant 0 : index
    %86 = vector.load %arg11[%c0_44, %c0_45, %c0_46] : memref<2x1x32xf32, #tpu.memory_space<vmem>>, vector<1x1x32xf32>
    %87 = vector.shape_cast %86 : vector<1x1x32xf32> to vector<1x32xf32>
    %c0_47 = arith.constant 0 : index
    %c0_48 = arith.constant 0 : index
    %c0_49 = arith.constant 0 : index
    %88 = vector.load %arg12[%c0_47, %c0_48, %c0_49] : memref<2x1x32xf32, #tpu.memory_space<vmem>>, vector<1x1x32xf32>
    %89 = vector.shape_cast %88 : vector<1x1x32xf32> to vector<1x32xf32>
    %cst_50 = arith.constant dense<0.000000e+00> : vector<64xf32>
    %90 = vector.multi_reduction <add>, %85, %cst_50 [1] : vector<64x32xf32> to vector<64xf32>
    %91 = vector.shape_cast %90 : vector<64xf32> to vector<64x1xf32>
    %cst_51 = arith.constant 3.200000e+01 : f32
    %92 = vector.broadcast %cst_51 : f32 to vector<64x1xf32>
    %93 = arith.divf %91, %92 : vector<64x1xf32>
    %94 = vector.broadcast %93 : vector<64x1xf32> to vector<64x32xf32>
    %95 = arith.subf %85, %94 : vector<64x32xf32>
    %96 = arith.mulf %95, %95 : vector<64x32xf32>
    %cst_52 = arith.constant dense<0.000000e+00> : vector<64xf32>
    %97 = vector.multi_reduction <add>, %96, %cst_52 [1] : vector<64x32xf32> to vector<64xf32>
    %98 = vector.shape_cast %97 : vector<64xf32> to vector<64x1xf32>
    %cst_53 = arith.constant 3.200000e+01 : f32
    %99 = vector.broadcast %cst_53 : f32 to vector<64x1xf32>
    %100 = arith.divf %98, %99 : vector<64x1xf32>
    %101 = vector.broadcast %93 : vector<64x1xf32> to vector<64x32xf32>
    %102 = arith.subf %85, %101 : vector<64x32xf32>
    %cst_54 = arith.constant 9.99999997E-7 : f32
    %103 = vector.broadcast %cst_54 : f32 to vector<64x1xf32>
    %104 = arith.addf %100, %103 : vector<64x1xf32>
    %105 = math.rsqrt %104 : vector<64x1xf32>
    %106 = vector.broadcast %105 : vector<64x1xf32> to vector<64x32xf32>
    %107 = arith.mulf %102, %106 : vector<64x32xf32>
    %108 = vector.broadcast %87 : vector<1x32xf32> to vector<64x32xf32>
    %109 = arith.mulf %107, %108 : vector<64x32xf32>
    %110 = vector.broadcast %89 : vector<1x32xf32> to vector<64x32xf32>
    %111 = arith.addf %109, %110 : vector<64x32xf32>
    %c0_55 = arith.constant 0 : index
    %c0_56 = arith.constant 0 : index
    %c0_57 = arith.constant 0 : index
    %112 = vector.load %arg13[%c0_55, %c0_56, %c0_57] : memref<2x32x64xf32, #tpu.memory_space<vmem>>, vector<1x32x64xf32>
    %113 = vector.shape_cast %112 : vector<1x32x64xf32> to vector<32x64xf32>
    %cst_58 = arith.constant dense<0.000000e+00> : vector<64x64xf32>
    %114 = tpu.matmul %111, %113, %cst_58 {dimension_numbers = #tpu.dot_dimension_numbers<[1], [0], [0], [1], [0, 0, 1, 1], [], []>} : vector<64x32xf32>, vector<32x64xf32>, vector<64x64xf32> -> vector<64x64xf32>
    %c0_59 = arith.constant 0 : index
    %c0_60 = arith.constant 0 : index
    %c0_61 = arith.constant 0 : index
    %115 = vector.load %arg14[%c0_59, %c0_60, %c0_61] : memref<2x1x64xf32, #tpu.memory_space<vmem>>, vector<1x1x64xf32>
    %116 = vector.shape_cast %115 : vector<1x1x64xf32> to vector<1x64xf32>
    %117 = vector.broadcast %116 : vector<1x64xf32> to vector<64x64xf32>
    %118 = arith.addf %114, %117 : vector<64x64xf32>
    %cst_62 = arith.constant 5.000000e-01 : f32
    %119 = vector.broadcast %cst_62 : f32 to vector<64x64xf32>
    %120 = arith.mulf %119, %118 : vector<64x64xf32>
    %cst_63 = arith.constant 4.471500e-02 : f32
    %121 = vector.broadcast %cst_63 : f32 to vector<64x64xf32>
    %122 = arith.mulf %121, %118 : vector<64x64xf32>
    %123 = arith.mulf %122, %118 : vector<64x64xf32>
    %124 = arith.mulf %123, %118 : vector<64x64xf32>
    %125 = arith.addf %118, %124 : vector<64x64xf32>
    %cst_64 = arith.constant 0.797884583 : f32
    %126 = vector.broadcast %cst_64 : f32 to vector<64x64xf32>
    %127 = arith.mulf %126, %125 : vector<64x64xf32>
    %128 = math.tanh %127 : vector<64x64xf32>
    %cst_65 = arith.constant 1.000000e+00 : f32
    %129 = vector.broadcast %cst_65 : f32 to vector<64x64xf32>
    %130 = arith.addf %129, %128 : vector<64x64xf32>
    %131 = arith.mulf %120, %130 : vector<64x64xf32>
    %c0_66 = arith.constant 0 : index
    %c0_67 = arith.constant 0 : index
    %c0_68 = arith.constant 0 : index
    %132 = vector.load %arg15[%c0_66, %c0_67, %c0_68] : memref<2x64x32xf32, #tpu.memory_space<vmem>>, vector<1x64x32xf32>
    %133 = vector.shape_cast %132 : vector<1x64x32xf32> to vector<64x32xf32>
    %cst_69 = arith.constant dense<0.000000e+00> : vector<64x32xf32>
    %134 = tpu.matmul %131, %133, %cst_69 {dimension_numbers = #tpu.dot_dimension_numbers<[1], [0], [0], [1], [0, 0, 1, 1], [], []>} : vector<64x64xf32>, vector<64x32xf32>, vector<64x32xf32> -> vector<64x32xf32>
    %135 = arith.addf %85, %134 : vector<64x32xf32>
    %c0_70 = arith.constant 0 : index
    %c0_71 = arith.constant 0 : index
    %c0_72 = arith.constant 0 : index
    %136 = vector.load %arg16[%c0_70, %c0_71, %c0_72] : memref<2x1x32xf32, #tpu.memory_space<vmem>>, vector<1x1x32xf32>
    %137 = vector.shape_cast %136 : vector<1x1x32xf32> to vector<1x32xf32>
    %138 = vector.broadcast %137 : vector<1x32xf32> to vector<64x32xf32>
    %139 = arith.addf %135, %138 : vector<64x32xf32>
    %c1 = arith.constant 1 : index
    %c0_73 = arith.constant 0 : index
    %c0_74 = arith.constant 0 : index
    %140 = vector.load %arg5[%c1, %c0_73, %c0_74] : memref<2x1x32xf32, #tpu.memory_space<vmem>>, vector<1x1x32xf32>
    %141 = vector.shape_cast %140 : vector<1x1x32xf32> to vector<1x32xf32>
    %c1_75 = arith.constant 1 : index
    %c0_76 = arith.constant 0 : index
    %c0_77 = arith.constant 0 : index
    %142 = vector.load %arg6[%c1_75, %c0_76, %c0_77] : memref<2x1x32xf32, #tpu.memory_space<vmem>>, vector<1x1x32xf32>
    %143 = vector.shape_cast %142 : vector<1x1x32xf32> to vector<1x32xf32>
    %cst_78 = arith.constant dense<0.000000e+00> : vector<64xf32>
    %144 = vector.multi_reduction <add>, %139, %cst_78 [1] : vector<64x32xf32> to vector<64xf32>
    %145 = vector.shape_cast %144 : vector<64xf32> to vector<64x1xf32>
    %cst_79 = arith.constant 3.200000e+01 : f32
    %146 = vector.broadcast %cst_79 : f32 to vector<64x1xf32>
    %147 = arith.divf %145, %146 : vector<64x1xf32>
    %148 = vector.broadcast %147 : vector<64x1xf32> to vector<64x32xf32>
    %149 = arith.subf %139, %148 : vector<64x32xf32>
    %150 = arith.mulf %149, %149 : vector<64x32xf32>
    %cst_80 = arith.constant dense<0.000000e+00> : vector<64xf32>
    %151 = vector.multi_reduction <add>, %150, %cst_80 [1] : vector<64x32xf32> to vector<64xf32>
    %152 = vector.shape_cast %151 : vector<64xf32> to vector<64x1xf32>
    %cst_81 = arith.constant 3.200000e+01 : f32
    %153 = vector.broadcast %cst_81 : f32 to vector<64x1xf32>
    %154 = arith.divf %152, %153 : vector<64x1xf32>
    %155 = vector.broadcast %147 : vector<64x1xf32> to vector<64x32xf32>
    %156 = arith.subf %139, %155 : vector<64x32xf32>
    %cst_82 = arith.constant 9.99999997E-7 : f32
    %157 = vector.broadcast %cst_82 : f32 to vector<64x1xf32>
    %158 = arith.addf %154, %157 : vector<64x1xf32>
    %159 = math.rsqrt %158 : vector<64x1xf32>
    %160 = vector.broadcast %159 : vector<64x1xf32> to vector<64x32xf32>
    %161 = arith.mulf %156, %160 : vector<64x32xf32>
    %162 = vector.broadcast %141 : vector<1x32xf32> to vector<64x32xf32>
    %163 = arith.mulf %161, %162 : vector<64x32xf32>
    %164 = vector.broadcast %143 : vector<1x32xf32> to vector<64x32xf32>
    %165 = arith.addf %163, %164 : vector<64x32xf32>
    %c1_83 = arith.constant 1 : index
    %c0_84 = arith.constant 0 : index
    %c0_85 = arith.constant 0 : index
    %166 = vector.load %arg7[%c1_83, %c0_84, %c0_85] : memref<2x32x96xf32, #tpu.memory_space<vmem>>, vector<1x32x96xf32>
    %167 = vector.shape_cast %166 : vector<1x32x96xf32> to vector<32x96xf32>
    %cst_86 = arith.constant dense<0.000000e+00> : vector<64x96xf32>
    %168 = tpu.matmul %165, %167, %cst_86 {dimension_numbers = #tpu.dot_dimension_numbers<[1], [0], [0], [1], [0, 0, 1, 1], [], []>} : vector<64x32xf32>, vector<32x96xf32>, vector<64x96xf32> -> vector<64x96xf32>
    %c1_87 = arith.constant 1 : index
    %c0_88 = arith.constant 0 : index
    %c0_89 = arith.constant 0 : index
    %169 = vector.load %arg8[%c1_87, %c0_88, %c0_89] : memref<2x1x96xf32, #tpu.memory_space<vmem>>, vector<1x1x96xf32>
    %170 = vector.shape_cast %169 : vector<1x1x96xf32> to vector<1x96xf32>
    %171 = vector.broadcast %170 : vector<1x96xf32> to vector<64x96xf32>
    %172 = arith.addf %168, %171 : vector<64x96xf32>
    %c1_90 = arith.constant 1 : index
    %c0_91 = arith.constant 0 : index
    %c0_92 = arith.constant 0 : index
    %c0_93 = arith.constant 0 : index
    %173 = vector.load %arg9[%c1_90, %c0_91, %c0_92, %c0_93] : memref<2x2x16x32xf32, #tpu.memory_space<vmem>>, vector<1x2x16x32xf32>
    %174 = vector.shape_cast %173 : vector<1x2x16x32xf32> to vector<2x16x32xf32>
    %cst_94 = arith.constant 0.000000e+00 : f32
    %175 = vector.broadcast %cst_94 : f32 to vector<64x32xf32>
    %176 = vector.extract_strided_slice %172 {offsets = [0, 0], sizes = [64, 16], strides = [1, 1]} : vector<64x96xf32> to vector<64x16xf32>
    %177 = vector.extract_strided_slice %172 {offsets = [0, 32], sizes = [64, 16], strides = [1, 1]} : vector<64x96xf32> to vector<64x16xf32>
    %178 = vector.extract_strided_slice %172 {offsets = [0, 64], sizes = [64, 16], strides = [1, 1]} : vector<64x96xf32> to vector<64x16xf32>
    %cst_95 = arith.constant dense<0.000000e+00> : vector<64x64xf32>
    %179 = tpu.matmul %176, %177, %cst_95 {dimension_numbers = #tpu.dot_dimension_numbers<[1], [1], [0], [0], [0, 0, 1, 0], [], []>} : vector<64x16xf32>, vector<64x16xf32>, vector<64x64xf32> -> vector<64x64xf32>
    %cst_96 = arith.constant dense<0xFF800000> : vector<64xf32>
    %180 = vector.multi_reduction <maximumf>, %179, %cst_96 [1] : vector<64x64xf32> to vector<64xf32>
    %181 = vector.shape_cast %180 : vector<64xf32> to vector<64x1xf32>
    %182 = vector.broadcast %181 : vector<64x1xf32> to vector<64x64xf32>
    %183 = arith.subf %179, %182 : vector<64x64xf32>
    %184 = math.exp %183 : vector<64x64xf32>
    %cst_97 = arith.constant dense<0.000000e+00> : vector<64xf32>
    %185 = vector.multi_reduction <add>, %184, %cst_97 [1] : vector<64x64xf32> to vector<64xf32>
    %186 = vector.shape_cast %185 : vector<64xf32> to vector<64x1xf32>
    %187 = vector.broadcast %186 : vector<64x1xf32> to vector<64x64xf32>
    %188 = arith.divf %184, %187 : vector<64x64xf32>
    %cst_98 = arith.constant dense<0.000000e+00> : vector<64x16xf32>
    %189 = tpu.matmul %188, %178, %cst_98 {dimension_numbers = #tpu.dot_dimension_numbers<[1], [0], [0], [1], [0, 0, 1, 1], [], []>} : vector<64x64xf32>, vector<64x16xf32>, vector<64x16xf32> -> vector<64x16xf32>
    %190 = vector.extract_strided_slice %174 {offsets = [0, 0, 0], sizes = [1, 16, 32], strides = [1, 1, 1]} : vector<2x16x32xf32> to vector<1x16x32xf32>
    %191 = vector.shape_cast %190 : vector<1x16x32xf32> to vector<16x32xf32>
    %cst_99 = arith.constant dense<0.000000e+00> : vector<64x32xf32>
    %192 = tpu.matmul %189, %191, %cst_99 {dimension_numbers = #tpu.dot_dimension_numbers<[1], [0], [0], [1], [0, 0, 1, 1], [], []>} : vector<64x16xf32>, vector<16x32xf32>, vector<64x32xf32> -> vector<64x32xf32>
    %193 = arith.addf %175, %192 : vector<64x32xf32>
    %194 = vector.extract_strided_slice %172 {offsets = [0, 16], sizes = [64, 16], strides = [1, 1]} : vector<64x96xf32> to vector<64x16xf32>
    %195 = vector.extract_strided_slice %172 {offsets = [0, 48], sizes = [64, 16], strides = [1, 1]} : vector<64x96xf32> to vector<64x16xf32>
    %196 = vector.extract_strided_slice %172 {offsets = [0, 80], sizes = [64, 16], strides = [1, 1]} : vector<64x96xf32> to vector<64x16xf32>
    %cst_100 = arith.constant dense<0.000000e+00> : vector<64x64xf32>
    %197 = tpu.matmul %194, %195, %cst_100 {dimension_numbers = #tpu.dot_dimension_numbers<[1], [1], [0], [0], [0, 0, 1, 0], [], []>} : vector<64x16xf32>, vector<64x16xf32>, vector<64x64xf32> -> vector<64x64xf32>
    %cst_101 = arith.constant dense<0xFF800000> : vector<64xf32>
    %198 = vector.multi_reduction <maximumf>, %197, %cst_101 [1] : vector<64x64xf32> to vector<64xf32>
    %199 = vector.shape_cast %198 : vector<64xf32> to vector<64x1xf32>
    %200 = vector.broadcast %199 : vector<64x1xf32> to vector<64x64xf32>
    %201 = arith.subf %197, %200 : vector<64x64xf32>
    %202 = math.exp %201 : vector<64x64xf32>
    %cst_102 = arith.constant dense<0.000000e+00> : vector<64xf32>
    %203 = vector.multi_reduction <add>, %202, %cst_102 [1] : vector<64x64xf32> to vector<64xf32>
    %204 = vector.shape_cast %203 : vector<64xf32> to vector<64x1xf32>
    %205 = vector.broadcast %204 : vector<64x1xf32> to vector<64x64xf32>
    %206 = arith.divf %202, %205 : vector<64x64xf32>
    %cst_103 = arith.constant dense<0.000000e+00> : vector<64x16xf32>
    %207 = tpu.matmul %206, %196, %cst_103 {dimension_numbers = #tpu.dot_dimension_numbers<[1], [0], [0], [1], [0, 0, 1, 1], [], []>} : vector<64x64xf32>, vector<64x16xf32>, vector<64x16xf32> -> vector<64x16xf32>
    %208 = vector.extract_strided_slice %174 {offsets = [1, 0, 0], sizes = [1, 16, 32], strides = [1, 1, 1]} : vector<2x16x32xf32> to vector<1x16x32xf32>
    %209 = vector.shape_cast %208 : vector<1x16x32xf32> to vector<16x32xf32>
    %cst_104 = arith.constant dense<0.000000e+00> : vector<64x32xf32>
    %210 = tpu.matmul %207, %209, %cst_104 {dimension_numbers = #tpu.dot_dimension_numbers<[1], [0], [0], [1], [0, 0, 1, 1], [], []>} : vector<64x16xf32>, vector<16x32xf32>, vector<64x32xf32> -> vector<64x32xf32>
    %211 = arith.addf %193, %210 : vector<64x32xf32>
    %212 = arith.addf %139, %211 : vector<64x32xf32>
    %c1_105 = arith.constant 1 : index
    %c0_106 = arith.constant 0 : index
    %c0_107 = arith.constant 0 : index
    %213 = vector.load %arg10[%c1_105, %c0_106, %c0_107] : memref<2x1x32xf32, #tpu.memory_space<vmem>>, vector<1x1x32xf32>
    %214 = vector.shape_cast %213 : vector<1x1x32xf32> to vector<1x32xf32>
    %215 = vector.broadcast %214 : vector<1x32xf32> to vector<64x32xf32>
    %216 = arith.addf %212, %215 : vector<64x32xf32>
    %c1_108 = arith.constant 1 : index
    %c0_109 = arith.constant 0 : index
    %c0_110 = arith.constant 0 : index
    %217 = vector.load %arg11[%c1_108, %c0_109, %c0_110] : memref<2x1x32xf32, #tpu.memory_space<vmem>>, vector<1x1x32xf32>
    %218 = vector.shape_cast %217 : vector<1x1x32xf32> to vector<1x32xf32>
    %c1_111 = arith.constant 1 : index
    %c0_112 = arith.constant 0 : index
    %c0_113 = arith.constant 0 : index
    %219 = vector.load %arg12[%c1_111, %c0_112, %c0_113] : memref<2x1x32xf32, #tpu.memory_space<vmem>>, vector<1x1x32xf32>
    %220 = vector.shape_cast %219 : vector<1x1x32xf32> to vector<1x32xf32>
    %cst_114 = arith.constant dense<0.000000e+00> : vector<64xf32>
    %221 = vector.multi_reduction <add>, %216, %cst_114 [1] : vector<64x32xf32> to vector<64xf32>
    %222 = vector.shape_cast %221 : vector<64xf32> to vector<64x1xf32>
    %cst_115 = arith.constant 3.200000e+01 : f32
    %223 = vector.broadcast %cst_115 : f32 to vector<64x1xf32>
    %224 = arith.divf %222, %223 : vector<64x1xf32>
    %225 = vector.broadcast %224 : vector<64x1xf32> to vector<64x32xf32>
    %226 = arith.subf %216, %225 : vector<64x32xf32>
    %227 = arith.mulf %226, %226 : vector<64x32xf32>
    %cst_116 = arith.constant dense<0.000000e+00> : vector<64xf32>
    %228 = vector.multi_reduction <add>, %227, %cst_116 [1] : vector<64x32xf32> to vector<64xf32>
    %229 = vector.shape_cast %228 : vector<64xf32> to vector<64x1xf32>
    %cst_117 = arith.constant 3.200000e+01 : f32
    %230 = vector.broadcast %cst_117 : f32 to vector<64x1xf32>
    %231 = arith.divf %229, %230 : vector<64x1xf32>
    %232 = vector.broadcast %224 : vector<64x1xf32> to vector<64x32xf32>
    %233 = arith.subf %216, %232 : vector<64x32xf32>
    %cst_118 = arith.constant 9.99999997E-7 : f32
    %234 = vector.broadcast %cst_118 : f32 to vector<64x1xf32>
    %235 = arith.addf %231, %234 : vector<64x1xf32>
    %236 = math.rsqrt %235 : vector<64x1xf32>
    %237 = vector.broadcast %236 : vector<64x1xf32> to vector<64x32xf32>
    %238 = arith.mulf %233, %237 : vector<64x32xf32>
    %239 = vector.broadcast %218 : vector<1x32xf32> to vector<64x32xf32>
    %240 = arith.mulf %238, %239 : vector<64x32xf32>
    %241 = vector.broadcast %220 : vector<1x32xf32> to vector<64x32xf32>
    %242 = arith.addf %240, %241 : vector<64x32xf32>
    %c1_119 = arith.constant 1 : index
    %c0_120 = arith.constant 0 : index
    %c0_121 = arith.constant 0 : index
    %243 = vector.load %arg13[%c1_119, %c0_120, %c0_121] : memref<2x32x64xf32, #tpu.memory_space<vmem>>, vector<1x32x64xf32>
    %244 = vector.shape_cast %243 : vector<1x32x64xf32> to vector<32x64xf32>
    %cst_122 = arith.constant dense<0.000000e+00> : vector<64x64xf32>
    %245 = tpu.matmul %242, %244, %cst_122 {dimension_numbers = #tpu.dot_dimension_numbers<[1], [0], [0], [1], [0, 0, 1, 1], [], []>} : vector<64x32xf32>, vector<32x64xf32>, vector<64x64xf32> -> vector<64x64xf32>
    %c1_123 = arith.constant 1 : index
    %c0_124 = arith.constant 0 : index
    %c0_125 = arith.constant 0 : index
    %246 = vector.load %arg14[%c1_123, %c0_124, %c0_125] : memref<2x1x64xf32, #tpu.memory_space<vmem>>, vector<1x1x64xf32>
    %247 = vector.shape_cast %246 : vector<1x1x64xf32> to vector<1x64xf32>
    %248 = vector.broadcast %247 : vector<1x64xf32> to vector<64x64xf32>
    %249 = arith.addf %245, %248 : vector<64x64xf32>
    %cst_126 = arith.constant 5.000000e-01 : f32
    %250 = vector.broadcast %cst_126 : f32 to vector<64x64xf32>
    %251 = arith.mulf %250, %249 : vector<64x64xf32>
    %cst_127 = arith.constant 4.471500e-02 : f32
    %252 = vector.broadcast %cst_127 : f32 to vector<64x64xf32>
    %253 = arith.mulf %252, %249 : vector<64x64xf32>
    %254 = arith.mulf %253, %249 : vector<64x64xf32>
    %255 = arith.mulf %254, %249 : vector<64x64xf32>
    %256 = arith.addf %249, %255 : vector<64x64xf32>
    %cst_128 = arith.constant 0.797884583 : f32
    %257 = vector.broadcast %cst_128 : f32 to vector<64x64xf32>
    %258 = arith.mulf %257, %256 : vector<64x64xf32>
    %259 = math.tanh %258 : vector<64x64xf32>
    %cst_129 = arith.constant 1.000000e+00 : f32
    %260 = vector.broadcast %cst_129 : f32 to vector<64x64xf32>
    %261 = arith.addf %260, %259 : vector<64x64xf32>
    %262 = arith.mulf %251, %261 : vector<64x64xf32>
    %c1_130 = arith.constant 1 : index
    %c0_131 = arith.constant 0 : index
    %c0_132 = arith.constant 0 : index
    %263 = vector.load %arg15[%c1_130, %c0_131, %c0_132] : memref<2x64x32xf32, #tpu.memory_space<vmem>>, vector<1x64x32xf32>
    %264 = vector.shape_cast %263 : vector<1x64x32xf32> to vector<64x32xf32>
    %cst_133 = arith.constant dense<0.000000e+00> : vector<64x32xf32>
    %265 = tpu.matmul %262, %264, %cst_133 {dimension_numbers = #tpu.dot_dimension_numbers<[1], [0], [0], [1], [0, 0, 1, 1], [], []>} : vector<64x64xf32>, vector<64x32xf32>, vector<64x32xf32> -> vector<64x32xf32>
    %266 = arith.addf %216, %265 : vector<64x32xf32>
    %c1_134 = arith.constant 1 : index
    %c0_135 = arith.constant 0 : index
    %c0_136 = arith.constant 0 : index
    %267 = vector.load %arg16[%c1_134, %c0_135, %c0_136] : memref<2x1x32xf32, #tpu.memory_space<vmem>>, vector<1x1x32xf32>
    %268 = vector.shape_cast %267 : vector<1x1x32xf32> to vector<1x32xf32>
    %269 = vector.broadcast %268 : vector<1x32xf32> to vector<64x32xf32>
    %270 = arith.addf %266, %269 : vector<64x32xf32>
    %c0_137 = arith.constant 0 : index
    %c0_138 = arith.constant 0 : index
    %c0_139 = arith.constant 0 : index
    %271 = vector.load %arg17[%c0_137, %c0_138, %c0_139] : memref<1x64x32xf32, #tpu.memory_space<vmem>>, vector<1x64x32xf32>
    %272 = vector.shape_cast %271 : vector<1x64x32xf32> to vector<64x32xf32>
    %273 = vector.shape_cast %270 : vector<64x32xf32> to vector<1x64x32xf32>
    tpu.vector_store %arg17[%c0_137, %c0_138, %c0_139], %273 {strides = array<i32>} : memref<1x64x32xf32, #tpu.memory_space<vmem>>, vector<1x64x32xf32>,
    return
  }
  func.func @transform_0(%arg0: i32) -> (i32, i32, i32) {
    %c0_i32 = arith.constant 0 : i32
    %c0_i32_0 = arith.constant 0 : i32
    %c0_i32_1 = arith.constant 0 : i32
    return %arg0, %c0_i32, %c0_i32_0 : i32, i32, i32
  }
  func.func @transform_1(%arg0: i32) -> (i32, i32) {
    %c0_i32 = arith.constant 0 : i32
    %c0_i32_0 = arith.constant 0 : i32
    %c0_i32_1 = arith.constant 0 : i32
    return %c0_i32, %c0_i32_0 : i32, i32
  }
  func.func @transform_2(%arg0: i32) -> (i32, i32) {
    %c0_i32 = arith.constant 0 : i32
    %c0_i32_0 = arith.constant 0 : i32
    %c0_i32_1 = arith.constant 0 : i32
    return %c0_i32, %c0_i32_0 : i32, i32
  }
  func.func @transform_3(%arg0: i32) -> (i32, i32) {
    %c0_i32 = arith.constant 0 : i32
    %c0_i32_0 = arith.constant 0 : i32
    %c0_i32_1 = arith.constant 0 : i32
    return %c0_i32, %c0_i32_0 : i32, i32
  }
  func.func @transform_4(%arg0: i32) -> (i32, i32, i32) {
    %c0_i32 = arith.constant 0 : i32
    %c0_i32_0 = arith.constant 0 : i32
    %c0_i32_1 = arith.constant 0 : i32
    %c0_i32_2 = arith.constant 0 : i32
    return %c0_i32, %c0_i32_0, %c0_i32_1 : i32, i32, i32
  }
  func.func @transform_5(%arg0: i32) -> (i32, i32, i32) {
    %c0_i32 = arith.constant 0 : i32
    %c0_i32_0 = arith.constant 0 : i32
    %c0_i32_1 = arith.constant 0 : i32
    %c0_i32_2 = arith.constant 0 : i32
    return %c0_i32, %c0_i32_0, %c0_i32_1 : i32, i32, i32
  }
  func.func @transform_6(%arg0: i32) -> (i32, i32, i32) {
    %c0_i32 = arith.constant 0 : i32
    %c0_i32_0 = arith.constant 0 : i32
    %c0_i32_1 = arith.constant 0 : i32
    %c0_i32_2 = arith.constant 0 : i32
    return %c0_i32, %c0_i32_0, %c0_i32_1 : i32, i32, i32
  }
  func.func @transform_7(%arg0: i32) -> (i32, i32, i32) {
    %c0_i32 = arith.constant 0 : i32
    %c0_i32_0 = arith.constant 0 : i32
    %c0_i32_1 = arith.constant 0 : i32
    %c0_i32_2 = arith.constant 0 : i32
    return %c0_i32, %c0_i32_0, %c0_i32_1 : i32, i32, i32
  }
  func.func @transform_8(%arg0: i32) -> (i32, i32, i32, i32) {
    %c0_i32 = arith.constant 0 : i32
    %c0_i32_0 = arith.constant 0 : i32
    %c0_i32_1 = arith.constant 0 : i32
    %c0_i32_2 = arith.constant 0 : i32
    %c0_i32_3 = arith.constant 0 : i32
    return %c0_i32, %c0_i32_0, %c0_i32_1, %c0_i32_2 : i32, i32, i32, i32
  }
  func.func @transform_9(%arg0: i32) -> (i32, i32, i32) {
    %c0_i32 = arith.constant 0 : i32
    %c0_i32_0 = arith.constant 0 : i32
    %c0_i32_1 = arith.constant 0 : i32
    %c0_i32_2 = arith.constant 0 : i32
    return %c0_i32, %c0_i32_0, %c0_i32_1 : i32, i32, i32
  }
  func.func @transform_10(%arg0: i32) -> (i32, i32, i32) {
    %c0_i32 = arith.constant 0 : i32
    %c0_i32_0 = arith.constant 0 : i32
    %c0_i32_1 = arith.constant 0 : i32
    %c0_i32_2 = arith.constant 0 : i32
    return %c0_i32, %c0_i32_0, %c0_i32_1 : i32, i32, i32
  }
  func.func @transform_11(%arg0: i32) -> (i32, i32, i32) {
    %c0_i32 = arith.constant 0 : i32
    %c0_i32_0 = arith.constant 0 : i32
    %c0_i32_1 = arith.constant 0 : i32
    %c0_i32_2 = arith.constant 0 : i32
    return %c0_i32, %c0_i32_0, %c0_i32_1 : i32, i32, i32
  }
  func.func @transform_12(%arg0: i32) -> (i32, i32, i32) {
    %c0_i32 = arith.constant 0 : i32
    %c0_i32_0 = arith.constant 0 : i32
    %c0_i32_1 = arith.constant 0 : i32
    %c0_i32_2 = arith.constant 0 : i32
    return %c0_i32, %c0_i32_0, %c0_i32_1 : i32, i32, i32
  }
  func.func @transform_13(%arg0: i32) -> (i32, i32, i32) {
    %c0_i32 = arith.constant 0 : i32
    %c0_i32_0 = arith.constant 0 : i32
    %c0_i32_1 = arith.constant 0 : i32
    %c0_i32_2 = arith.constant 0 : i32
    return %c0_i32, %c0_i32_0, %c0_i32_1 : i32, i32, i32
  }
  func.func @transform_14(%arg0: i32) -> (i32, i32, i32) {
    %c0_i32 = arith.constant 0 : i32
    %c0_i32_0 = arith.constant 0 : i32
    %c0_i32_1 = arith.constant 0 : i32
    %c0_i32_2 = arith.constant 0 : i32
    return %c0_i32, %c0_i32_0, %c0_i32_1 : i32, i32, i32
  }
  func.func @transform_15(%arg0: i32) -> (i32, i32, i32) {
    %c0_i32 = arith.constant 0 : i32
    %c0_i32_0 = arith.constant 0 : i32
    %c0_i32_1 = arith.constant 0 : i32
    %c0_i32_2 = arith.constant 0 : i32
    return %c0_i32, %c0_i32_0, %c0_i32_1 : i32, i32, i32
  }
  func.func @transform_16(%arg0: i32) -> (i32, i32, i32) {
    %c0_i32 = arith.constant 0 : i32
    %c0_i32_0 = arith.constant 0 : i32
    %c0_i32_1 = arith.constant 0 : i32
    return %arg0, %c0_i32, %c0_i32_0 : i32, i32, i32
  }
}

</mosaic_0001>

<llo_original>
// kernel: tpu_custom_call.1
$region0: #{tpu_custom_call.1}
  #allocation0 [shape = 'u32[]', space=smem, size = 0x4, offset = 0x4, fixed_abs, tag = 'smem constant byte address 0x4 - core index']
  #allocation1 [shape = 'u32[144,128]{1,0:T(1,128)}', space=vmem, size = 0x12000, scoped, tag = 'internal scratch']
  %s0 = inlined_call_operand.vmem [shape: f32[2,64,12], index: 0, kind: input, shape index: {}]
  %s1 = inlined_call_operand.vmem [shape: f32[12,32], index: 1, kind: input, shape index: {}]
  %s2 = inlined_call_operand.vmem [shape: f32[1,32], index: 2, kind: input, shape index: {}]
  %s3 = inlined_call_operand.vmem [shape: f32[64,32], index: 3, kind: input, shape index: {}]
  %s4 = inlined_call_operand.vmem [shape: f32[2,1,32], index: 4, kind: input, shape index: {}]
  %s5 = inlined_call_operand.vmem [shape: f32[2,1,32], index: 5, kind: input, shape index: {}]
  %s6 = inlined_call_operand.vmem [shape: f32[2,32,96], index: 6, kind: input, shape index: {}]
  %s7 = inlined_call_operand.vmem [shape: f32[2,1,96], index: 7, kind: input, shape index: {}]
  %s8 = inlined_call_operand.vmem [shape: f32[2,2,16,32], index: 8, kind: input, shape index: {}]
  %s9 = inlined_call_operand.vmem [shape: f32[2,1,32], index: 9, kind: input, shape index: {}]
  %s10 = inlined_call_operand.vmem [shape: f32[2,1,32], index: 10, kind: input, shape index: {}]
  %s11 = inlined_call_operand.vmem [shape: f32[2,1,32], index: 11, kind: input, shape index: {}]
  %s12 = inlined_call_operand.vmem [shape: f32[2,32,64], index: 12, kind: input, shape index: {}]
  %s13 = inlined_call_operand.vmem [shape: f32[2,1,64], index: 13, kind: input, shape index: {}]
  %s14 = inlined_call_operand.vmem [shape: f32[2,64,32], index: 14, kind: input, shape index: {}]
  %s15 = inlined_call_operand.vmem [shape: f32[2,1,32], index: 15, kind: input, shape index: {}]
  %s16 = inlined_call_operand.vmem [shape: f32[2,64,32], index: 16, kind: output, shape index: {}]
  %s17 = sld [smem:[#allocation0]]
  $region97: #{tpu_custom_call.1} parent=0
    _
  %s19 = ssub.s32 1, %s17
  %s20 = scalar_select 0, %s19, %s17
  loop: start=0, step=1, limit=4
  $region2: #{tpu_custom_call.1} parent=0 // loop_pre_header
    _
  $region3: #{tpu_custom_call.1} parent=0 // loop_header
    %s22 = sphi 0, %s26
    %p23 = scmp.ge.s32.totalorder %s22, 4
    %s32 = sphi 0, %s34
    %s35 = sphi 0, %s32
    %s36 = sphi 0, %s35
    %s52 = sphi 0, %s36
    %s56 = sphi 0, %s56
    %s58 = sphi 0, %s56
    %s59 = sphi 0, %s58
    %s73 = sphi 0, %s59
    %s77 = sphi 0, %s77
    %s79 = sphi 0, %s77
    %s80 = sphi 0, %s79
    %s94 = sphi 0, %s80
    %s98 = sphi 0, %s98
    %s100 = sphi 0, %s98
    %s101 = sphi 0, %s100
    %s115 = sphi 0, %s101
    %s119 = sphi 0, %s119
    %s121 = sphi 0, %s119
    %s122 = sphi 0, %s121
    %s136 = sphi 0, %s122
    %s140 = sphi 0, %s140
    %s142 = sphi 0, %s140
    %s143 = sphi 0, %s142
    %s157 = sphi 0, %s143
    %s161 = sphi 0, %s161
    %s163 = sphi 0, %s161
    %s164 = sphi 0, %s163
    %s178 = sphi 0, %s164
    %s182 = sphi 0, %s182
    %s184 = sphi 0, %s182
    %s185 = sphi 0, %s184
    %s199 = sphi 0, %s185
    %s203 = sphi 0, %s203
    %s205 = sphi 0, %s203
    %s206 = sphi 0, %s205
    %s220 = sphi 0, %s206
    %s224 = sphi 0, %s224
    %s226 = sphi 0, %s224
    %s227 = sphi 0, %s226
    %s241 = sphi 0, %s227
    %s245 = sphi 0, %s245
    %s247 = sphi 0, %s245
    %s248 = sphi 0, %s247
    %s262 = sphi 0, %s248
    %s266 = sphi 0, %s266
    %s268 = sphi 0, %s266
    %s269 = sphi 0, %s268
    %s283 = sphi 0, %s269
    %s287 = sphi 0, %s287
    %s289 = sphi 0, %s287
    %s290 = sphi 0, %s289
    %s304 = sphi 0, %s290
    %s308 = sphi 0, %s308
    %s310 = sphi 0, %s308
    %s311 = sphi 0, %s310
    %s325 = sphi 0, %s311
    %s329 = sphi 0, %s329
    %s331 = sphi 0, %s329
    %s332 = sphi 0, %s331
    %s346 = sphi 0, %s332
    %s350 = sphi 0, %s350
    %s352 = sphi 0, %s350
    %s353 = sphi 0, %s352
    %s367 = sphi 0, %s353
    %s373 = sphi 0, %s375
    %s376 = sphi 0, %s373
    %s377 = sphi 0, %s376
    %s393 = sphi 0, %s377
  $region4: #{tpu_custom_call.1} parent=0 // loop_header_branch
    %25 = sbr.rel (%p23) target = $region8
  $region5: #{tpu_custom_call.1} parent=0 // loop_body
    %s27 = ssub.s32 %s22, 1
    %s28 = ssub.s32 %s22, 2
    %s29 = sadd.s32 %s22, 1
    %s30 = ssub.s32 %s22, %s29
    %p31 = scmp.eq.s32.totalorder %s30, 0
    %s33 = sadd.s32 %s32, 1
    %s34 = scalar_select %p31, %s32, %s33
    %p37 = pneg %p31
    %p38 = scmp.eq.s32.totalorder %s22, 1
    %p39 = por %p37, %p38
    %p40 = scmp.ne.s32.totalorder %s32, %s35
    %p41 = scmp.eq.s32.totalorder %s22, 0
    %p42 = por %p40, %p41
    %p43 = scmp.ne.s32.totalorder %s32, %s35
    %p44 = scmp.eq.s32.totalorder %s27, 1
    %p45 = por %p43, %p44
    %p46 = scmp.ne.s32.totalorder %s35, %s36
    %p47 = scmp.eq.s32.totalorder %s27, 0
    %p48 = por %p46, %p47
    %p49 = scmp.ne.s32.totalorder %s35, %s36
    %p50 = scmp.eq.s32.totalorder %s28, 1
    %p51 = por %p49, %p50
    %p53 = scmp.ne.s32.totalorder %s36, %s52
    %p54 = scmp.eq.s32.totalorder %s28, 0
    %p55 = por %p53, %p54
    %s57 = sadd.s32 %s56, 1
    %p60 = scmp.eq.s32.totalorder %s22, 1
    %p61 = scmp.ne.s32.totalorder %s56, %s58
    %p62 = scmp.eq.s32.totalorder %s22, 0
    %p63 = por %p61, %p62
    %p64 = scmp.ne.s32.totalorder %s56, %s58
    %p65 = scmp.eq.s32.totalorder %s27, 1
    %p66 = por %p64, %p65
    %p67 = scmp.ne.s32.totalorder %s58, %s59
    %p68 = scmp.eq.s32.totalorder %s27, 0
    %p69 = por %p67, %p68
    %p70 = scmp.ne.s32.totalorder %s58, %s59
    %p71 = scmp.eq.s32.totalorder %s28, 1
    %p72 = por %p70, %p71
    %p74 = scmp.ne.s32.totalorder %s59, %s73
    %p75 = scmp.eq.s32.totalorder %s28, 0
    %p76 = por %p74, %p75
    %s78 = sadd.s32 %s77, 1
    %p81 = scmp.eq.s32.totalorder %s22, 1
    %p82 = scmp.ne.s32.totalorder %s77, %s79
    %p83 = scmp.eq.s32.totalorder %s22, 0
    %p84 = por %p82, %p83
    %p85 = scmp.ne.s32.totalorder %s77, %s79
    %p86 = scmp.eq.s32.totalorder %s27, 1
    %p87 = por %p85, %p86
    %p88 = scmp.ne.s32.totalorder %s79, %s80
    %p89 = scmp.eq.s32.totalorder %s27, 0
    %p90 = por %p88, %p89
    %p91 = scmp.ne.s32.totalorder %s79, %s80
    %p92 = scmp.eq.s32.totalorder %s28, 1
    %p93 = por %p91, %p92
    %p95 = scmp.ne.s32.totalorder %s80, %s94
    %p96 = scmp.eq.s32.totalorder %s28, 0
    %p97 = por %p95, %p96
    %s99 = sadd.s32 %s98, 1
    %p102 = scmp.eq.s32.totalorder %s22, 1
    %p103 = scmp.ne.s32.totalorder %s98, %s100
    %p104 = scmp.eq.s32.totalorder %s22, 0
    %p105 = por %p103, %p104
    %p106 = scmp.ne.s32.totalorder %s98, %s100
    %p107 = scmp.eq.s32.totalorder %s27, 1
    %p108 = por %p106, %p107
    %p109 = scmp.ne.s32.totalorder %s100, %s101
    %p110 = scmp.eq.s32.totalorder %s27, 0
    %p111 = por %p109, %p110
    %p112 = scmp.ne.s32.totalorder %s100, %s101
    %p113 = scmp.eq.s32.totalorder %s28, 1
    %p114 = por %p112, %p113
    %p116 = scmp.ne.s32.totalorder %s101, %s115
    %p117 = scmp.eq.s32.totalorder %s28, 0
    %p118 = por %p116, %p117
    %s120 = sadd.s32 %s119, 1
    %p123 = scmp.eq.s32.totalorder %s22, 1
    %p124 = scmp.ne.s32.totalorder %s119, %s121
    %p125 = scmp.eq.s32.totalorder %s22, 0
    %p126 = por %p124, %p125
    %p127 = scmp.ne.s32.totalorder %s119, %s121
    %p128 = scmp.eq.s32.totalorder %s27, 1
    %p129 = por %p127, %p128
    %p130 = scmp.ne.s32.totalorder %s121, %s122
    %p131 = scmp.eq.s32.totalorder %s27, 0
    %p132 = por %p130, %p131
    %p133 = scmp.ne.s32.totalorder %s121, %s122
    %p134 = scmp.eq.s32.totalorder %s28, 1
    %p135 = por %p133, %p134
    %p137 = scmp.ne.s32.totalorder %s122, %s136
    %p138 = scmp.eq.s32.totalorder %s28, 0
    %p139 = por %p137, %p138
    %s141 = sadd.s32 %s140, 1
    %p144 = scmp.eq.s32.totalorder %s22, 1
    %p145 = scmp.ne.s32.totalorder %s140, %s142
    %p146 = scmp.eq.s32.totalorder %s22, 0
    %p147 = por %p145, %p146
    %p148 = scmp.ne.s32.totalorder %s140, %s142
    %p149 = scmp.eq.s32.totalorder %s27, 1
    %p150 = por %p148, %p149
    %p151 = scmp.ne.s32.totalorder %s142, %s143
    %p152 = scmp.eq.s32.totalorder %s27, 0
    %p153 = por %p151, %p152
    %p154 = scmp.ne.s32.totalorder %s142, %s143
    %p155 = scmp.eq.s32.totalorder %s28, 1
    %p156 = por %p154, %p155
    %p158 = scmp.ne.s32.totalorder %s143, %s157
    %p159 = scmp.eq.s32.totalorder %s28, 0
    %p160 = por %p158, %p159
    %s162 = sadd.s32 %s161, 1
    %p165 = scmp.eq.s32.totalorder %s22, 1
    %p166 = scmp.ne.s32.totalorder %s161, %s163
    %p167 = scmp.eq.s32.totalorder %s22, 0
    %p168 = por %p166, %p167
    %p169 = scmp.ne.s32.totalorder %s161, %s163
    %p170 = scmp.eq.s32.totalorder %s27, 1
    %p171 = por %p169, %p170
    %p172 = scmp.ne.s32.totalorder %s163, %s164
    %p173 = scmp.eq.s32.totalorder %s27, 0
    %p174 = por %p172, %p173
    %p175 = scmp.ne.s32.totalorder %s163, %s164
    %p176 = scmp.eq.s32.totalorder %s28, 1
    %p177 = por %p175, %p176
    %p179 = scmp.ne.s32.totalorder %s164, %s178
    %p180 = scmp.eq.s32.totalorder %s28, 0
    %p181 = por %p179, %p180
    %s183 = sadd.s32 %s182, 1
    %p186 = scmp.eq.s32.totalorder %s22, 1
    %p187 = scmp.ne.s32.totalorder %s182, %s184
    %p188 = scmp.eq.s32.totalorder %s22, 0
    %p189 = por %p187, %p188
    %p190 = scmp.ne.s32.totalorder %s182, %s184
    %p191 = scmp.eq.s32.totalorder %s27, 1
    %p192 = por %p190, %p191
    %p193 = scmp.ne.s32.totalorder %s184, %s185
    %p194 = scmp.eq.s32.totalorder %s27, 0
    %p195 = por %p193, %p194
    %p196 = scmp.ne.s32.totalorder %s184, %s185
    %p197 = scmp.eq.s32.totalorder %s28, 1
    %p198 = por %p196, %p197
    %p200 = scmp.ne.s32.totalorder %s185, %s199
    %p201 = scmp.eq.s32.totalorder %s28, 0
    %p202 = por %p200, %p201
    %s204 = sadd.s32 %s203, 1
    %p207 = scmp.eq.s32.totalorder %s22, 1
    %p208 = scmp.ne.s32.totalorder %s203, %s205
    %p209 = scmp.eq.s32.totalorder %s22, 0
    %p210 = por %p208, %p209
    %p211 = scmp.ne.s32.totalorder %s203, %s205
    %p212 = scmp.eq.s32.totalorder %s27, 1
    %p213 = por %p211, %p212
    %p214 = scmp.ne.s32.totalorder %s205, %s206
    %p215 = scmp.eq.s32.totalorder %s27, 0
    %p216 = por %p214, %p215
    %p217 = scmp.ne.s32.totalorder %s205, %s206
    %p218 = scmp.eq.s32.totalorder %s28, 1
    %p219 = por %p217, %p218
    %p221 = scmp.ne.s32.totalorder %s206, %s220
    %p222 = scmp.eq.s32.totalorder %s28, 0
    %p223 = por %p221, %p222
    %s225 = sadd.s32 %s224, 1
    %p228 = scmp.eq.s32.totalorder %s22, 1
    %p229 = scmp.ne.s32.totalorder %s224, %s226
    %p230 = scmp.eq.s32.totalorder %s22, 0
    %p231 = por %p229, %p230
    %p232 = scmp.ne.s32.totalorder %s224, %s226
    %p233 = scmp.eq.s32.totalorder %s27, 1
    %p234 = por %p232, %p233
    %p235 = scmp.ne.s32.totalorder %s226, %s227
    %p236 = scmp.eq.s32.totalorder %s27, 0
    %p237 = por %p235, %p236
    %p238 = scmp.ne.s32.totalorder %s226, %s227
    %p239 = scmp.eq.s32.totalorder %s28, 1
    %p240 = por %p238, %p239
    %p242 = scmp.ne.s32.totalorder %s227, %s241
    %p243 = scmp.eq.s32.totalorder %s28, 0
    %p244 = por %p242, %p243
    %s246 = sadd.s32 %s245, 1
    %p249 = scmp.eq.s32.totalorder %s22, 1
    %p250 = scmp.ne.s32.totalorder %s245, %s247
    %p251 = scmp.eq.s32.totalorder %s22, 0
    %p252 = por %p250, %p251
    %p253 = scmp.ne.s32.totalorder %s245, %s247
    %p254 = scmp.eq.s32.totalorder %s27, 1
    %p255 = por %p253, %p254
    %p256 = scmp.ne.s32.totalorder %s247, %s248
    %p257 = scmp.eq.s32.totalorder %s27, 0
    %p258 = por %p256, %p257
    %p259 = scmp.ne.s32.totalorder %s247, %s248
    %p260 = scmp.eq.s32.totalorder %s28, 1
    %p261 = por %p259, %p260
    %p263 = scmp.ne.s32.totalorder %s248, %s262
    %p264 = scmp.eq.s32.totalorder %s28, 0
    %p265 = por %p263, %p264
    %s267 = sadd.s32 %s266, 1
    %p270 = scmp.eq.s32.totalorder %s22, 1
    %p271 = scmp.ne.s32.totalorder %s266, %s268
    %p272 = scmp.eq.s32.totalorder %s22, 0
    %p273 = por %p271, %p272
    %p274 = scmp.ne.s32.totalorder %s266, %s268
    %p275 = scmp.eq.s32.totalorder %s27, 1
    %p276 = por %p274, %p275
    %p277 = scmp.ne.s32.totalorder %s268, %s269
    %p278 = scmp.eq.s32.totalorder %s27, 0
    %p279 = por %p277, %p278
    %p280 = scmp.ne.s32.totalorder %s268, %s269
    %p281 = scmp.eq.s32.totalorder %s28, 1
    %p282 = por %p280, %p281
    %p284 = scmp.ne.s32.totalorder %s269, %s283
    %p285 = scmp.eq.s32.totalorder %s28, 0
    %p286 = por %p284, %p285
    %s288 = sadd.s32 %s287, 1
    %p291 = scmp.eq.s32.totalorder %s22, 1
    %p292 = scmp.ne.s32.totalorder %s287, %s289
    %p293 = scmp.eq.s32.totalorder %s22, 0
    %p294 = por %p292, %p293
    %p295 = scmp.ne.s32.totalorder %s287, %s289
    %p296 = scmp.eq.s32.totalorder %s27, 1
    %p297 = por %p295, %p296
    %p298 = scmp.ne.s32.totalorder %s289, %s290
    %p299 = scmp.eq.s32.totalorder %s27, 0
    %p300 = por %p298, %p299
    %p301 = scmp.ne.s32.totalorder %s289, %s290
    %p302 = scmp.eq.s32.totalorder %s28, 1
    %p303 = por %p301, %p302
    %p305 = scmp.ne.s32.totalorder %s290, %s304
    %p306 = scmp.eq.s32.totalorder %s28, 0
    %p307 = por %p305, %p306
    %s309 = sadd.s32 %s308, 1
    %p312 = scmp.eq.s32.totalorder %s22, 1
    %p313 = scmp.ne.s32.totalorder %s308, %s310
    %p314 = scmp.eq.s32.totalorder %s22, 0
    %p315 = por %p313, %p314
    %p316 = scmp.ne.s32.totalorder %s308, %s310
    %p317 = scmp.eq.s32.totalorder %s27, 1
    %p318 = por %p316, %p317
    %p319 = scmp.ne.s32.totalorder %s310, %s311
    %p320 = scmp.eq.s32.totalorder %s27, 0
    %p321 = por %p319, %p320
    %p322 = scmp.ne.s32.totalorder %s310, %s311
    %p323 = scmp.eq.s32.totalorder %s28, 1
    %p324 = por %p322, %p323
    %p326 = scmp.ne.s32.totalorder %s311, %s325
    %p327 = scmp.eq.s32.totalorder %s28, 0
    %p328 = por %p326, %p327
    %s330 = sadd.s32 %s329, 1
    %p333 = scmp.eq.s32.totalorder %s22, 1
    %p334 = scmp.ne.s32.totalorder %s329, %s331
    %p335 = scmp.eq.s32.totalorder %s22, 0
    %p336 = por %p334, %p335
    %p337 = scmp.ne.s32.totalorder %s329, %s331
    %p338 = scmp.eq.s32.totalorder %s27, 1
    %p339 = por %p337, %p338
    %p340 = scmp.ne.s32.totalorder %s331, %s332
    %p341 = scmp.eq.s32.totalorder %s27, 0
    %p342 = por %p340, %p341
    %p343 = scmp.ne.s32.totalorder %s331, %s332
    %p344 = scmp.eq.s32.totalorder %s28, 1
    %p345 = por %p343, %p344
    %p347 = scmp.ne.s32.totalorder %s332, %s346
    %p348 = scmp.eq.s32.totalorder %s28, 0
    %p349 = por %p347, %p348
    %s351 = sadd.s32 %s350, 1
    %p354 = scmp.eq.s32.totalorder %s22, 1
    %p355 = scmp.ne.s32.totalorder %s350, %s352
    %p356 = scmp.eq.s32.totalorder %s22, 0
    %p357 = por %p355, %p356
    %p358 = scmp.ne.s32.totalorder %s350, %s352
    %p359 = scmp.eq.s32.totalorder %s27, 1
    %p360 = por %p358, %p359
    %p361 = scmp.ne.s32.totalorder %s352, %s353
    %p362 = scmp.eq.s32.totalorder %s27, 0
    %p363 = por %p361, %p362
    %p364 = scmp.ne.s32.totalorder %s352, %s353
    %p365 = scmp.eq.s32.totalorder %s28, 1
    %p366 = por %p364, %p365
    %p368 = scmp.ne.s32.totalorder %s353, %s367
    %p369 = scmp.eq.s32.totalorder %s28, 0
    %p370 = por %p368, %p369
    %s371 = ssub.s32 %s22, %s29
    %p372 = scmp.eq.s32.totalorder %s371, 0
    %s374 = sadd.s32 %s373, 1
    %s375 = scalar_select %p372, %s373, %s374
    %p378 = pneg %p372
    %p379 = scmp.eq.s32.totalorder %s22, 1
    %p380 = por %p378, %p379
    %p381 = scmp.ne.s32.totalorder %s373, %s376
    %p382 = scmp.eq.s32.totalorder %s22, 0
    %p383 = por %p381, %p382
    %p384 = scmp.ne.s32.totalorder %s373, %s376
    %p385 = scmp.eq.s32.totalorder %s27, 1
    %p386 = por %p384, %p385
    %p387 = scmp.ne.s32.totalorder %s376, %s377
    %p388 = scmp.eq.s32.totalorder %s27, 0
    %p389 = por %p387, %p388
    %p390 = scmp.ne.s32.totalorder %s376, %s377
    %p391 = scmp.eq.s32.totalorder %s28, 1
    %p392 = por %p390, %p391
    %p394 = scmp.ne.s32.totalorder %s377, %s393
    %p395 = scmp.eq.s32.totalorder %s28, 0
    %p396 = por %p394, %p395
    %p397 = scmp.le.s32.totalorder 1, %s22
    %p398 = scmp.lt.s32.totalorder %s22, 3
    %p399 = pnand %p397, %p398
    %p400 = pneg %p399
    // Predicated region
    $region9: #{tpu_custom_call.1} parent=5 // pred_check
      _
    $region10: #{tpu_custom_call.1} parent=5 // pred_check_branch
      %402 = sbr.rel (%p399) target = $region12
    $region11: #{tpu_custom_call.1} parent=5 // pred_region
      %s403 = ssub.s32 %s22, 1
      // Predicated region
      $region13: #{tpu_custom_call.1} parent=11 // pred_check
        %p404 = pneg %p69
      $region14: #{tpu_custom_call.1} parent=11 // pred_check_branch
        %406 = sbr.rel (%p404) target = $region16
      $region15: #{tpu_custom_call.1} parent=11 // pred_region
        _
      $region16: #{tpu_custom_call.1} parent=11 // pred_fallthru
        _
      // Predicated region
      $region17: #{tpu_custom_call.1} parent=11 // pred_check
        %p407 = pneg %p90
      $region18: #{tpu_custom_call.1} parent=11 // pred_check_branch
        %409 = sbr.rel (%p407) target = $region20
      $region19: #{tpu_custom_call.1} parent=11 // pred_region
        _
      $region20: #{tpu_custom_call.1} parent=11 // pred_fallthru
        _
      // Predicated region
      $region21: #{tpu_custom_call.1} parent=11 // pred_check
        %p410 = pneg %p111
      $region22: #{tpu_custom_call.1} parent=11 // pred_check_branch
        %412 = sbr.rel (%p410) target = $region24
      $region23: #{tpu_custom_call.1} parent=11 // pred_region
        _
      $region24: #{tpu_custom_call.1} parent=11 // pred_fallthru
        _
      // Predicated region
      $region25: #{tpu_custom_call.1} parent=11 // pred_check
        %p413 = pneg %p132
      $region26: #{tpu_custom_call.1} parent=11 // pred_check_branch
        %415 = sbr.rel (%p413) target = $region28
      $region27: #{tpu_custom_call.1} parent=11 // pred_region
        _
      $region28: #{tpu_custom_call.1} parent=11 // pred_fallthru
        _
      // Predicated region
      $region29: #{tpu_custom_call.1} parent=11 // pred_check
        %p416 = pneg %p153
      $region30: #{tpu_custom_call.1} parent=11 // pred_check_branch
        %418 = sbr.rel (%p416) target = $region32
      $region31: #{tpu_custom_call.1} parent=11 // pred_region
        _
      $region32: #{tpu_custom_call.1} parent=11 // pred_fallthru
        _
      // Predicated region
      $region33: #{tpu_custom_call.1} parent=11 // pred_check
        %p419 = pneg %p174
      $region34: #{tpu_custom_call.1} parent=11 // pred_check_branch
        %421 = sbr.rel (%p419) target = $region36
      $region35: #{tpu_custom_call.1} parent=11 // pred_region
        _
      $region36: #{tpu_custom_call.1} parent=11 // pred_fallthru
        _
      // Predicated region
      $region37: #{tpu_custom_call.1} parent=11 // pred_check
        %p422 = pneg %p195
      $region38: #{tpu_custom_call.1} parent=11 // pred_check_branch
        %424 = sbr.rel (%p422) target = $region40
      $region39: #{tpu_custom_call.1} parent=11 // pred_region
        _
      $region40: #{tpu_custom_call.1} parent=11 // pred_fallthru
        _
      // Predicated region
      $region41: #{tpu_custom_call.1} parent=11 // pred_check
        %p425 = pneg %p216
      $region42: #{tpu_custom_call.1} parent=11 // pred_check_branch
        %427 = sbr.rel (%p425) target = $region44
      $region43: #{tpu_custom_call.1} parent=11 // pred_region
        _
      $region44: #{tpu_custom_call.1} parent=11 // pred_fallthru
        _
      // Predicated region
      $region45: #{tpu_custom_call.1} parent=11 // pred_check
        %p428 = pneg %p237
      $region46: #{tpu_custom_call.1} parent=11 // pred_check_branch
        %430 = sbr.rel (%p428) target = $region48
      $region47: #{tpu_custom_call.1} parent=11 // pred_region
        _
      $region48: #{tpu_custom_call.1} parent=11 // pred_fallthru
        _
      // Predicated region
      $region49: #{tpu_custom_call.1} parent=11 // pred_check
        %p431 = pneg %p258
      $region50: #{tpu_custom_call.1} parent=11 // pred_check_branch
        %433 = sbr.rel (%p431) target = $region52
      $region51: #{tpu_custom_call.1} parent=11 // pred_region
        _
      $region52: #{tpu_custom_call.1} parent=11 // pred_fallthru
        _
      // Predicated region
      $region53: #{tpu_custom_call.1} parent=11 // pred_check
        %p434 = pneg %p279
      $region54: #{tpu_custom_call.1} parent=11 // pred_check_branch
        %436 = sbr.rel (%p434) target = $region56
      $region55: #{tpu_custom_call.1} parent=11 // pred_region
        _
      $region56: #{tpu_custom_call.1} parent=11 // pred_fallthru
        _
      // Predicated region
      $region57: #{tpu_custom_call.1} parent=11 // pred_check
        %p437 = pneg %p300
      $region58: #{tpu_custom_call.1} parent=11 // pred_check_branch
        %439 = sbr.rel (%p437) target = $region60
      $region59: #{tpu_custom_call.1} parent=11 // pred_region
        _
      $region60: #{tpu_custom_call.1} parent=11 // pred_fallthru
        _
      // Predicated region
      $region61: #{tpu_custom_call.1} parent=11 // pred_check
        %p440 = pneg %p321
      $region62: #{tpu_custom_call.1} parent=11 // pred_check_branch
        %442 = sbr.rel (%p440) target = $region64
      $region63: #{tpu_custom_call.1} parent=11 // pred_region
        _
      $region64: #{tpu_custom_call.1} parent=11 // pred_fallthru
        _
      // Predicated region
      $region65: #{tpu_custom_call.1} parent=11 // pred_check
        %p443 = pneg %p342
      $region66: #{tpu_custom_call.1} parent=11 // pred_check_branch
        %445 = sbr.rel (%p443) target = $region68
      $region67: #{tpu_custom_call.1} parent=11 // pred_region
        _
      $region68: #{tpu_custom_call.1} parent=11 // pred_fallthru
        _
      // Predicated region
      $region69: #{tpu_custom_call.1} parent=11 // pred_check
        %p446 = pneg %p363
      $region70: #{tpu_custom_call.1} parent=11 // pred_check_branch
        %448 = sbr.rel (%p446) target = $region72
      $region71: #{tpu_custom_call.1} parent=11 // pred_region
        _
      $region72: #{tpu_custom_call.1} parent=11 // pred_fallthru
        _
    $region12: #{tpu_custom_call.1} parent=5 // pred_fallthru
      _
    %p449 = scmp.lt.s32.totalorder %s22, 2
    // Predicated region
    $region73: #{tpu_custom_call.1} parent=5 // pred_check
      %p450 = pneg %p449
    $region74: #{tpu_custom_call.1} parent=5 // pred_check_branch
      %452 = sbr.rel (%p450) target = $region76
    $region75: #{tpu_custom_call.1} parent=5 // pred_region
      // Predicated region
      $region77: #{tpu_custom_call.1} parent=75 // pred_check
        %p453 = pneg %p42
      $region78: #{tpu_custom_call.1} parent=75 // pred_check_branch
        %455 = sbr.rel (%p453) target = $region80
      $region79: #{tpu_custom_call.1} parent=75 // pred_region
        %p456 = scmp.lt.s32.totalorder %s22, 1
        %s457 = scalar_select %p456, %s22, 1
        %s458 = smul.addr %s457, 8
        %s459 = smul.addr %s458, 8
        %s460 = scalar_lea.vmem %s0, %s459
      $region80: #{tpu_custom_call.1} parent=75 // pred_fallthru
        _
    $region76: #{tpu_custom_call.1} parent=5 // pred_fallthru
      _
    %p461 = scmp.le.s32.totalorder 1, %s22
    %p462 = scmp.lt.s32.totalorder %s22, 3
    %p463 = pnand %p461, %p462
    %p464 = pneg %p463
    // Predicated region
    $region81: #{tpu_custom_call.1} parent=5 // pred_check
      _
    $region82: #{tpu_custom_call.1} parent=5 // pred_check_branch
      %466 = sbr.rel (%p463) target = $region84
    $region83: #{tpu_custom_call.1} parent=5 // pred_region
      %s467 = ssub.s32 %s22, 1
      %p468 = scmp.lt.s32.totalorder %s27, 1
      %s469 = scalar_select %p468, %s27, 1
      %s470 = smul.addr %s469, 8
      %s471 = smul.addr %s470, 8
      %s472 = scalar_lea.vmem %s0, %s471
      %p473 = pneg %p48
      %p474 = pneg %p45
      %p475 = pneg %p69
      %p476 = pneg %p66
      %p477 = pneg %p90
      %p478 = pneg %p87
      %p479 = pneg %p111
      %p480 = pneg %p108
      %p481 = pneg %p132
      %p482 = pneg %p129
      %p483 = pneg %p153
      %p484 = pneg %p150
      %p485 = pneg %p174
      %p486 = pneg %p171
      %p487 = pneg %p195
      %p488 = pneg %p192
      %p489 = pneg %p216
      %p490 = pneg %p213
      %p491 = pneg %p237
      %p492 = pneg %p234
      %p493 = pneg %p258
      %p494 = pneg %p255
      %p495 = pneg %p279
      %p496 = pneg %p276
      %p497 = pneg %p300
      %p498 = pneg %p297
      %p499 = pneg %p321
      %p500 = pneg %p318
      %p501 = pneg %p342
      %p502 = pneg %p339
      %p503 = pneg %p363
      %p504 = pneg %p360
      %p505 = pneg %p389
      %p506 = pneg %p386
      %p507 = scmp.lt.s32.totalorder %s27, 1
      %s508 = scalar_select %p507, %s27, 1
      %s509 = smul.addr %s508, 8
      %s510 = smul.addr %s509, 8
      %s511 = scalar_lea.vmem %s16, %s510
      %p512 = scmp.lt.s32.totalorder %s27, 1
      %s513 = scalar_select %p512, %s27, 1
      %s514 = smul.addr %s513, 8
      %s515 = smul.addr %s514, 8
      %s516 = scalar_lea.vmem %s0, %s515
      %p517 = scmp.lt.s32.totalorder %s27, 1
      %s518 = scalar_select %p517, %s27, 1
      %s519 = smul.addr %s518, 8
      %s520 = smul.addr %s519, 8
      %s521 = scalar_lea.vmem %s16, %s520
      %v522 = vld [vmem:[%s516] sm:$0xff]
      %v523 = vld [vmem:[%s516 + $0x8] sm:$0xff]
      %v524 = vld [vmem:[%s516 + $0x10] sm:$0xff]
      %v525 = vld [vmem:[%s516 + $0x18] sm:$0xff]
      %v526 = vld [vmem:[%s516 + $0x20] sm:$0xff]
      %v527 = vld [vmem:[%s516 + $0x28] sm:$0xff]
      %v528 = vld [vmem:[%s516 + $0x30] sm:$0xff]
      %v529 = vld [vmem:[%s516 + $0x38] sm:$0xff]
      %v530 = vld [vmem:[%s1] sm:$0xff]
      %v531 = vld [vmem:[%s1 + $0x8] sm:$0xf]
      %v532 = vld [vmem:[%s2] sm:$0x1]
      %v534 = vlaneseq
      %v535 = vshrl.u32 %v534, 7
      %v536 = vsub.s32 0, %v535
      %v537 = vrot.slane %v532, %v536
      %vm539 = vcmask 97280
      %v541 = vsel %vm539, %v522, 0
      %v544 = vsel %vm539, %v523, 0
      %v547 = vsel %vm539, %v524, 0
      %v550 = vsel %vm539, %v525, 0
      %v553 = vsel %vm539, %v526, 0
      %v556 = vsel %vm539, %v527, 0
      %v559 = vsel %vm539, %v528, 0
      %v562 = vsel %vm539, %v529, 0
      %vm564 = vcmask 1043456
      %v566 = vsel %vm564, %v531, 0
      %568 = vmatprep.subr.mxu0 0.0
      %569 = vmatpush1.msra.mxu0 %v530
      %570 = vmatprep.subr.mxu0 0.0
      %571 = vmatpush1.msra.mxu0 %v566
      %572 = vmatprep.subr.mxu0 0.0
      %573 = vmatpush1.msra.mxu0 0.0
      %574 = vmatprep.subr.mxu0 0.0
      %575 = vmatpush1.msra.mxu0 0.0
      %576 = vmatprep.subr.mxu0 0.0
      %577 = vmatpush1.msra.mxu0 0.0
      %578 = vmatprep.subr.mxu0 0.0
      %579 = vmatpush1.msra.mxu0 0.0
      %580 = vmatprep.subr.mxu0 0.0
      %581 = vmatpush1.msra.mxu0 0.0
      %582 = vmatprep.subr.mxu0 0.0
      %583 = vmatpush1.msra.mxu0 0.0
      %584 = vmatprep.subr.mxu0 0.0
      %585 = vmatpush1.msra.mxu0 0.0
      %586 = vmatprep.subr.mxu0 0.0
      %587 = vmatpush1.msra.mxu0 0.0
      %588 = vmatprep.subr.mxu0 0.0
      %589 = vmatpush1.msra.mxu0 0.0
      %590 = vmatprep.subr.mxu0 0.0
      %591 = vmatpush1.msra.mxu0 0.0
      %592 = vmatprep.subr.mxu0 0.0
      %593 = vmatpush1.msra.mxu0 0.0
      %594 = vmatprep.subr.mxu0 0.0
      %595 = vmatpush1.msra.mxu0 0.0
      %596 = vmatprep.subr.mxu0 0.0
      %597 = vmatpush1.msra.mxu0 0.0
      %598 = vmatprep.subr.mxu0 0.0
      %599 = vmatpush1.msra.mxu0 0.0
      %600 = vmatprep.subr.mxu0 0.0
      %601 = vmatpush1.msra.mxu0 0.0
      %602 = vmatprep.subr.mxu0 0.0
      %603 = vmatpush1.msra.mxu0 0.0
      %604 = vmatprep.subr.mxu0 0.0
      %605 = vmatpush1.msra.mxu0 0.0
      %606 = vmatprep.subr.mxu0 0.0
      %607 = vmatpush1.msra.mxu0 0.0
      %608 = vmatprep.subr.mxu0 0.0
      %609 = vmatpush1.msra.mxu0 0.0
      %610 = vmatprep.subr.mxu0 0.0
      %611 = vmatpush1.msra.mxu0 0.0
      %612 = vmatprep.subr.mxu0 0.0
      %613 = vmatpush1.msra.mxu0 0.0
      %614 = vmatprep.subr.mxu0 0.0
      %615 = vmatpush1.msra.mxu0 0.0
      %616 = vmatprep.subr.mxu0 0.0
      %617 = vmatpush1.msra.mxu0 0.0
      %618 = vmatprep.subr.mxu0 0.0
      %619 = vmatpush1.msra.mxu0 0.0
      %620 = vmatprep.subr.mxu0 0.0
      %621 = vmatpush1.msra.mxu0 0.0
      %622 = vmatprep.subr.mxu0 0.0
      %623 = vmatpush1.msra.mxu0 0.0
      %624 = vmatprep.subr.mxu0 0.0
      %625 = vmatpush1.msra.mxu0 0.0
      %626 = vmatprep.subr.mxu0 0.0
      %627 = vmatpush1.msra.mxu0 0.0
      %628 = vmatprep.subr.mxu0 0.0
      %629 = vmatpush1.msra.mxu0 0.0
      %630 = vmatprep.subr.mxu0 0.0
      %631 = vmatpush1.msra.mxu0 0.0
      %632 = vmatprep.mubr.f32.mxu0 0.0
      %633 = vmatmul.mubr.f32.gmra.mrb[0].mxu0 %v541
      %v634 = vpop.f32.mrb[0].mxu0
      %v635 = vadd.f32 %v537, %v634
      %v636 = vpop.f32.mrb[0].mxu0
      %637 = vmatprep.mubr.f32.mxu0 0.0
      %638 = vmatmul.mubr.f32.gmra.mrb[0].mxu0 %v544
      %v639 = vpop.f32.mrb[0].mxu0
      %v640 = vadd.f32 %v537, %v639
      %v641 = vpop.f32.mrb[0].mxu0
      %642 = vmatprep.mubr.f32.mxu0 0.0
      %643 = vmatmul.mubr.f32.gmra.mrb[0].mxu0 %v547
      %v644 = vpop.f32.mrb[0].mxu0
      %v645 = vadd.f32 %v537, %v644
      %v646 = vpop.f32.mrb[0].mxu0
      %647 = vmatprep.mubr.f32.mxu0 0.0
      %648 = vmatmul.mubr.f32.gmra.mrb[0].mxu0 %v550
      %v649 = vpop.f32.mrb[0].mxu0
      %v650 = vadd.f32 %v537, %v649
      %v651 = vpop.f32.mrb[0].mxu0
      %652 = vmatprep.mubr.f32.mxu0 0.0
      %653 = vmatmul.mubr.f32.gmra.mrb[0].mxu0 %v553
      %v654 = vpop.f32.mrb[0].mxu0
      %v655 = vadd.f32 %v537, %v654
      %v656 = vpop.f32.mrb[0].mxu0
      %657 = vmatprep.mubr.f32.mxu0 0.0
      %658 = vmatmul.mubr.f32.gmra.mrb[0].mxu0 %v556
      %v659 = vpop.f32.mrb[0].mxu0
      %v660 = vadd.f32 %v537, %v659
      %v661 = vpop.f32.mrb[0].mxu0
      %662 = vmatprep.mubr.f32.mxu0 0.0
      %663 = vmatmul.mubr.f32.gmra.mrb[0].mxu0 %v559
      %v664 = vpop.f32.mrb[0].mxu0
      %v665 = vadd.f32 %v537, %v664
      %v666 = vpop.f32.mrb[0].mxu0
      %667 = vmatprep.mubr.f32.mxu0 0.0
      %668 = vmatmul.mubr.f32.gmra.mrb[0].mxu0 %v562
      %v669 = vpop.f32.mrb[0].mxu0
      %v670 = vadd.f32 %v537, %v669
      %v671 = vpop.f32.mrb[0].mxu0
      %672 = vdwg.mxu0
      %v673 = vld [vmem:[%s3] sm:$0xff]
      %v674 = vld [vmem:[%s3 + $0x8] sm:$0xff]
      %v675 = vld [vmem:[%s3 + $0x10] sm:$0xff]
      %v676 = vld [vmem:[%s3 + $0x18] sm:$0xff]
      %v677 = vld [vmem:[%s3 + $0x20] sm:$0xff]
      %v678 = vld [vmem:[%s3 + $0x28] sm:$0xff]
      %v679 = vld [vmem:[%s3 + $0x30] sm:$0xff]
      %v680 = vld [vmem:[%s3 + $0x38] sm:$0xff]
      %v681 = vadd.f32 %v635, %v673
      %v682 = vadd.f32 %v640, %v674
      %v683 = vadd.f32 %v645, %v675
      %v684 = vadd.f32 %v650, %v676
      %v685 = vadd.f32 %v655, %v677
      %v686 = vadd.f32 %v660, %v678
      %v687 = vadd.f32 %v665, %v679
      %v688 = vadd.f32 %v670, %v680
      %v689 = vld [vmem:[%s4] sm:$0x1]
      %v690 = vld [vmem:[%s5] sm:$0x1]
      %vm691 = vcmask 261120
      %v692 = vsel %vm691, %v681, 0.0
      %693 = vadd.xlane.f32.xlu0 %v692
      %v694 = vpop.xlane.xlu0 %693
      %v695 = vsel %vm691, %v682, 0.0
      %696 = vadd.xlane.f32.xlu0 %v695
      %v697 = vpop.xlane.xlu0 %696
      %v698 = vsel %vm691, %v683, 0.0
      %699 = vadd.xlane.f32.xlu0 %v698
      %v700 = vpop.xlane.xlu0 %699
      %v701 = vsel %vm691, %v684, 0.0
      %702 = vadd.xlane.f32.xlu0 %v701
      %v703 = vpop.xlane.xlu0 %702
      %v704 = vsel %vm691, %v685, 0.0
      %705 = vadd.xlane.f32.xlu0 %v704
      %v706 = vpop.xlane.xlu0 %705
      %v707 = vsel %vm691, %v686, 0.0
      %708 = vadd.xlane.f32.xlu0 %v707
      %v709 = vpop.xlane.xlu0 %708
      %v710 = vsel %vm691, %v687, 0.0
      %711 = vadd.xlane.f32.xlu0 %v710
      %v712 = vpop.xlane.xlu0 %711
      %v713 = vsel %vm691, %v688, 0.0
      %714 = vadd.xlane.f32.xlu0 %v713
      %v715 = vpop.xlane.xlu0 %714
      %v716 = vrcp.pop 32.0
      %v717 = vmul.f32 %v694, %v716
      %v718 = vmul.f32 %v697, %v716
      %v719 = vmul.f32 %v700, %v716
      %v720 = vmul.f32 %v703, %v716
      %v721 = vmul.f32 %v706, %v716
      %v722 = vmul.f32 %v709, %v716
      %v723 = vmul.f32 %v712, %v716
      %v724 = vmul.f32 %v715, %v716
      %v725 = vsub.f32 %v681, %v717
      %v726 = vsub.f32 %v682, %v718
      %v727 = vsub.f32 %v683, %v719
      %v728 = vsub.f32 %v684, %v720
      %v729 = vsub.f32 %v685, %v721
      %v730 = vsub.f32 %v686, %v722
      %v731 = vsub.f32 %v687, %v723
      %v732 = vsub.f32 %v688, %v724
      %v733 = vmul.f32 %v725, %v725
      %v734 = vmul.f32 %v726, %v726
      %v735 = vmul.f32 %v727, %v727
      %v736 = vmul.f32 %v728, %v728
      %v737 = vmul.f32 %v729, %v729
      %v738 = vmul.f32 %v730, %v730
      %v739 = vmul.f32 %v731, %v731
      %v740 = vmul.f32 %v732, %v732
      %v741 = vsel %vm691, %v733, 0.0
      %742 = vadd.xlane.f32.xlu0 %v741
      %v743 = vpop.xlane.xlu0 %742
      %v744 = vsel %vm691, %v734, 0.0
      %745 = vadd.xlane.f32.xlu0 %v744
      %v746 = vpop.xlane.xlu0 %745
      %v747 = vsel %vm691, %v735, 0.0
      %748 = vadd.xlane.f32.xlu0 %v747
      %v749 = vpop.xlane.xlu0 %748
      %v750 = vsel %vm691, %v736, 0.0
      %751 = vadd.xlane.f32.xlu0 %v750
      %v752 = vpop.xlane.xlu0 %751
      %v753 = vsel %vm691, %v737, 0.0
      %754 = vadd.xlane.f32.xlu0 %v753
      %v755 = vpop.xlane.xlu0 %754
      %v756 = vsel %vm691, %v738, 0.0
      %757 = vadd.xlane.f32.xlu0 %v756
      %v758 = vpop.xlane.xlu0 %757
      %v759 = vsel %vm691, %v739, 0.0
      %760 = vadd.xlane.f32.xlu0 %v759
      %v761 = vpop.xlane.xlu0 %760
      %v762 = vsel %vm691, %v740, 0.0
      %763 = vadd.xlane.f32.xlu0 %v762
      %v764 = vpop.xlane.xlu0 %763
      %v765 = vmul.f32 %v743, %v716
      %v766 = vmul.f32 %v746, %v716
      %v767 = vmul.f32 %v749, %v716
      %v768 = vmul.f32 %v752, %v716
      %v769 = vmul.f32 %v755, %v716
      %v770 = vmul.f32 %v758, %v716
      %v771 = vmul.f32 %v761, %v716
      %v772 = vmul.f32 %v764, %v716
      %v773 = vadd.f32 %v765, 1e-06
      %v774 = vadd.f32 %v766, 1e-06
      %v775 = vadd.f32 %v767, 1e-06
      %v776 = vadd.f32 %v768, 1e-06
      %v777 = vadd.f32 %v769, 1e-06
      %v778 = vadd.f32 %v770, 1e-06
      %v779 = vadd.f32 %v771, 1e-06
      %v780 = vadd.f32 %v772, 1e-06
      %v781 = vrsqrt.pop %v773
      %v782 = vrsqrt.pop %v774
      %v783 = vrsqrt.pop %v775
      %v784 = vrsqrt.pop %v776
      %v785 = vrsqrt.pop %v777
      %v786 = vrsqrt.pop %v778
      %v787 = vrsqrt.pop %v779
      %v788 = vrsqrt.pop %v780
      %v789 = vmul.f32 %v725, %v781
      %v790 = vmul.f32 %v726, %v782
      %v791 = vmul.f32 %v727, %v783
      %v792 = vmul.f32 %v728, %v784
      %v793 = vmul.f32 %v729, %v785
      %v794 = vmul.f32 %v730, %v786
      %v795 = vmul.f32 %v731, %v787
      %v796 = vmul.f32 %v732, %v788
      %v798 = vlaneseq
      %v799 = vshrl.u32 %v798, 7
      %v800 = vsub.s32 0, %v799
      %v801 = vrot.slane %v689, %v800
      %v803 = vmul.f32 %v789, %v801
      %v804 = vmul.f32 %v790, %v801
      %v805 = vmul.f32 %v791, %v801
      %v806 = vmul.f32 %v792, %v801
      %v807 = vmul.f32 %v793, %v801
      %v808 = vmul.f32 %v794, %v801
      %v809 = vmul.f32 %v795, %v801
      %v810 = vmul.f32 %v796, %v801
      %v812 = vlaneseq
      %v813 = vshrl.u32 %v812, 7
      %v814 = vsub.s32 0, %v813
      %v815 = vrot.slane %v690, %v814
      %v817 = vadd.f32 %v803, %v815
      %v818 = vadd.f32 %v804, %v815
      %v819 = vadd.f32 %v805, %v815
      %v820 = vadd.f32 %v806, %v815
      %v821 = vadd.f32 %v807, %v815
      %v822 = vadd.f32 %v808, %v815
      %v823 = vadd.f32 %v809, %v815
      %v824 = vadd.f32 %v810, %v815
      %v825 = vld [vmem:[%s6] sm:$0xff]
      %v826 = vld [vmem:[%s6 + $0x8] sm:$0xff]
      %v827 = vld [vmem:[%s6 + $0x10] sm:$0xff]
      %v828 = vld [vmem:[%s6 + $0x18] sm:$0xff]
      %v829 = vld [vmem:[%s7] sm:$0x1]
      %v831 = vlaneseq
      %v832 = vshrl.u32 %v831, 7
      %v833 = vsub.s32 0, %v832
      %v834 = vrot.slane %v829, %v833
      %v837 = vsel %vm691, %v817, 0
      %v840 = vsel %vm691, %v818, 0
      %v843 = vsel %vm691, %v819, 0
      %v846 = vsel %vm691, %v820, 0
      %v849 = vsel %vm691, %v821, 0
      %v852 = vsel %vm691, %v822, 0
      %v855 = vsel %vm691, %v823, 0
      %v858 = vsel %vm691, %v824, 0
      %860 = vmatprep.subr.mxu0 0.0
      %861 = vmatpush1.msra.mxu0 %v825
      %862 = vmatprep.subr.mxu0 0.0
      %863 = vmatpush1.msra.mxu0 %v826
      %864 = vmatprep.subr.mxu0 0.0
      %865 = vmatpush1.msra.mxu0 %v827
      %866 = vmatprep.subr.mxu0 0.0
      %867 = vmatpush1.msra.mxu0 %v828
      %868 = vmatprep.subr.mxu0 0.0
      %869 = vmatpush1.msra.mxu0 0.0
      %870 = vmatprep.subr.mxu0 0.0
      %871 = vmatpush1.msra.mxu0 0.0
      %872 = vmatprep.subr.mxu0 0.0
      %873 = vmatpush1.msra.mxu0 0.0
      %874 = vmatprep.subr.mxu0 0.0
      %875 = vmatpush1.msra.mxu0 0.0
      %876 = vmatprep.subr.mxu0 0.0
      %877 = vmatpush1.msra.mxu0 0.0
      %878 = vmatprep.subr.mxu0 0.0
      %879 = vmatpush1.msra.mxu0 0.0
      %880 = vmatprep.subr.mxu0 0.0
      %881 = vmatpush1.msra.mxu0 0.0
      %882 = vmatprep.subr.mxu0 0.0
      %883 = vmatpush1.msra.mxu0 0.0
      %884 = vmatprep.subr.mxu0 0.0
      %885 = vmatpush1.msra.mxu0 0.0
      %886 = vmatprep.subr.mxu0 0.0
      %887 = vmatpush1.msra.mxu0 0.0
      %888 = vmatprep.subr.mxu0 0.0
      %889 = vmatpush1.msra.mxu0 0.0
      %890 = vmatprep.subr.mxu0 0.0
      %891 = vmatpush1.msra.mxu0 0.0
      %892 = vmatprep.subr.mxu0 0.0
      %893 = vmatpush1.msra.mxu0 0.0
      %894 = vmatprep.subr.mxu0 0.0
      %895 = vmatpush1.msra.mxu0 0.0
      %896 = vmatprep.subr.mxu0 0.0
      %897 = vmatpush1.msra.mxu0 0.0
      %898 = vmatprep.subr.mxu0 0.0
      %899 = vmatpush1.msra.mxu0 0.0
      %900 = vmatprep.subr.mxu0 0.0
      %901 = vmatpush1.msra.mxu0 0.0
      %902 = vmatprep.subr.mxu0 0.0
      %903 = vmatpush1.msra.mxu0 0.0
      %904 = vmatprep.subr.mxu0 0.0
      %905 = vmatpush1.msra.mxu0 0.0
      %906 = vmatprep.subr.mxu0 0.0
      %907 = vmatpush1.msra.mxu0 0.0
      %908 = vmatprep.subr.mxu0 0.0
      %909 = vmatpush1.msra.mxu0 0.0
      %910 = vmatprep.subr.mxu0 0.0
      %911 = vmatpush1.msra.mxu0 0.0
      %912 = vmatprep.subr.mxu0 0.0
      %913 = vmatpush1.msra.mxu0 0.0
      %914 = vmatprep.subr.mxu0 0.0
      %915 = vmatpush1.msra.mxu0 0.0
      %916 = vmatprep.subr.mxu0 0.0
      %917 = vmatpush1.msra.mxu0 0.0
      %918 = vmatprep.subr.mxu0 0.0
      %919 = vmatpush1.msra.mxu0 0.0
      %920 = vmatprep.subr.mxu0 0.0
      %921 = vmatpush1.msra.mxu0 0.0
      %922 = vmatprep.subr.mxu0 0.0
      %923 = vmatpush1.msra.mxu0 0.0
      %924 = vmatprep.mubr.f32.mxu0 0.0
      %925 = vmatmul.mubr.f32.gmra.mrb[0].mxu0 %v837
      %v926 = vpop.f32.mrb[0].mxu0
      %v927 = vadd.f32 %v834, %v926
      %v928 = vpop.f32.mrb[0].mxu0
      %929 = vmatprep.mubr.f32.mxu0 0.0
      %930 = vmatmul.mubr.f32.gmra.mrb[0].mxu0 %v840
      %v931 = vpop.f32.mrb[0].mxu0
      %v932 = vadd.f32 %v834, %v931
      %v933 = vpop.f32.mrb[0].mxu0
      %934 = vmatprep.mubr.f32.mxu0 0.0
      %935 = vmatmul.mubr.f32.gmra.mrb[0].mxu0 %v843
      %v936 = vpop.f32.mrb[0].mxu0
      %v937 = vadd.f32 %v834, %v936
      %v938 = vpop.f32.mrb[0].mxu0
      %939 = vmatprep.mubr.f32.mxu0 0.0
      %940 = vmatmul.mubr.f32.gmra.mrb[0].mxu0 %v846
      %v941 = vpop.f32.mrb[0].mxu0
      %v942 = vadd.f32 %v834, %v941
      %v943 = vpop.f32.mrb[0].mxu0
      %944 = vmatprep.mubr.f32.mxu0 0.0
      %945 = vmatmul.mubr.f32.gmra.mrb[0].mxu0 %v849
      %v946 = vpop.f32.mrb[0].mxu0
      %v947 = vadd.f32 %v834, %v946
      %v948 = vpop.f32.mrb[0].mxu0
      %949 = vmatprep.mubr.f32.mxu0 0.0
      %950 = vmatmul.mubr.f32.gmra.mrb[0].mxu0 %v852
      %v951 = vpop.f32.mrb[0].mxu0
      %v952 = vadd.f32 %v834, %v951
      %v953 = vpop.f32.mrb[0].mxu0
      %954 = vmatprep.mubr.f32.mxu0 0.0
      %955 = vmatmul.mubr.f32.gmra.mrb[0].mxu0 %v855
      %v956 = vpop.f32.mrb[0].mxu0
      %v957 = vadd.f32 %v834, %v956
      %v958 = vpop.f32.mrb[0].mxu0
      %959 = vmatprep.mubr.f32.mxu0 0.0
      %960 = vmatmul.mubr.f32.gmra.mrb[0].mxu0 %v858
      %v961 = vpop.f32.mrb[0].mxu0
      %v962 = vadd.f32 %v834, %v961
      %v963 = vpop.f32.mrb[0].mxu0
      %964 = vdwg.mxu0
      %v965 = vld [vmem:[%s8] sm:$0xff]
      %v966 = vld [vmem:[%s8 + $0x8] sm:$0xff]
      %v967 = vld [vmem:[%s8 + $0x10] sm:$0xff]
      %v968 = vld [vmem:[%s8 + $0x18] sm:$0xff]
      %977 = vrot.lane.b32.xlu0 %v927, 96
      %v978 = vpop.permute.xlu0 %977
      %979 = vrot.lane.b32.xlu0 %v932, 96
      %v980 = vpop.permute.xlu0 %979
      %981 = vrot.lane.b32.xlu0 %v937, 96
      %v982 = vpop.permute.xlu0 %981
      %983 = vrot.lane.b32.xlu0 %v942, 96
      %v984 = vpop.permute.xlu0 %983
      %985 = vrot.lane.b32.xlu0 %v947, 96
      %v986 = vpop.permute.xlu0 %985
      %987 = vrot.lane.b32.xlu0 %v952, 96
      %v988 = vpop.permute.xlu0 %987
      %989 = vrot.lane.b32.xlu0 %v957, 96
      %v990 = vpop.permute.xlu0 %989
      %991 = vrot.lane.b32.xlu0 %v962, 96
      %v992 = vpop.permute.xlu0 %991
      %vm993 = vcmask 130048
      %v994 = vsel %vm993, %v927, 0
      %v996 = vsel %vm993, %v932, 0
      %v998 = vsel %vm993, %v937, 0
      %v1000 = vsel %vm993, %v942, 0
      %v1002 = vsel %vm993, %v947, 0
      %v1004 = vsel %vm993, %v952, 0
      %v1006 = vsel %vm993, %v957, 0
      %v1008 = vsel %vm993, %v962, 0
      %v1010 = vsel %vm993, %v978, 0
      %v1012 = vsel %vm993, %v980, 0
      %v1014 = vsel %vm993, %v982, 0
      %v1016 = vsel %vm993, %v984, 0
      %v1018 = vsel %vm993, %v986, 0
      %v1020 = vsel %vm993, %v988, 0
      %v1022 = vsel %vm993, %v990, 0
      %v1024 = vsel %vm993, %v992, 0
      %1026 = vmatprep.subr.mxu0 0.0
      %1027 = vmatpush1.xpose.msra.mxu0 %v1010
      %1028 = vmatprep.subr.mxu0 0.0
      %1029 = vmatpush1.xpose.msra.mxu0 %v1012
      %1030 = vmatprep.subr.mxu0 0.0
      %1031 = vmatpush1.xpose.msra.mxu0 %v1014
      %1032 = vmatprep.subr.mxu0 0.0
      %1033 = vmatpush1.xpose.msra.mxu0 %v1016
      %1034 = vmatprep.subr.mxu0 0.0
      %1035 = vmatpush1.xpose.msra.mxu0 %v1018
      %1036 = vmatprep.subr.mxu0 0.0
      %1037 = vmatpush1.xpose.msra.mxu0 %v1020
      %1038 = vmatprep.subr.mxu0 0.0
      %1039 = vmatpush1.xpose.msra.mxu0 %v1022
      %1040 = vmatprep.subr.mxu0 0.0
      %1041 = vmatpush1.xpose.msra.mxu0 %v1024
      %1042 = vmatprep.subr.mxu0 0.0
      %1043 = vmatpush1.xpose.msra.mxu0 0.0
      %1044 = vmatprep.subr.mxu0 0.0
      %1045 = vmatpush1.xpose.msra.mxu0 0.0
      %1046 = vmatprep.subr.mxu0 0.0
      %1047 = vmatpush1.xpose.msra.mxu0 0.0
      %1048 = vmatprep.subr.mxu0 0.0
      %1049 = vmatpush1.xpose.msra.mxu0 0.0
      %1050 = vmatprep.subr.mxu0 0.0
      %1051 = vmatpush1.xpose.msra.mxu0 0.0
      %1052 = vmatprep.subr.mxu0 0.0
      %1053 = vmatpush1.xpose.msra.mxu0 0.0
      %1054 = vmatprep.subr.mxu0 0.0
      %1055 = vmatpush1.xpose.msra.mxu0 0.0
      %1056 = vmatprep.subr.mxu0 0.0
      %1057 = vmatpush1.xpose.msra.mxu0 0.0
      %1058 = vmatprep.subr.mxu0 0.0
      %1059 = vmatpush1.xpose.msra.mxu0 0.0
      %1060 = vmatprep.subr.mxu0 0.0
      %1061 = vmatpush1.xpose.msra.mxu0 0.0
      %1062 = vmatprep.subr.mxu0 0.0
      %1063 = vmatpush1.xpose.msra.mxu0 0.0
      %1064 = vmatprep.subr.mxu0 0.0
      %1065 = vmatpush1.xpose.msra.mxu0 0.0
      %1066 = vmatprep.subr.mxu0 0.0
      %1067 = vmatpush1.xpose.msra.mxu0 0.0
      %1068 = vmatprep.subr.mxu0 0.0
      %1069 = vmatpush1.xpose.msra.mxu0 0.0
      %1070 = vmatprep.subr.mxu0 0.0
      %1071 = vmatpush1.xpose.msra.mxu0 0.0
      %1072 = vmatprep.subr.mxu0 0.0
      %1073 = vmatpush1.xpose.msra.mxu0 0.0
      %1074 = vmatprep.subr.mxu0 0.0
      %1075 = vmatpush1.xpose.msra.mxu0 0.0
      %1076 = vmatprep.subr.mxu0 0.0
      %1077 = vmatpush1.xpose.msra.mxu0 0.0
      %1078 = vmatprep.subr.mxu0 0.0
      %1079 = vmatpush1.xpose.msra.mxu0 0.0
      %1080 = vmatprep.subr.mxu0 0.0
      %1081 = vmatpush1.xpose.msra.mxu0 0.0
      %1082 = vmatprep.subr.mxu0 0.0
      %1083 = vmatpush1.xpose.msra.mxu0 0.0
      %1084 = vmatprep.subr.mxu0 0.0
      %1085 = vmatpush1.xpose.msra.mxu0 0.0
      %1086 = vmatprep.subr.mxu0 0.0
      %1087 = vmatpush1.xpose.msra.mxu0 0.0
      %1088 = vmatprep.subr.mxu0 0.0
      %1089 = vmatpush1.xpose.msra.mxu0 0.0
      %1090 = vmatprep.mubr.f32.mxu0 0.0
      %1091 = vmatmul.mubr.f32.gmra.mrb[0].mxu0 %v994
      %v1092 = vpop.f32.mrb[0].mxu0
      %v1093 = vadd.f32 0.0, %v1092
      %v1094 = vpop.f32.mrb[0].mxu0
      %1095 = vmatprep.mubr.f32.mxu0 0.0
      %1096 = vmatmul.mubr.f32.gmra.mrb[0].mxu0 %v996
      %v1097 = vpop.f32.mrb[0].mxu0
      %v1098 = vadd.f32 0.0, %v1097
      %v1099 = vpop.f32.mrb[0].mxu0
      %1100 = vmatprep.mubr.f32.mxu0 0.0
      %1101 = vmatmul.mubr.f32.gmra.mrb[0].mxu0 %v998
      %v1102 = vpop.f32.mrb[0].mxu0
      %v1103 = vadd.f32 0.0, %v1102
      %v1104 = vpop.f32.mrb[0].mxu0
      %1105 = vmatprep.mubr.f32.mxu0 0.0
      %1106 = vmatmul.mubr.f32.gmra.mrb[0].mxu0 %v1000
      %v1107 = vpop.f32.mrb[0].mxu0
      %v1108 = vadd.f32 0.0, %v1107
      %v1109 = vpop.f32.mrb[0].mxu0
      %1110 = vmatprep.mubr.f32.mxu0 0.0
      %1111 = vmatmul.mubr.f32.gmra.mrb[0].mxu0 %v1002
      %v1112 = vpop.f32.mrb[0].mxu0
      %v1113 = vadd.f32 0.0, %v1112
      %v1114 = vpop.f32.mrb[0].mxu0
      %1115 = vmatprep.mubr.f32.mxu0 0.0
      %1116 = vmatmul.mubr.f32.gmra.mrb[0].mxu0 %v1004
      %v1117 = vpop.f32.mrb[0].mxu0
      %v1118 = vadd.f32 0.0, %v1117
      %v1119 = vpop.f32.mrb[0].mxu0
      %1120 = vmatprep.mubr.f32.mxu0 0.0
      %1121 = vmatmul.mubr.f32.gmra.mrb[0].mxu0 %v1006
      %v1122 = vpop.f32.mrb[0].mxu0
      %v1123 = vadd.f32 0.0, %v1122
      %v1124 = vpop.f32.mrb[0].mxu0
      %1125 = vmatprep.mubr.f32.mxu0 0.0
      %1126 = vmatmul.mubr.f32.gmra.mrb[0].mxu0 %v1008
      %v1127 = vpop.f32.mrb[0].mxu0
      %v1128 = vadd.f32 0.0, %v1127
      %v1129 = vpop.f32.mrb[0].mxu0
      %1130 = vdwg.mxu0
      %vm1131 = vcmask 523264
      %v1132 = vsel %vm1131, %v1093, -inf
      %1133 = vmax.xlane.f32.xlu0 %v1132
      %v1134 = vpop.xlane.xlu0 %1133
      %v1135 = vsel %vm1131, %v1098, -inf
      %1136 = vmax.xlane.f32.xlu0 %v1135
      %v1137 = vpop.xlane.xlu0 %1136
      %v1138 = vsel %vm1131, %v1103, -inf
      %1139 = vmax.xlane.f32.xlu0 %v1138
      %v1140 = vpop.xlane.xlu0 %1139
      %v1141 = vsel %vm1131, %v1108, -inf
      %1142 = vmax.xlane.f32.xlu0 %v1141
      %v1143 = vpop.xlane.xlu0 %1142
      %v1144 = vsel %vm1131, %v1113, -inf
      %1145 = vmax.xlane.f32.xlu0 %v1144
      %v1146 = vpop.xlane.xlu0 %1145
      %v1147 = vsel %vm1131, %v1118, -inf
      %1148 = vmax.xlane.f32.xlu0 %v1147
      %v1149 = vpop.xlane.xlu0 %1148
      %v1150 = vsel %vm1131, %v1123, -inf
      %1151 = vmax.xlane.f32.xlu0 %v1150
      %v1152 = vpop.xlane.xlu0 %1151
      %v1153 = vsel %vm1131, %v1128, -inf
      %1154 = vmax.xlane.f32.xlu0 %v1153
      %v1155 = vpop.xlane.xlu0 %1154
      %v1156 = vsub.f32 %v1093, %v1134
      %v1157 = vsub.f32 %v1098, %v1137
      %v1158 = vsub.f32 %v1103, %v1140
      %v1159 = vsub.f32 %v1108, %v1143
      %v1160 = vsub.f32 %v1113, %v1146
      %v1161 = vsub.f32 %v1118, %v1149
      %v1162 = vsub.f32 %v1123, %v1152
      %v1163 = vsub.f32 %v1128, %v1155
      %v1164 = vmul.f32 %v1156, 1.442695
      %v1165 = vpow.pop %v1164
      %v1166 = vmul.f32 %v1157, 1.442695
      %v1167 = vpow.pop %v1166
      %v1168 = vmul.f32 %v1158, 1.442695
      %v1169 = vpow.pop %v1168
      %v1170 = vmul.f32 %v1159, 1.442695
      %v1171 = vpow.pop %v1170
      %v1172 = vmul.f32 %v1160, 1.442695
      %v1173 = vpow.pop %v1172
      %v1174 = vmul.f32 %v1161, 1.442695
      %v1175 = vpow.pop %v1174
      %v1176 = vmul.f32 %v1162, 1.442695
      %v1177 = vpow.pop %v1176
      %v1178 = vmul.f32 %v1163, 1.442695
      %v1179 = vpow.pop %v1178
      %v1180 = vsel %vm1131, %v1165, 0.0
      %1181 = vadd.xlane.f32.xlu0 %v1180
      %v1182 = vpop.xlane.xlu0 %1181
      %v1183 = vsel %vm1131, %v1167, 0.0
      %1184 = vadd.xlane.f32.xlu0 %v1183
      %v1185 = vpop.xlane.xlu0 %1184
      %v1186 = vsel %vm1131, %v1169, 0.0
      %1187 = vadd.xlane.f32.xlu0 %v1186
      %v1188 = vpop.xlane.xlu0 %1187
      %v1189 = vsel %vm1131, %v1171, 0.0
      %1190 = vadd.xlane.f32.xlu0 %v1189
      %v1191 = vpop.xlane.xlu0 %1190
      %v1192 = vsel %vm1131, %v1173, 0.0
      %1193 = vadd.xlane.f32.xlu0 %v1192
      %v1194 = vpop.xlane.xlu0 %1193
      %v1195 = vsel %vm1131, %v1175, 0.0
      %1196 = vadd.xlane.f32.xlu0 %v1195
      %v1197 = vpop.xlane.xlu0 %1196
      %v1198 = vsel %vm1131, %v1177, 0.0
      %1199 = vadd.xlane.f32.xlu0 %v1198
      %v1200 = vpop.xlane.xlu0 %1199
      %v1201 = vsel %vm1131, %v1179, 0.0
      %1202 = vadd.xlane.f32.xlu0 %v1201
      %v1203 = vpop.xlane.xlu0 %1202
      %v1204 = vrcp.pop %v1182
      %v1205 = vmul.f32 %v1165, %v1204
      %v1206 = vrcp.pop %v1185
      %v1207 = vmul.f32 %v1167, %v1206
      %v1208 = vrcp.pop %v1188
      %v1209 = vmul.f32 %v1169, %v1208
      %v1210 = vrcp.pop %v1191
      %v1211 = vmul.f32 %v1171, %v1210
      %v1212 = vrcp.pop %v1194
      %v1213 = vmul.f32 %v1173, %v1212
      %v1214 = vrcp.pop %v1197
      %v1215 = vmul.f32 %v1175, %v1214
      %v1216 = vrcp.pop %v1200
      %v1217 = vmul.f32 %v1177, %v1216
      %v1218 = vrcp.pop %v1203
      %v1219 = vmul.f32 %v1179, %v1218
      %1220 = vrot.lane.b32.xlu0 %v927, 64
      %v1221 = vpop.permute.xlu0 %1220
      %1222 = vrot.lane.b32.xlu0 %v932, 64
      %v1223 = vpop.permute.xlu0 %1222
      %1224 = vrot.lane.b32.xlu0 %v937, 64
      %v1225 = vpop.permute.xlu0 %1224
      %1226 = vrot.lane.b32.xlu0 %v942, 64
      %v1227 = vpop.permute.xlu0 %1226
      %1228 = vrot.lane.b32.xlu0 %v947, 64
      %v1229 = vpop.permute.xlu0 %1228
      %1230 = vrot.lane.b32.xlu0 %v952, 64
      %v1231 = vpop.permute.xlu0 %1230
      %1232 = vrot.lane.b32.xlu0 %v957, 64
      %v1233 = vpop.permute.xlu0 %1232
      %1234 = vrot.lane.b32.xlu0 %v962, 64
      %v1235 = vpop.permute.xlu0 %1234
      %v1245 = vsel %vm1131, %v1205, 0
      %v1248 = vsel %vm1131, %v1207, 0
      %v1251 = vsel %vm1131, %v1209, 0
      %v1254 = vsel %vm1131, %v1211, 0
      %v1257 = vsel %vm1131, %v1213, 0
      %v1260 = vsel %vm1131, %v1215, 0
      %v1263 = vsel %vm1131, %v1217, 0
      %v1266 = vsel %vm1131, %v1219, 0
      %1268 = vmatprep.subr.mxu0 0.0
      %1269 = vmatpush1.msra.mxu0 %v1221
      %1270 = vmatprep.subr.mxu0 0.0
      %1271 = vmatpush1.msra.mxu0 %v1223
      %1272 = vmatprep.subr.mxu0 0.0
      %1273 = vmatpush1.msra.mxu0 %v1225
      %1274 = vmatprep.subr.mxu0 0.0
      %1275 = vmatpush1.msra.mxu0 %v1227
      %1276 = vmatprep.subr.mxu0 0.0
      %1277 = vmatpush1.msra.mxu0 %v1229
      %1278 = vmatprep.subr.mxu0 0.0
      %1279 = vmatpush1.msra.mxu0 %v1231
      %1280 = vmatprep.subr.mxu0 0.0
      %1281 = vmatpush1.msra.mxu0 %v1233
      %1282 = vmatprep.subr.mxu0 0.0
      %1283 = vmatpush1.msra.mxu0 %v1235
      %1284 = vmatprep.subr.mxu0 0.0
      %1285 = vmatpush1.msra.mxu0 0.0
      %1286 = vmatprep.subr.mxu0 0.0
      %1287 = vmatpush1.msra.mxu0 0.0
      %1288 = vmatprep.subr.mxu0 0.0
      %1289 = vmatpush1.msra.mxu0 0.0
      %1290 = vmatprep.subr.mxu0 0.0
      %1291 = vmatpush1.msra.mxu0 0.0
      %1292 = vmatprep.subr.mxu0 0.0
      %1293 = vmatpush1.msra.mxu0 0.0
      %1294 = vmatprep.subr.mxu0 0.0
      %1295 = vmatpush1.msra.mxu0 0.0
      %1296 = vmatprep.subr.mxu0 0.0
      %1297 = vmatpush1.msra.mxu0 0.0
      %1298 = vmatprep.subr.mxu0 0.0
      %1299 = vmatpush1.msra.mxu0 0.0
      %1300 = vmatprep.subr.mxu0 0.0
      %1301 = vmatpush1.msra.mxu0 0.0
      %1302 = vmatprep.subr.mxu0 0.0
      %1303 = vmatpush1.msra.mxu0 0.0
      %1304 = vmatprep.subr.mxu0 0.0
      %1305 = vmatpush1.msra.mxu0 0.0
      %1306 = vmatprep.subr.mxu0 0.0
      %1307 = vmatpush1.msra.mxu0 0.0
      %1308 = vmatprep.subr.mxu0 0.0
      %1309 = vmatpush1.msra.mxu0 0.0
      %1310 = vmatprep.subr.mxu0 0.0
      %1311 = vmatpush1.msra.mxu0 0.0
      %1312 = vmatprep.subr.mxu0 0.0
      %1313 = vmatpush1.msra.mxu0 0.0
      %1314 = vmatprep.subr.mxu0 0.0
      %1315 = vmatpush1.msra.mxu0 0.0
      %1316 = vmatprep.subr.mxu0 0.0
      %1317 = vmatpush1.msra.mxu0 0.0
      %1318 = vmatprep.subr.mxu0 0.0
      %1319 = vmatpush1.msra.mxu0 0.0
      %1320 = vmatprep.subr.mxu0 0.0
      %1321 = vmatpush1.msra.mxu0 0.0
      %1322 = vmatprep.subr.mxu0 0.0
      %1323 = vmatpush1.msra.mxu0 0.0
      %1324 = vmatprep.subr.mxu0 0.0
      %1325 = vmatpush1.msra.mxu0 0.0
      %1326 = vmatprep.subr.mxu0 0.0
      %1327 = vmatpush1.msra.mxu0 0.0
      %1328 = vmatprep.subr.mxu0 0.0
      %1329 = vmatpush1.msra.mxu0 0.0
      %1330 = vmatprep.subr.mxu0 0.0
      %1331 = vmatpush1.msra.mxu0 0.0
      %1332 = vmatprep.mubr.f32.mxu0 0.0
      %1333 = vmatmul.mubr.f32.gmra.mrb[0].mxu0 %v1245
      %v1334 = vpop.f32.mrb[0].mxu0
      %v1335 = vadd.f32 0.0, %v1334
      %v1336 = vpop.f32.mrb[0].mxu0
      %1337 = vmatprep.mubr.f32.mxu0 0.0
      %1338 = vmatmul.mubr.f32.gmra.mrb[0].mxu0 %v1248
      %v1339 = vpop.f32.mrb[0].mxu0
      %v1340 = vadd.f32 0.0, %v1339
      %v1341 = vpop.f32.mrb[0].mxu0
      %1342 = vmatprep.mubr.f32.mxu0 0.0
      %1343 = vmatmul.mubr.f32.gmra.mrb[0].mxu0 %v1251
      %v1344 = vpop.f32.mrb[0].mxu0
      %v1345 = vadd.f32 0.0, %v1344
      %v1346 = vpop.f32.mrb[0].mxu0
      %1347 = vmatprep.mubr.f32.mxu0 0.0
      %1348 = vmatmul.mubr.f32.gmra.mrb[0].mxu0 %v1254
      %v1349 = vpop.f32.mrb[0].mxu0
      %v1350 = vadd.f32 0.0, %v1349
      %v1351 = vpop.f32.mrb[0].mxu0
      %1352 = vmatprep.mubr.f32.mxu0 0.0
      %1353 = vmatmul.mubr.f32.gmra.mrb[0].mxu0 %v1257
      %v1354 = vpop.f32.mrb[0].mxu0
      %v1355 = vadd.f32 0.0, %v1354
      %v1356 = vpop.f32.mrb[0].mxu0
      %1357 = vmatprep.mubr.f32.mxu0 0.0
      %1358 = vmatmul.mubr.f32.gmra.mrb[0].mxu0 %v1260
      %v1359 = vpop.f32.mrb[0].mxu0
      %v1360 = vadd.f32 0.0, %v1359
      %v1361 = vpop.f32.mrb[0].mxu0
      %1362 = vmatprep.mubr.f32.mxu0 0.0
      %1363 = vmatmul.mubr.f32.gmra.mrb[0].mxu0 %v1263
      %v1364 = vpop.f32.mrb[0].mxu0
      %v1365 = vadd.f32 0.0, %v1364
      %v1366 = vpop.f32.mrb[0].mxu0
      %1367 = vmatprep.mubr.f32.mxu0 0.0
      %1368 = vmatmul.mubr.f32.gmra.mrb[0].mxu0 %v1266
      %v1369 = vpop.f32.mrb[0].mxu0
      %v1370 = vadd.f32 0.0, %v1369
      %v1371 = vpop.f32.mrb[0].mxu0
      %1372 = vdwg.mxu0
      %1373 = vrot.lane.b32.xlu0 %v927, 112
      %v1374 = vpop.permute.xlu0 %1373
      %1375 = vrot.lane.b32.xlu0 %v932, 112
      %v1376 = vpop.permute.xlu0 %1375
      %1377 = vrot.lane.b32.xlu0 %v937, 112
      %v1378 = vpop.permute.xlu0 %1377
      %1379 = vrot.lane.b32.xlu0 %v942, 112
      %v1380 = vpop.permute.xlu0 %1379
      %1381 = vrot.lane.b32.xlu0 %v947, 112
      %v1382 = vpop.permute.xlu0 %1381
      %1383 = vrot.lane.b32.xlu0 %v952, 112
      %v1384 = vpop.permute.xlu0 %1383
      %1385 = vrot.lane.b32.xlu0 %v957, 112
      %v1386 = vpop.permute.xlu0 %1385
      %1387 = vrot.lane.b32.xlu0 %v962, 112
      %v1388 = vpop.permute.xlu0 %1387
      %1389 = vrot.lane.b32.xlu0 %v927, 80
      %v1390 = vpop.permute.xlu0 %1389
      %1391 = vrot.lane.b32.xlu0 %v932, 80
      %v1392 = vpop.permute.xlu0 %1391
      %1393 = vrot.lane.b32.xlu0 %v937, 80
      %v1394 = vpop.permute.xlu0 %1393
      %1395 = vrot.lane.b32.xlu0 %v942, 80
      %v1396 = vpop.permute.xlu0 %1395
      %1397 = vrot.lane.b32.xlu0 %v947, 80
      %v1398 = vpop.permute.xlu0 %1397
      %1399 = vrot.lane.b32.xlu0 %v952, 80
      %v1400 = vpop.permute.xlu0 %1399
      %1401 = vrot.lane.b32.xlu0 %v957, 80
      %v1402 = vpop.permute.xlu0 %1401
      %1403 = vrot.lane.b32.xlu0 %v962, 80
      %v1404 = vpop.permute.xlu0 %1403
      %v1405 = vsel %vm993, %v1374, 0
      %v1407 = vsel %vm993, %v1376, 0
      %v1409 = vsel %vm993, %v1378, 0
      %v1411 = vsel %vm993, %v1380, 0
      %v1413 = vsel %vm993, %v1382, 0
      %v1415 = vsel %vm993, %v1384, 0
      %v1417 = vsel %vm993, %v1386, 0
      %v1419 = vsel %vm993, %v1388, 0
      %v1421 = vsel %vm993, %v1390, 0
      %v1423 = vsel %vm993, %v1392, 0
      %v1425 = vsel %vm993, %v1394, 0
      %v1427 = vsel %vm993, %v1396, 0
      %v1429 = vsel %vm993, %v1398, 0
      %v1431 = vsel %vm993, %v1400, 0
      %v1433 = vsel %vm993, %v1402, 0
      %v1435 = vsel %vm993, %v1404, 0
      %1437 = vmatprep.subr.mxu0 0.0
      %1438 = vmatpush1.xpose.msra.mxu0 %v1421
      %1439 = vmatprep.subr.mxu0 0.0
      %1440 = vmatpush1.xpose.msra.mxu0 %v1423
      %1441 = vmatprep.subr.mxu0 0.0
      %1442 = vmatpush1.xpose.msra.mxu0 %v1425
      %1443 = vmatprep.subr.mxu0 0.0
      %1444 = vmatpush1.xpose.msra.mxu0 %v1427
      %1445 = vmatprep.subr.mxu0 0.0
      %1446 = vmatpush1.xpose.msra.mxu0 %v1429
      %1447 = vmatprep.subr.mxu0 0.0
      %1448 = vmatpush1.xpose.msra.mxu0 %v1431
      %1449 = vmatprep.subr.mxu0 0.0
      %1450 = vmatpush1.xpose.msra.mxu0 %v1433
      %1451 = vmatprep.subr.mxu0 0.0
      %1452 = vmatpush1.xpose.msra.mxu0 %v1435
      %1453 = vmatprep.subr.mxu0 0.0
      %1454 = vmatpush1.xpose.msra.mxu0 0.0
      %1455 = vmatprep.subr.mxu0 0.0
      %1456 = vmatpush1.xpose.msra.mxu0 0.0
      %1457 = vmatprep.subr.mxu0 0.0
      %1458 = vmatpush1.xpose.msra.mxu0 0.0
      %1459 = vmatprep.subr.mxu0 0.0
      %1460 = vmatpush1.xpose.msra.mxu0 0.0
      %1461 = vmatprep.subr.mxu0 0.0
      %1462 = vmatpush1.xpose.msra.mxu0 0.0
      %1463 = vmatprep.subr.mxu0 0.0
      %1464 = vmatpush1.xpose.msra.mxu0 0.0
      %1465 = vmatprep.subr.mxu0 0.0
      %1466 = vmatpush1.xpose.msra.mxu0 0.0
      %1467 = vmatprep.subr.mxu0 0.0
      %1468 = vmatpush1.xpose.msra.mxu0 0.0
      %1469 = vmatprep.subr.mxu0 0.0
      %1470 = vmatpush1.xpose.msra.mxu0 0.0
      %1471 = vmatprep.subr.mxu0 0.0
      %1472 = vmatpush1.xpose.msra.mxu0 0.0
      %1473 = vmatprep.subr.mxu0 0.0
      %1474 = vmatpush1.xpose.msra.mxu0 0.0
      %1475 = vmatprep.subr.mxu0 0.0
      %1476 = vmatpush1.xpose.msra.mxu0 0.0
      %1477 = vmatprep.subr.mxu0 0.0
      %1478 = vmatpush1.xpose.msra.mxu0 0.0
      %1479 = vmatprep.subr.mxu0 0.0
      %1480 = vmatpush1.xpose.msra.mxu0 0.0
      %1481 = vmatprep.subr.mxu0 0.0
      %1482 = vmatpush1.xpose.msra.mxu0 0.0
      %1483 = vmatprep.subr.mxu0 0.0
      %1484 = vmatpush1.xpose.msra.mxu0 0.0
      %1485 = vmatprep.subr.mxu0 0.0
      %1486 = vmatpush1.xpose.msra.mxu0 0.0
      %1487 = vmatprep.subr.mxu0 0.0
      %1488 = vmatpush1.xpose.msra.mxu0 0.0
      %1489 = vmatprep.subr.mxu0 0.0
      %1490 = vmatpush1.xpose.msra.mxu0 0.0
      %1491 = vmatprep.subr.mxu0 0.0
      %1492 = vmatpush1.xpose.msra.mxu0 0.0
      %1493 = vmatprep.subr.mxu0 0.0
      %1494 = vmatpush1.xpose.msra.mxu0 0.0
      %1495 = vmatprep.subr.mxu0 0.0
      %1496 = vmatpush1.xpose.msra.mxu0 0.0
      %1497 = vmatprep.subr.mxu0 0.0
      %1498 = vmatpush1.xpose.msra.mxu0 0.0
      %1499 = vmatprep.subr.mxu0 0.0
      %1500 = vmatpush1.xpose.msra.mxu0 0.0
      %1501 = vmatprep.mubr.f32.mxu0 0.0
      %1502 = vmatmul.mubr.f32.gmra.mrb[0].mxu0 %v1405
      %v1503 = vpop.f32.mrb[0].mxu0
      %v1504 = vadd.f32 0.0, %v1503
      %v1505 = vpop.f32.mrb[0].mxu0
      %1506 = vmatprep.mubr.f32.mxu0 0.0
      %1507 = vmatmul.mubr.f32.gmra.mrb[0].mxu0 %v1407
      %v1508 = vpop.f32.mrb[0].mxu0
      %v1509 = vadd.f32 0.0, %v1508
      %v1510 = vpop.f32.mrb[0].mxu0
      %1511 = vmatprep.mubr.f32.mxu0 0.0
      %1512 = vmatmul.mubr.f32.gmra.mrb[0].mxu0 %v1409
      %v1513 = vpop.f32.mrb[0].mxu0
      %v1514 = vadd.f32 0.0, %v1513
      %v1515 = vpop.f32.mrb[0].mxu0
      %1516 = vmatprep.mubr.f32.mxu0 0.0
      %1517 = vmatmul.mubr.f32.gmra.mrb[0].mxu0 %v1411
      %v1518 = vpop.f32.mrb[0].mxu0
      %v1519 = vadd.f32 0.0, %v1518
      %v1520 = vpop.f32.mrb[0].mxu0
      %1521 = vmatprep.mubr.f32.mxu0 0.0
      %1522 = vmatmul.mubr.f32.gmra.mrb[0].mxu0 %v1413
      %v1523 = vpop.f32.mrb[0].mxu0
      %v1524 = vadd.f32 0.0, %v1523
      %v1525 = vpop.f32.mrb[0].mxu0
      %1526 = vmatprep.mubr.f32.mxu0 0.0
      %1527 = vmatmul.mubr.f32.gmra.mrb[0].mxu0 %v1415
      %v1528 = vpop.f32.mrb[0].mxu0
      %v1529 = vadd.f32 0.0, %v1528
      %v1530 = vpop.f32.mrb[0].mxu0
      %1531 = vmatprep.mubr.f32.mxu0 0.0
      %1532 = vmatmul.mubr.f32.gmra.mrb[0].mxu0 %v1417
      %v1533 = vpop.f32.mrb[0].mxu0
      %v1534 = vadd.f32 0.0, %v1533
      %v1535 = vpop.f32.mrb[0].mxu0
      %1536 = vmatprep.mubr.f32.mxu0 0.0
      %1537 = vmatmul.mubr.f32.gmra.mrb[0].mxu0 %v1419
      %v1538 = vpop.f32.mrb[0].mxu0
      %v1539 = vadd.f32 0.0, %v1538
      %v1540 = vpop.f32.mrb[0].mxu0
      %1541 = vdwg.mxu0
      %v1542 = vsel %vm1131, %v1504, -inf
      %1543 = vmax.xlane.f32.xlu0 %v1542
      %v1544 = vpop.xlane.xlu0 %1543
      %v1545 = vsel %vm1131, %v1509, -inf
      %1546 = vmax.xlane.f32.xlu0 %v1545
      %v1547 = vpop.xlane.xlu0 %1546
      %v1548 = vsel %vm1131, %v1514, -inf
      %1549 = vmax.xlane.f32.xlu0 %v1548
      %v1550 = vpop.xlane.xlu0 %1549
      %v1551 = vsel %vm1131, %v1519, -inf
      %1552 = vmax.xlane.f32.xlu0 %v1551
      %v1553 = vpop.xlane.xlu0 %1552
      %v1554 = vsel %vm1131, %v1524, -inf
      %1555 = vmax.xlane.f32.xlu0 %v1554
      %v1556 = vpop.xlane.xlu0 %1555
      %v1557 = vsel %vm1131, %v1529, -inf
      %1558 = vmax.xlane.f32.xlu0 %v1557
      %v1559 = vpop.xlane.xlu0 %1558
      %v1560 = vsel %vm1131, %v1534, -inf
      %1561 = vmax.xlane.f32.xlu0 %v1560
      %v1562 = vpop.xlane.xlu0 %1561
      %v1563 = vsel %vm1131, %v1539, -inf
      %1564 = vmax.xlane.f32.xlu0 %v1563
      %v1565 = vpop.xlane.xlu0 %1564
      %v1566 = vsub.f32 %v1504, %v1544
      %v1567 = vsub.f32 %v1509, %v1547
      %v1568 = vsub.f32 %v1514, %v1550
      %v1569 = vsub.f32 %v1519, %v1553
      %v1570 = vsub.f32 %v1524, %v1556
      %v1571 = vsub.f32 %v1529, %v1559
      %v1572 = vsub.f32 %v1534, %v1562
      %v1573 = vsub.f32 %v1539, %v1565
      %v1574 = vmul.f32 %v1566, 1.442695
      %v1575 = vpow.pop %v1574
      %v1576 = vmul.f32 %v1567, 1.442695
      %v1577 = vpow.pop %v1576
      %v1578 = vmul.f32 %v1568, 1.442695
      %v1579 = vpow.pop %v1578
      %v1580 = vmul.f32 %v1569, 1.442695
      %v1581 = vpow.pop %v1580
      %v1582 = vmul.f32 %v1570, 1.442695
      %v1583 = vpow.pop %v1582
      %v1584 = vmul.f32 %v1571, 1.442695
      %v1585 = vpow.pop %v1584
      %v1586 = vmul.f32 %v1572, 1.442695
      %v1587 = vpow.pop %v1586
      %v1588 = vmul.f32 %v1573, 1.442695
      %v1589 = vpow.pop %v1588
      %v1590 = vsel %vm1131, %v1575, 0.0
      %1591 = vadd.xlane.f32.xlu0 %v1590
      %v1592 = vpop.xlane.xlu0 %1591
      %v1593 = vsel %vm1131, %v1577, 0.0
      %1594 = vadd.xlane.f32.xlu0 %v1593
      %v1595 = vpop.xlane.xlu0 %1594
      %v1596 = vsel %vm1131, %v1579, 0.0
      %1597 = vadd.xlane.f32.xlu0 %v1596
      %v1598 = vpop.xlane.xlu0 %1597
      %v1599 = vsel %vm1131, %v1581, 0.0
      %1600 = vadd.xlane.f32.xlu0 %v1599
      %v1601 = vpop.xlane.xlu0 %1600
      %v1602 = vsel %vm1131, %v1583, 0.0
      %1603 = vadd.xlane.f32.xlu0 %v1602
      %v1604 = vpop.xlane.xlu0 %1603
      %v1605 = vsel %vm1131, %v1585, 0.0
      %1606 = vadd.xlane.f32.xlu0 %v1605
      %v1607 = vpop.xlane.xlu0 %1606
      %v1608 = vsel %vm1131, %v1587, 0.0
      %1609 = vadd.xlane.f32.xlu0 %v1608
      %v1610 = vpop.xlane.xlu0 %1609
      %v1611 = vsel %vm1131, %v1589, 0.0
      %1612 = vadd.xlane.f32.xlu0 %v1611
      %v1613 = vpop.xlane.xlu0 %1612
      %v1614 = vrcp.pop %v1592
      %v1615 = vmul.f32 %v1575, %v1614
      %v1616 = vrcp.pop %v1595
      %v1617 = vmul.f32 %v1577, %v1616
      %v1618 = vrcp.pop %v1598
      %v1619 = vmul.f32 %v1579, %v1618
      %v1620 = vrcp.pop %v1601
      %v1621 = vmul.f32 %v1581, %v1620
      %v1622 = vrcp.pop %v1604
      %v1623 = vmul.f32 %v1583, %v1622
      %v1624 = vrcp.pop %v1607
      %v1625 = vmul.f32 %v1585, %v1624
      %v1626 = vrcp.pop %v1610
      %v1627 = vmul.f32 %v1587, %v1626
      %v1628 = vrcp.pop %v1613
      %v1629 = vmul.f32 %v1589, %v1628
      %1630 = vrot.lane.b32.xlu0 %v927, 48
      %v1631 = vpop.permute.xlu0 %1630
      %1632 = vrot.lane.b32.xlu0 %v932, 48
      %v1633 = vpop.permute.xlu0 %1632
      %1634 = vrot.lane.b32.xlu0 %v937, 48
      %v1635 = vpop.permute.xlu0 %1634
      %1636 = vrot.lane.b32.xlu0 %v942, 48
      %v1637 = vpop.permute.xlu0 %1636
      %1638 = vrot.lane.b32.xlu0 %v947, 48
      %v1639 = vpop.permute.xlu0 %1638
      %1640 = vrot.lane.b32.xlu0 %v952, 48
      %v1641 = vpop.permute.xlu0 %1640
      %1642 = vrot.lane.b32.xlu0 %v957, 48
      %v1643 = vpop.permute.xlu0 %1642
      %1644 = vrot.lane.b32.xlu0 %v962, 48
      %v1645 = vpop.permute.xlu0 %1644
      %v1655 = vsel %vm1131, %v1615, 0
      %v1658 = vsel %vm1131, %v1617, 0
      %v1661 = vsel %vm1131, %v1619, 0
      %v1664 = vsel %vm1131, %v1621, 0
      %v1667 = vsel %vm1131, %v1623, 0
      %v1670 = vsel %vm1131, %v1625, 0
      %v1673 = vsel %vm1131, %v1627, 0
      %v1676 = vsel %vm1131, %v1629, 0
      %1678 = vmatprep.subr.mxu0 0.0
      %1679 = vmatpush1.msra.mxu0 %v1631
      %1680 = vmatprep.subr.mxu0 0.0
      %1681 = vmatpush1.msra.mxu0 %v1633
      %1682 = vmatprep.subr.mxu0 0.0
      %1683 = vmatpush1.msra.mxu0 %v1635
      %1684 = vmatprep.subr.mxu0 0.0
      %1685 = vmatpush1.msra.mxu0 %v1637
      %1686 = vmatprep.subr.mxu0 0.0
      %1687 = vmatpush1.msra.mxu0 %v1639
      %1688 = vmatprep.subr.mxu0 0.0
      %1689 = vmatpush1.msra.mxu0 %v1641
      %1690 = vmatprep.subr.mxu0 0.0
      %1691 = vmatpush1.msra.mxu0 %v1643
      %1692 = vmatprep.subr.mxu0 0.0
      %1693 = vmatpush1.msra.mxu0 %v1645
      %1694 = vmatprep.subr.mxu0 0.0
      %1695 = vmatpush1.msra.mxu0 0.0
      %1696 = vmatprep.subr.mxu0 0.0
      %1697 = vmatpush1.msra.mxu0 0.0
      %1698 = vmatprep.subr.mxu0 0.0
      %1699 = vmatpush1.msra.mxu0 0.0
      %1700 = vmatprep.subr.mxu0 0.0
      %1701 = vmatpush1.msra.mxu0 0.0
      %1702 = vmatprep.subr.mxu0 0.0
      %1703 = vmatpush1.msra.mxu0 0.0
      %1704 = vmatprep.subr.mxu0 0.0
      %1705 = vmatpush1.msra.mxu0 0.0
      %1706 = vmatprep.subr.mxu0 0.0
      %1707 = vmatpush1.msra.mxu0 0.0
      %1708 = vmatprep.subr.mxu0 0.0
      %1709 = vmatpush1.msra.mxu0 0.0
      %1710 = vmatprep.subr.mxu0 0.0
      %1711 = vmatpush1.msra.mxu0 0.0
      %1712 = vmatprep.subr.mxu0 0.0
      %1713 = vmatpush1.msra.mxu0 0.0
      %1714 = vmatprep.subr.mxu0 0.0
      %1715 = vmatpush1.msra.mxu0 0.0
      %1716 = vmatprep.subr.mxu0 0.0
      %1717 = vmatpush1.msra.mxu0 0.0
      %1718 = vmatprep.subr.mxu0 0.0
      %1719 = vmatpush1.msra.mxu0 0.0
      %1720 = vmatprep.subr.mxu0 0.0
      %1721 = vmatpush1.msra.mxu0 0.0
      %1722 = vmatprep.subr.mxu0 0.0
      %1723 = vmatpush1.msra.mxu0 0.0
      %1724 = vmatprep.subr.mxu0 0.0
      %1725 = vmatpush1.msra.mxu0 0.0
      %1726 = vmatprep.subr.mxu0 0.0
      %1727 = vmatpush1.msra.mxu0 0.0
      %1728 = vmatprep.subr.mxu0 0.0
      %1729 = vmatpush1.msra.mxu0 0.0
      %1730 = vmatprep.subr.mxu0 0.0
      %1731 = vmatpush1.msra.mxu0 0.0
      %1732 = vmatprep.subr.mxu0 0.0
      %1733 = vmatpush1.msra.mxu0 0.0
      %1734 = vmatprep.subr.mxu0 0.0
      %1735 = vmatpush1.msra.mxu0 0.0
      %1736 = vmatprep.subr.mxu0 0.0
      %1737 = vmatpush1.msra.mxu0 0.0
      %1738 = vmatprep.subr.mxu0 0.0
      %1739 = vmatpush1.msra.mxu0 0.0
      %1740 = vmatprep.subr.mxu0 0.0
      %1741 = vmatpush1.msra.mxu0 0.0
      %1742 = vmatprep.mubr.f32.mxu0 0.0
      %1743 = vmatmul.mubr.f32.gmra.mrb[0].mxu0 %v1655
      %v1744 = vpop.f32.mrb[0].mxu0
      %v1745 = vadd.f32 0.0, %v1744
      %v1746 = vpop.f32.mrb[0].mxu0
      %1747 = vmatprep.mubr.f32.mxu0 0.0
      %1748 = vmatmul.mubr.f32.gmra.mrb[0].mxu0 %v1658
      %v1749 = vpop.f32.mrb[0].mxu0
      %v1750 = vadd.f32 0.0, %v1749
      %v1751 = vpop.f32.mrb[0].mxu0
      %1752 = vmatprep.mubr.f32.mxu0 0.0
      %1753 = vmatmul.mubr.f32.gmra.mrb[0].mxu0 %v1661
      %v1754 = vpop.f32.mrb[0].mxu0
      %v1755 = vadd.f32 0.0, %v1754
      %v1756 = vpop.f32.mrb[0].mxu0
      %1757 = vmatprep.mubr.f32.mxu0 0.0
      %1758 = vmatmul.mubr.f32.gmra.mrb[0].mxu0 %v1664
      %v1759 = vpop.f32.mrb[0].mxu0
      %v1760 = vadd.f32 0.0, %v1759
      %v1761 = vpop.f32.mrb[0].mxu0
      %1762 = vmatprep.mubr.f32.mxu0 0.0
      %1763 = vmatmul.mubr.f32.gmra.mrb[0].mxu0 %v1667
      %v1764 = vpop.f32.mrb[0].mxu0
      %v1765 = vadd.f32 0.0, %v1764
      %v1766 = vpop.f32.mrb[0].mxu0
      %1767 = vmatprep.mubr.f32.mxu0 0.0
      %1768 = vmatmul.mubr.f32.gmra.mrb[0].mxu0 %v1670
      %v1769 = vpop.f32.mrb[0].mxu0
      %v1770 = vadd.f32 0.0, %v1769
      %v1771 = vpop.f32.mrb[0].mxu0
      %1772 = vmatprep.mubr.f32.mxu0 0.0
      %1773 = vmatmul.mubr.f32.gmra.mrb[0].mxu0 %v1673
      %v1774 = vpop.f32.mrb[0].mxu0
      %v1775 = vadd.f32 0.0, %v1774
      %v1776 = vpop.f32.mrb[0].mxu0
      %1777 = vmatprep.mubr.f32.mxu0 0.0
      %1778 = vmatmul.mubr.f32.gmra.mrb[0].mxu0 %v1676
      %v1779 = vpop.f32.mrb[0].mxu0
      %v1780 = vadd.f32 0.0, %v1779
      %v1781 = vpop.f32.mrb[0].mxu0
      %1782 = vdwg.mxu0
      %v1784 = vsel %vm993, %v1745, 0
      %v1787 = vsel %vm993, %v1750, 0
      %v1790 = vsel %vm993, %v1755, 0
      %v1793 = vsel %vm993, %v1760, 0
      %v1796 = vsel %vm993, %v1765, 0
      %v1799 = vsel %vm993, %v1770, 0
      %v1802 = vsel %vm993, %v1775, 0
      %v1805 = vsel %vm993, %v1780, 0
      %1807 = vmatprep.subr.mxu0 0.0
      %1808 = vmatpush1.msra.mxu0 %v967
      %1809 = vmatprep.subr.mxu0 0.0
      %1810 = vmatpush1.msra.mxu0 %v968
      %1811 = vmatprep.subr.mxu0 0.0
      %1812 = vmatpush1.msra.mxu0 0.0
      %1813 = vmatprep.subr.mxu0 0.0
      %1814 = vmatpush1.msra.mxu0 0.0
      %1815 = vmatprep.subr.mxu0 0.0
      %1816 = vmatpush1.msra.mxu0 0.0
      %1817 = vmatprep.subr.mxu0 0.0
      %1818 = vmatpush1.msra.mxu0 0.0
      %1819 = vmatprep.subr.mxu0 0.0
      %1820 = vmatpush1.msra.mxu0 0.0
      %1821 = vmatprep.subr.mxu0 0.0
      %1822 = vmatpush1.msra.mxu0 0.0
      %1823 = vmatprep.subr.mxu0 0.0
      %1824 = vmatpush1.msra.mxu0 0.0
      %1825 = vmatprep.subr.mxu0 0.0
      %1826 = vmatpush1.msra.mxu0 0.0
      %1827 = vmatprep.subr.mxu0 0.0
      %1828 = vmatpush1.msra.mxu0 0.0
      %1829 = vmatprep.subr.mxu0 0.0
      %1830 = vmatpush1.msra.mxu0 0.0
      %1831 = vmatprep.subr.mxu0 0.0
      %1832 = vmatpush1.msra.mxu0 0.0
      %1833 = vmatprep.subr.mxu0 0.0
      %1834 = vmatpush1.msra.mxu0 0.0
      %1835 = vmatprep.subr.mxu0 0.0
      %1836 = vmatpush1.msra.mxu0 0.0
      %1837 = vmatprep.subr.mxu0 0.0
      %1838 = vmatpush1.msra.mxu0 0.0
      %1839 = vmatprep.subr.mxu0 0.0
      %1840 = vmatpush1.msra.mxu0 0.0
      %1841 = vmatprep.subr.mxu0 0.0
      %1842 = vmatpush1.msra.mxu0 0.0
      %1843 = vmatprep.subr.mxu0 0.0
      %1844 = vmatpush1.msra.mxu0 0.0
      %1845 = vmatprep.subr.mxu0 0.0
      %1846 = vmatpush1.msra.mxu0 0.0
      %1847 = vmatprep.subr.mxu0 0.0
      %1848 = vmatpush1.msra.mxu0 0.0
      %1849 = vmatprep.subr.mxu0 0.0
      %1850 = vmatpush1.msra.mxu0 0.0
      %1851 = vmatprep.subr.mxu0 0.0
      %1852 = vmatpush1.msra.mxu0 0.0
      %1853 = vmatprep.subr.mxu0 0.0
      %1854 = vmatpush1.msra.mxu0 0.0
      %1855 = vmatprep.subr.mxu0 0.0
      %1856 = vmatpush1.msra.mxu0 0.0
      %1857 = vmatprep.subr.mxu0 0.0
      %1858 = vmatpush1.msra.mxu0 0.0
      %1859 = vmatprep.subr.mxu0 0.0
      %1860 = vmatpush1.msra.mxu0 0.0
      %1861 = vmatprep.subr.mxu0 0.0
      %1862 = vmatpush1.msra.mxu0 0.0
      %1863 = vmatprep.subr.mxu0 0.0
      %1864 = vmatpush1.msra.mxu0 0.0
      %1865 = vmatprep.subr.mxu0 0.0
      %1866 = vmatpush1.msra.mxu0 0.0
      %1867 = vmatprep.subr.mxu0 0.0
      %1868 = vmatpush1.msra.mxu0 0.0
      %1869 = vmatprep.subr.mxu0 0.0
      %1870 = vmatpush1.msra.mxu0 0.0
      %1871 = vmatprep.mubr.f32.mxu0 0.0
      %1872 = vmatmul.mubr.f32.gmra.mrb[0].mxu0 %v1784
      %v1873 = vpop.f32.mrb[0].mxu0
      %v1874 = vadd.f32 0.0, %v1873
      %v1875 = vpop.f32.mrb[0].mxu0
      %1876 = vmatprep.mubr.f32.mxu0 0.0
      %1877 = vmatmul.mubr.f32.gmra.mrb[0].mxu0 %v1787
      %v1878 = vpop.f32.mrb[0].mxu0
      %v1879 = vadd.f32 0.0, %v1878
      %v1880 = vpop.f32.mrb[0].mxu0
      %1881 = vmatprep.mubr.f32.mxu0 0.0
      %1882 = vmatmul.mubr.f32.gmra.mrb[0].mxu0 %v1790
      %v1883 = vpop.f32.mrb[0].mxu0
      %v1884 = vadd.f32 0.0, %v1883
      %v1885 = vpop.f32.mrb[0].mxu0
      %1886 = vmatprep.mubr.f32.mxu0 0.0
      %1887 = vmatmul.mubr.f32.gmra.mrb[0].mxu0 %v1793
      %v1888 = vpop.f32.mrb[0].mxu0
      %v1889 = vadd.f32 0.0, %v1888
      %v1890 = vpop.f32.mrb[0].mxu0
      %1891 = vmatprep.mubr.f32.mxu0 0.0
      %1892 = vmatmul.mubr.f32.gmra.mrb[0].mxu0 %v1796
      %v1893 = vpop.f32.mrb[0].mxu0
      %v1894 = vadd.f32 0.0, %v1893
      %v1895 = vpop.f32.mrb[0].mxu0
      %1896 = vmatprep.mubr.f32.mxu0 0.0
      %1897 = vmatmul.mubr.f32.gmra.mrb[0].mxu0 %v1799
      %v1898 = vpop.f32.mrb[0].mxu0
      %v1899 = vadd.f32 0.0, %v1898
      %v1900 = vpop.f32.mrb[0].mxu0
      %1901 = vmatprep.mubr.f32.mxu0 0.0
      %1902 = vmatmul.mubr.f32.gmra.mrb[0].mxu0 %v1802
      %v1903 = vpop.f32.mrb[0].mxu0
      %v1904 = vadd.f32 0.0, %v1903
      %v1905 = vpop.f32.mrb[0].mxu0
      %1906 = vmatprep.mubr.f32.mxu0 0.0
      %1907 = vmatmul.mubr.f32.gmra.mrb[0].mxu0 %v1805
      %v1908 = vpop.f32.mrb[0].mxu0
      %v1909 = vadd.f32 0.0, %v1908
      %v1910 = vpop.f32.mrb[0].mxu0
      %1911 = vdwg.mxu0
      %v1913 = vsel %vm993, %v1335, 0
      %v1916 = vsel %vm993, %v1340, 0
      %v1919 = vsel %vm993, %v1345, 0
      %v1922 = vsel %vm993, %v1350, 0
      %v1925 = vsel %vm993, %v1355, 0
      %v1928 = vsel %vm993, %v1360, 0
      %v1931 = vsel %vm993, %v1365, 0
      %v1934 = vsel %vm993, %v1370, 0
      %1936 = vmatprep.subr.mxu0 0.0
      %1937 = vmatpush1.msra.mxu0 %v965
      %1938 = vmatprep.subr.mxu0 0.0
      %1939 = vmatpush1.msra.mxu0 %v966
      %1940 = vmatprep.subr.mxu0 0.0
      %1941 = vmatpush1.msra.mxu0 0.0
      %1942 = vmatprep.subr.mxu0 0.0
      %1943 = vmatpush1.msra.mxu0 0.0
      %1944 = vmatprep.subr.mxu0 0.0
      %1945 = vmatpush1.msra.mxu0 0.0
      %1946 = vmatprep.subr.mxu0 0.0
      %1947 = vmatpush1.msra.mxu0 0.0
      %1948 = vmatprep.subr.mxu0 0.0
      %1949 = vmatpush1.msra.mxu0 0.0
      %1950 = vmatprep.subr.mxu0 0.0
      %1951 = vmatpush1.msra.mxu0 0.0
      %1952 = vmatprep.subr.mxu0 0.0
      %1953 = vmatpush1.msra.mxu0 0.0
      %1954 = vmatprep.subr.mxu0 0.0
      %1955 = vmatpush1.msra.mxu0 0.0
      %1956 = vmatprep.subr.mxu0 0.0
      %1957 = vmatpush1.msra.mxu0 0.0
      %1958 = vmatprep.subr.mxu0 0.0
      %1959 = vmatpush1.msra.mxu0 0.0
      %1960 = vmatprep.subr.mxu0 0.0
      %1961 = vmatpush1.msra.mxu0 0.0
      %1962 = vmatprep.subr.mxu0 0.0
      %1963 = vmatpush1.msra.mxu0 0.0
      %1964 = vmatprep.subr.mxu0 0.0
      %1965 = vmatpush1.msra.mxu0 0.0
      %1966 = vmatprep.subr.mxu0 0.0
      %1967 = vmatpush1.msra.mxu0 0.0
      %1968 = vmatprep.subr.mxu0 0.0
      %1969 = vmatpush1.msra.mxu0 0.0
      %1970 = vmatprep.subr.mxu0 0.0
      %1971 = vmatpush1.msra.mxu0 0.0
      %1972 = vmatprep.subr.mxu0 0.0
      %1973 = vmatpush1.msra.mxu0 0.0
      %1974 = vmatprep.subr.mxu0 0.0
      %1975 = vmatpush1.msra.mxu0 0.0
      %1976 = vmatprep.subr.mxu0 0.0
      %1977 = vmatpush1.msra.mxu0 0.0
      %1978 = vmatprep.subr.mxu0 0.0
      %1979 = vmatpush1.msra.mxu0 0.0
      %1980 = vmatprep.subr.mxu0 0.0
      %1981 = vmatpush1.msra.mxu0 0.0
      %1982 = vmatprep.subr.mxu0 0.0
      %1983 = vmatpush1.msra.mxu0 0.0
      %1984 = vmatprep.subr.mxu0 0.0
      %1985 = vmatpush1.msra.mxu0 0.0
      %1986 = vmatprep.subr.mxu0 0.0
      %1987 = vmatpush1.msra.mxu0 0.0
      %1988 = vmatprep.subr.mxu0 0.0
      %1989 = vmatpush1.msra.mxu0 0.0
      %1990 = vmatprep.subr.mxu0 0.0
      %1991 = vmatpush1.msra.mxu0 0.0
      %1992 = vmatprep.subr.mxu0 0.0
      %1993 = vmatpush1.msra.mxu0 0.0
      %1994 = vmatprep.subr.mxu0 0.0
      %1995 = vmatpush1.msra.mxu0 0.0
      %1996 = vmatprep.subr.mxu0 0.0
      %1997 = vmatpush1.msra.mxu0 0.0
      %1998 = vmatprep.subr.mxu0 0.0
      %1999 = vmatpush1.msra.mxu0 0.0
      %2000 = vmatprep.mubr.f32.mxu0 0.0
      %2001 = vmatmul.mubr.f32.gmra.mrb[0].mxu0 %v1913
      %v2002 = vpop.f32.mrb[0].mxu0
      %v2003 = vadd.f32 %v1874, %v2002
      %v2004 = vpop.f32.mrb[0].mxu0
      %2005 = vmatprep.mubr.f32.mxu0 0.0
      %2006 = vmatmul.mubr.f32.gmra.mrb[0].mxu0 %v1916
      %v2007 = vpop.f32.mrb[0].mxu0
      %v2008 = vadd.f32 %v1879, %v2007
      %v2009 = vpop.f32.mrb[0].mxu0
      %2010 = vmatprep.mubr.f32.mxu0 0.0
      %2011 = vmatmul.mubr.f32.gmra.mrb[0].mxu0 %v1919
      %v2012 = vpop.f32.mrb[0].mxu0
      %v2013 = vadd.f32 %v1884, %v2012
      %v2014 = vpop.f32.mrb[0].mxu0
      %2015 = vmatprep.mubr.f32.mxu0 0.0
      %2016 = vmatmul.mubr.f32.gmra.mrb[0].mxu0 %v1922
      %v2017 = vpop.f32.mrb[0].mxu0
      %v2018 = vadd.f32 %v1889, %v2017
      %v2019 = vpop.f32.mrb[0].mxu0
      %2020 = vmatprep.mubr.f32.mxu0 0.0
      %2021 = vmatmul.mubr.f32.gmra.mrb[0].mxu0 %v1925
      %v2022 = vpop.f32.mrb[0].mxu0
      %v2023 = vadd.f32 %v1894, %v2022
      %v2024 = vpop.f32.mrb[0].mxu0
      %2025 = vmatprep.mubr.f32.mxu0 0.0
      %2026 = vmatmul.mubr.f32.gmra.mrb[0].mxu0 %v1928
      %v2027 = vpop.f32.mrb[0].mxu0
      %v2028 = vadd.f32 %v1899, %v2027
      %v2029 = vpop.f32.mrb[0].mxu0
      %2030 = vmatprep.mubr.f32.mxu0 0.0
      %2031 = vmatmul.mubr.f32.gmra.mrb[0].mxu0 %v1931
      %v2032 = vpop.f32.mrb[0].mxu0
      %v2033 = vadd.f32 %v1904, %v2032
      %v2034 = vpop.f32.mrb[0].mxu0
      %2035 = vmatprep.mubr.f32.mxu0 0.0
      %2036 = vmatmul.mubr.f32.gmra.mrb[0].mxu0 %v1934
      %v2037 = vpop.f32.mrb[0].mxu0
      %v2038 = vadd.f32 %v1909, %v2037
      %v2039 = vpop.f32.mrb[0].mxu0
      %2040 = vdwg.mxu0
      %v2041 = vadd.f32 %v681, %v2003
      %v2042 = vadd.f32 %v682, %v2008
      %v2043 = vadd.f32 %v683, %v2013
      %v2044 = vadd.f32 %v684, %v2018
      %v2045 = vadd.f32 %v685, %v2023
      %v2046 = vadd.f32 %v686, %v2028
      %v2047 = vadd.f32 %v687, %v2033
      %v2048 = vadd.f32 %v688, %v2038
      %v2049 = vld [vmem:[%s9] sm:$0x1]
      %v2051 = vlaneseq
      %v2052 = vshrl.u32 %v2051, 7
      %v2053 = vsub.s32 0, %v2052
      %v2054 = vrot.slane %v2049, %v2053
      %v2056 = vadd.f32 %v2041, %v2054
      %v2057 = vadd.f32 %v2042, %v2054
      %v2058 = vadd.f32 %v2043, %v2054
      %v2059 = vadd.f32 %v2044, %v2054
      %v2060 = vadd.f32 %v2045, %v2054
      %v2061 = vadd.f32 %v2046, %v2054
      %v2062 = vadd.f32 %v2047, %v2054
      %v2063 = vadd.f32 %v2048, %v2054
      %v2064 = vld [vmem:[%s10] sm:$0x1]
      %v2065 = vld [vmem:[%s11] sm:$0x1]
      %v2066 = vsel %vm691, %v2056, 0.0
      %2067 = vadd.xlane.f32.xlu0 %v2066
      %v2068 = vpop.xlane.xlu0 %2067
      %v2069 = vsel %vm691, %v2057, 0.0
      %2070 = vadd.xlane.f32.xlu0 %v2069
      %v2071 = vpop.xlane.xlu0 %2070
      %v2072 = vsel %vm691, %v2058, 0.0
      %2073 = vadd.xlane.f32.xlu0 %v2072
      %v2074 = vpop.xlane.xlu0 %2073
      %v2075 = vsel %vm691, %v2059, 0.0
      %2076 = vadd.xlane.f32.xlu0 %v2075
      %v2077 = vpop.xlane.xlu0 %2076
      %v2078 = vsel %vm691, %v2060, 0.0
      %2079 = vadd.xlane.f32.xlu0 %v2078
      %v2080 = vpop.xlane.xlu0 %2079
      %v2081 = vsel %vm691, %v2061, 0.0
      %2082 = vadd.xlane.f32.xlu0 %v2081
      %v2083 = vpop.xlane.xlu0 %2082
      %v2084 = vsel %vm691, %v2062, 0.0
      %2085 = vadd.xlane.f32.xlu0 %v2084
      %v2086 = vpop.xlane.xlu0 %2085
      %v2087 = vsel %vm691, %v2063, 0.0
      %2088 = vadd.xlane.f32.xlu0 %v2087
      %v2089 = vpop.xlane.xlu0 %2088
      %v2090 = vmul.f32 %v2068, %v716
      %v2091 = vmul.f32 %v2071, %v716
      %v2092 = vmul.f32 %v2074, %v716
      %v2093 = vmul.f32 %v2077, %v716
      %v2094 = vmul.f32 %v2080, %v716
      %v2095 = vmul.f32 %v2083, %v716
      %v2096 = vmul.f32 %v2086, %v716
      %v2097 = vmul.f32 %v2089, %v716
      %v2098 = vsub.f32 %v2056, %v2090
      %v2099 = vsub.f32 %v2057, %v2091
      %v2100 = vsub.f32 %v2058, %v2092
      %v2101 = vsub.f32 %v2059, %v2093
      %v2102 = vsub.f32 %v2060, %v2094
      %v2103 = vsub.f32 %v2061, %v2095
      %v2104 = vsub.f32 %v2062, %v2096
      %v2105 = vsub.f32 %v2063, %v2097
      %v2106 = vmul.f32 %v2098, %v2098
      %v2107 = vmul.f32 %v2099, %v2099
      %v2108 = vmul.f32 %v2100, %v2100
      %v2109 = vmul.f32 %v2101, %v2101
      %v2110 = vmul.f32 %v2102, %v2102
      %v2111 = vmul.f32 %v2103, %v2103
      %v2112 = vmul.f32 %v2104, %v2104
      %v2113 = vmul.f32 %v2105, %v2105
      %v2114 = vsel %vm691, %v2106, 0.0
      %2115 = vadd.xlane.f32.xlu0 %v2114
      %v2116 = vpop.xlane.xlu0 %2115
      %v2117 = vsel %vm691, %v2107, 0.0
      %2118 = vadd.xlane.f32.xlu0 %v2117
      %v2119 = vpop.xlane.xlu0 %2118
      %v2120 = vsel %vm691, %v2108, 0.0
      %2121 = vadd.xlane.f32.xlu0 %v2120
      %v2122 = vpop.xlane.xlu0 %2121
      %v2123 = vsel %vm691, %v2109, 0.0
      %2124 = vadd.xlane.f32.xlu0 %v2123
      %v2125 = vpop.xlane.xlu0 %2124
      %v2126 = vsel %vm691, %v2110, 0.0
      %2127 = vadd.xlane.f32.xlu0 %v2126
      %v2128 = vpop.xlane.xlu0 %2127
      %v2129 = vsel %vm691, %v2111, 0.0
      %2130 = vadd.xlane.f32.xlu0 %v2129
      %v2131 = vpop.xlane.xlu0 %2130
      %v2132 = vsel %vm691, %v2112, 0.0
      %2133 = vadd.xlane.f32.xlu0 %v2132
      %v2134 = vpop.xlane.xlu0 %2133
      %v2135 = vsel %vm691, %v2113, 0.0
      %2136 = vadd.xlane.f32.xlu0 %v2135
      %v2137 = vpop.xlane.xlu0 %2136
      %v2138 = vmul.f32 %v2116, %v716
      %v2139 = vmul.f32 %v2119, %v716
      %v2140 = vmul.f32 %v2122, %v716
      %v2141 = vmul.f32 %v2125, %v716
      %v2142 = vmul.f32 %v2128, %v716
      %v2143 = vmul.f32 %v2131, %v716
      %v2144 = vmul.f32 %v2134, %v716
      %v2145 = vmul.f32 %v2137, %v716
      %v2146 = vadd.f32 %v2138, 1e-06
      %v2147 = vadd.f32 %v2139, 1e-06
      %v2148 = vadd.f32 %v2140, 1e-06
      %v2149 = vadd.f32 %v2141, 1e-06
      %v2150 = vadd.f32 %v2142, 1e-06
      %v2151 = vadd.f32 %v2143, 1e-06
      %v2152 = vadd.f32 %v2144, 1e-06
      %v2153 = vadd.f32 %v2145, 1e-06
      %v2154 = vrsqrt.pop %v2146
      %v2155 = vrsqrt.pop %v2147
      %v2156 = vrsqrt.pop %v2148
      %v2157 = vrsqrt.pop %v2149
      %v2158 = vrsqrt.pop %v2150
      %v2159 = vrsqrt.pop %v2151
      %v2160 = vrsqrt.pop %v2152
      %v2161 = vrsqrt.pop %v2153
      %v2162 = vmul.f32 %v2098, %v2154
      %v2163 = vmul.f32 %v2099, %v2155
      %v2164 = vmul.f32 %v2100, %v2156
      %v2165 = vmul.f32 %v2101, %v2157
      %v2166 = vmul.f32 %v2102, %v2158
      %v2167 = vmul.f32 %v2103, %v2159
      %v2168 = vmul.f32 %v2104, %v2160
      %v2169 = vmul.f32 %v2105, %v2161
      %v2171 = vlaneseq
      %v2172 = vshrl.u32 %v2171, 7
      %v2173 = vsub.s32 0, %v2172
      %v2174 = vrot.slane %v2064, %v2173
      %v2176 = vmul.f32 %v2162, %v2174
      %v2177 = vmul.f32 %v2163, %v2174
      %v2178 = vmul.f32 %v2164, %v2174
      %v2179 = vmul.f32 %v2165, %v2174
      %v2180 = vmul.f32 %v2166, %v2174
      %v2181 = vmul.f32 %v2167, %v2174
      %v2182 = vmul.f32 %v2168, %v2174
      %v2183 = vmul.f32 %v2169, %v2174
      %v2185 = vlaneseq
      %v2186 = vshrl.u32 %v2185, 7
      %v2187 = vsub.s32 0, %v2186
      %v2188 = vrot.slane %v2065, %v2187
      %v2190 = vadd.f32 %v2176, %v2188
      %v2191 = vadd.f32 %v2177, %v2188
      %v2192 = vadd.f32 %v2178, %v2188
      %v2193 = vadd.f32 %v2179, %v2188
      %v2194 = vadd.f32 %v2180, %v2188
      %v2195 = vadd.f32 %v2181, %v2188
      %v2196 = vadd.f32 %v2182, %v2188
      %v2197 = vadd.f32 %v2183, %v2188
      %v2198 = vld [vmem:[%s12] sm:$0xff]
      %v2199 = vld [vmem:[%s12 + $0x8] sm:$0xff]
      %v2200 = vld [vmem:[%s12 + $0x10] sm:$0xff]
      %v2201 = vld [vmem:[%s12 + $0x18] sm:$0xff]
      %v2202 = vld [vmem:[%s13] sm:$0x1]
      %v2204 = vlaneseq
      %v2205 = vshrl.u32 %v2204, 7
      %v2206 = vsub.s32 0, %v2205
      %v2207 = vrot.slane %v2202, %v2206
      %v2210 = vsel %vm691, %v2190, 0
      %v2213 = vsel %vm691, %v2191, 0
      %v2216 = vsel %vm691, %v2192, 0
      %v2219 = vsel %vm691, %v2193, 0
      %v2222 = vsel %vm691, %v2194, 0
      %v2225 = vsel %vm691, %v2195, 0
      %v2228 = vsel %vm691, %v2196, 0
      %v2231 = vsel %vm691, %v2197, 0
      %2233 = vmatprep.subr.mxu0 0.0
      %2234 = vmatpush1.msra.mxu0 %v2198
      %2235 = vmatprep.subr.mxu0 0.0
      %2236 = vmatpush1.msra.mxu0 %v2199
      %2237 = vmatprep.subr.mxu0 0.0
      %2238 = vmatpush1.msra.mxu0 %v2200
      %2239 = vmatprep.subr.mxu0 0.0
      %2240 = vmatpush1.msra.mxu0 %v2201
      %2241 = vmatprep.subr.mxu0 0.0
      %2242 = vmatpush1.msra.mxu0 0.0
      %2243 = vmatprep.subr.mxu0 0.0
      %2244 = vmatpush1.msra.mxu0 0.0
      %2245 = vmatprep.subr.mxu0 0.0
      %2246 = vmatpush1.msra.mxu0 0.0
      %2247 = vmatprep.subr.mxu0 0.0
      %2248 = vmatpush1.msra.mxu0 0.0
      %2249 = vmatprep.subr.mxu0 0.0
      %2250 = vmatpush1.msra.mxu0 0.0
      %2251 = vmatprep.subr.mxu0 0.0
      %2252 = vmatpush1.msra.mxu0 0.0
      %2253 = vmatprep.subr.mxu0 0.0
      %2254 = vmatpush1.msra.mxu0 0.0
      %2255 = vmatprep.subr.mxu0 0.0
      %2256 = vmatpush1.msra.mxu0 0.0
      %2257 = vmatprep.subr.mxu0 0.0
      %2258 = vmatpush1.msra.mxu0 0.0
      %2259 = vmatprep.subr.mxu0 0.0
      %2260 = vmatpush1.msra.mxu0 0.0
      %2261 = vmatprep.subr.mxu0 0.0
      %2262 = vmatpush1.msra.mxu0 0.0
      %2263 = vmatprep.subr.mxu0 0.0
      %2264 = vmatpush1.msra.mxu0 0.0
      %2265 = vmatprep.subr.mxu0 0.0
      %2266 = vmatpush1.msra.mxu0 0.0
      %2267 = vmatprep.subr.mxu0 0.0
      %2268 = vmatpush1.msra.mxu0 0.0
      %2269 = vmatprep.subr.mxu0 0.0
      %2270 = vmatpush1.msra.mxu0 0.0
      %2271 = vmatprep.subr.mxu0 0.0
      %2272 = vmatpush1.msra.mxu0 0.0
      %2273 = vmatprep.subr.mxu0 0.0
      %2274 = vmatpush1.msra.mxu0 0.0
      %2275 = vmatprep.subr.mxu0 0.0
      %2276 = vmatpush1.msra.mxu0 0.0
      %2277 = vmatprep.subr.mxu0 0.0
      %2278 = vmatpush1.msra.mxu0 0.0
      %2279 = vmatprep.subr.mxu0 0.0
      %2280 = vmatpush1.msra.mxu0 0.0
      %2281 = vmatprep.subr.mxu0 0.0
      %2282 = vmatpush1.msra.mxu0 0.0
      %2283 = vmatprep.subr.mxu0 0.0
      %2284 = vmatpush1.msra.mxu0 0.0
      %2285 = vmatprep.subr.mxu0 0.0
      %2286 = vmatpush1.msra.mxu0 0.0
      %2287 = vmatprep.subr.mxu0 0.0
      %2288 = vmatpush1.msra.mxu0 0.0
      %2289 = vmatprep.subr.mxu0 0.0
      %2290 = vmatpush1.msra.mxu0 0.0
      %2291 = vmatprep.subr.mxu0 0.0
      %2292 = vmatpush1.msra.mxu0 0.0
      %2293 = vmatprep.subr.mxu0 0.0
      %2294 = vmatpush1.msra.mxu0 0.0
      %2295 = vmatprep.subr.mxu0 0.0
      %2296 = vmatpush1.msra.mxu0 0.0
      %2297 = vmatprep.mubr.f32.mxu0 0.0
      %2298 = vmatmul.mubr.f32.gmra.mrb[0].mxu0 %v2210
      %v2299 = vpop.f32.mrb[0].mxu0
      %v2300 = vadd.f32 %v2207, %v2299
      %v2301 = vpop.f32.mrb[0].mxu0
      %2302 = vmatprep.mubr.f32.mxu0 0.0
      %2303 = vmatmul.mubr.f32.gmra.mrb[0].mxu0 %v2213
      %v2304 = vpop.f32.mrb[0].mxu0
      %v2305 = vadd.f32 %v2207, %v2304
      %v2306 = vpop.f32.mrb[0].mxu0
      %2307 = vmatprep.mubr.f32.mxu0 0.0
      %2308 = vmatmul.mubr.f32.gmra.mrb[0].mxu0 %v2216
      %v2309 = vpop.f32.mrb[0].mxu0
      %v2310 = vadd.f32 %v2207, %v2309
      %v2311 = vpop.f32.mrb[0].mxu0
      %2312 = vmatprep.mubr.f32.mxu0 0.0
      %2313 = vmatmul.mubr.f32.gmra.mrb[0].mxu0 %v2219
      %v2314 = vpop.f32.mrb[0].mxu0
      %v2315 = vadd.f32 %v2207, %v2314
      %v2316 = vpop.f32.mrb[0].mxu0
      %2317 = vmatprep.mubr.f32.mxu0 0.0
      %2318 = vmatmul.mubr.f32.gmra.mrb[0].mxu0 %v2222
      %v2319 = vpop.f32.mrb[0].mxu0
      %v2320 = vadd.f32 %v2207, %v2319
      %v2321 = vpop.f32.mrb[0].mxu0
      %2322 = vmatprep.mubr.f32.mxu0 0.0
      %2323 = vmatmul.mubr.f32.gmra.mrb[0].mxu0 %v2225
      %v2324 = vpop.f32.mrb[0].mxu0
      %v2325 = vadd.f32 %v2207, %v2324
      %v2326 = vpop.f32.mrb[0].mxu0
      %2327 = vmatprep.mubr.f32.mxu0 0.0
      %2328 = vmatmul.mubr.f32.gmra.mrb[0].mxu0 %v2228
      %v2329 = vpop.f32.mrb[0].mxu0
      %v2330 = vadd.f32 %v2207, %v2329
      %v2331 = vpop.f32.mrb[0].mxu0
      %2332 = vmatprep.mubr.f32.mxu0 0.0
      %2333 = vmatmul.mubr.f32.gmra.mrb[0].mxu0 %v2231
      %v2334 = vpop.f32.mrb[0].mxu0
      %v2335 = vadd.f32 %v2207, %v2334
      %v2336 = vpop.f32.mrb[0].mxu0
      %2337 = vdwg.mxu0
      %v2338 = vmul.f32 %v2300, 0.5
      %v2339 = vmul.f32 %v2305, 0.5
      %v2340 = vmul.f32 %v2310, 0.5
      %v2341 = vmul.f32 %v2315, 0.5
      %v2342 = vmul.f32 %v2320, 0.5
      %v2343 = vmul.f32 %v2325, 0.5
      %v2344 = vmul.f32 %v2330, 0.5
      %v2345 = vmul.f32 %v2335, 0.5
      %v2346 = vmul.f32 %v2300, 0.044715
      %v2347 = vmul.f32 %v2305, 0.044715
      %v2348 = vmul.f32 %v2310, 0.044715
      %v2349 = vmul.f32 %v2315, 0.044715
      %v2350 = vmul.f32 %v2320, 0.044715
      %v2351 = vmul.f32 %v2325, 0.044715
      %v2352 = vmul.f32 %v2330, 0.044715
      %v2353 = vmul.f32 %v2335, 0.044715
      %v2354 = vmul.f32 %v2346, %v2300
      %v2355 = vmul.f32 %v2347, %v2305
      %v2356 = vmul.f32 %v2348, %v2310
      %v2357 = vmul.f32 %v2349, %v2315
      %v2358 = vmul.f32 %v2350, %v2320
      %v2359 = vmul.f32 %v2351, %v2325
      %v2360 = vmul.f32 %v2352, %v2330
      %v2361 = vmul.f32 %v2353, %v2335
      %v2362 = vmul.f32 %v2354, %v2300
      %v2363 = vmul.f32 %v2355, %v2305
      %v2364 = vmul.f32 %v2356, %v2310
      %v2365 = vmul.f32 %v2357, %v2315
      %v2366 = vmul.f32 %v2358, %v2320
      %v2367 = vmul.f32 %v2359, %v2325
      %v2368 = vmul.f32 %v2360, %v2330
      %v2369 = vmul.f32 %v2361, %v2335
      %v2370 = vadd.f32 %v2300, %v2362
      %v2371 = vadd.f32 %v2305, %v2363
      %v2372 = vadd.f32 %v2310, %v2364
      %v2373 = vadd.f32 %v2315, %v2365
      %v2374 = vadd.f32 %v2320, %v2366
      %v2375 = vadd.f32 %v2325, %v2367
      %v2376 = vadd.f32 %v2330, %v2368
      %v2377 = vadd.f32 %v2335, %v2369
      %v2378 = vmul.f32 %v2370, 0.7978846
      %v2379 = vmul.f32 %v2371, 0.7978846
      %v2380 = vmul.f32 %v2372, 0.7978846
      %v2381 = vmul.f32 %v2373, 0.7978846
      %v2382 = vmul.f32 %v2374, 0.7978846
      %v2383 = vmul.f32 %v2375, 0.7978846
      %v2384 = vmul.f32 %v2376, 0.7978846
      %v2385 = vmul.f32 %v2377, 0.7978846
      %v2386 = vtanh.pop %v2378
      %v2387 = vtanh.pop %v2379
      %v2388 = vtanh.pop %v2380
      %v2389 = vtanh.pop %v2381
      %v2390 = vtanh.pop %v2382
      %v2391 = vtanh.pop %v2383
      %v2392 = vtanh.pop %v2384
      %v2393 = vtanh.pop %v2385
      %v2394 = vadd.f32 %v2386, 1.0
      %v2395 = vadd.f32 %v2387, 1.0
      %v2396 = vadd.f32 %v2388, 1.0
      %v2397 = vadd.f32 %v2389, 1.0
      %v2398 = vadd.f32 %v2390, 1.0
      %v2399 = vadd.f32 %v2391, 1.0
      %v2400 = vadd.f32 %v2392, 1.0
      %v2401 = vadd.f32 %v2393, 1.0
      %v2402 = vmul.f32 %v2338, %v2394
      %v2403 = vmul.f32 %v2339, %v2395
      %v2404 = vmul.f32 %v2340, %v2396
      %v2405 = vmul.f32 %v2341, %v2397
      %v2406 = vmul.f32 %v2342, %v2398
      %v2407 = vmul.f32 %v2343, %v2399
      %v2408 = vmul.f32 %v2344, %v2400
      %v2409 = vmul.f32 %v2345, %v2401
      %v2410 = vld [vmem:[%s14] sm:$0xff]
      %v2411 = vld [vmem:[%s14 + $0x8] sm:$0xff]
      %v2412 = vld [vmem:[%s14 + $0x10] sm:$0xff]
      %v2413 = vld [vmem:[%s14 + $0x18] sm:$0xff]
      %v2414 = vld [vmem:[%s14 + $0x20] sm:$0xff]
      %v2415 = vld [vmem:[%s14 + $0x28] sm:$0xff]
      %v2416 = vld [vmem:[%s14 + $0x30] sm:$0xff]
      %v2417 = vld [vmem:[%s14 + $0x38] sm:$0xff]
      %v2419 = vsel %vm1131, %v2402, 0
      %v2422 = vsel %vm1131, %v2403, 0
      %v2425 = vsel %vm1131, %v2404, 0
      %v2428 = vsel %vm1131, %v2405, 0
      %v2431 = vsel %vm1131, %v2406, 0
      %v2434 = vsel %vm1131, %v2407, 0
      %v2437 = vsel %vm1131, %v2408, 0
      %v2440 = vsel %vm1131, %v2409, 0
      %2442 = vmatprep.subr.mxu0 0.0
      %2443 = vmatpush1.msra.mxu0 %v2410
      %2444 = vmatprep.subr.mxu0 0.0
      %2445 = vmatpush1.msra.mxu0 %v2411
      %2446 = vmatprep.subr.mxu0 0.0
      %2447 = vmatpush1.msra.mxu0 %v2412
      %2448 = vmatprep.subr.mxu0 0.0
      %2449 = vmatpush1.msra.mxu0 %v2413
      %2450 = vmatprep.subr.mxu0 0.0
      %2451 = vmatpush1.msra.mxu0 %v2414
      %2452 = vmatprep.subr.mxu0 0.0
      %2453 = vmatpush1.msra.mxu0 %v2415
      %2454 = vmatprep.subr.mxu0 0.0
      %2455 = vmatpush1.msra.mxu0 %v2416
      %2456 = vmatprep.subr.mxu0 0.0
      %2457 = vmatpush1.msra.mxu0 %v2417
      %2458 = vmatprep.subr.mxu0 0.0
      %2459 = vmatpush1.msra.mxu0 0.0
      %2460 = vmatprep.subr.mxu0 0.0
      %2461 = vmatpush1.msra.mxu0 0.0
      %2462 = vmatprep.subr.mxu0 0.0
      %2463 = vmatpush1.msra.mxu0 0.0
      %2464 = vmatprep.subr.mxu0 0.0
      %2465 = vmatpush1.msra.mxu0 0.0
      %2466 = vmatprep.subr.mxu0 0.0
      %2467 = vmatpush1.msra.mxu0 0.0
      %2468 = vmatprep.subr.mxu0 0.0
      %2469 = vmatpush1.msra.mxu0 0.0
      %2470 = vmatprep.subr.mxu0 0.0
      %2471 = vmatpush1.msra.mxu0 0.0
      %2472 = vmatprep.subr.mxu0 0.0
      %2473 = vmatpush1.msra.mxu0 0.0
      %2474 = vmatprep.subr.mxu0 0.0
      %2475 = vmatpush1.msra.mxu0 0.0
      %2476 = vmatprep.subr.mxu0 0.0
      %2477 = vmatpush1.msra.mxu0 0.0
      %2478 = vmatprep.subr.mxu0 0.0
      %2479 = vmatpush1.msra.mxu0 0.0
      %2480 = vmatprep.subr.mxu0 0.0
      %2481 = vmatpush1.msra.mxu0 0.0
      %2482 = vmatprep.subr.mxu0 0.0
      %2483 = vmatpush1.msra.mxu0 0.0
      %2484 = vmatprep.subr.mxu0 0.0
      %2485 = vmatpush1.msra.mxu0 0.0
      %2486 = vmatprep.subr.mxu0 0.0
      %2487 = vmatpush1.msra.mxu0 0.0
      %2488 = vmatprep.subr.mxu0 0.0
      %2489 = vmatpush1.msra.mxu0 0.0
      %2490 = vmatprep.subr.mxu0 0.0
      %2491 = vmatpush1.msra.mxu0 0.0
      %2492 = vmatprep.subr.mxu0 0.0
      %2493 = vmatpush1.msra.mxu0 0.0
      %2494 = vmatprep.subr.mxu0 0.0
      %2495 = vmatpush1.msra.mxu0 0.0
      %2496 = vmatprep.subr.mxu0 0.0
      %2497 = vmatpush1.msra.mxu0 0.0
      %2498 = vmatprep.subr.mxu0 0.0
      %2499 = vmatpush1.msra.mxu0 0.0
      %2500 = vmatprep.subr.mxu0 0.0
      %2501 = vmatpush1.msra.mxu0 0.0
      %2502 = vmatprep.subr.mxu0 0.0
      %2503 = vmatpush1.msra.mxu0 0.0
      %2504 = vmatprep.subr.mxu0 0.0
      %2505 = vmatpush1.msra.mxu0 0.0
      %2506 = vmatprep.mubr.f32.mxu0 0.0
      %2507 = vmatmul.mubr.f32.gmra.mrb[0].mxu0 %v2419
      %v2508 = vpop.f32.mrb[0].mxu0
      %v2509 = vadd.f32 0.0, %v2508
      %v2510 = vpop.f32.mrb[0].mxu0
      %2511 = vmatprep.mubr.f32.mxu0 0.0
      %2512 = vmatmul.mubr.f32.gmra.mrb[0].mxu0 %v2422
      %v2513 = vpop.f32.mrb[0].mxu0
      %v2514 = vadd.f32 0.0, %v2513
      %v2515 = vpop.f32.mrb[0].mxu0
      %2516 = vmatprep.mubr.f32.mxu0 0.0
      %2517 = vmatmul.mubr.f32.gmra.mrb[0].mxu0 %v2425
      %v2518 = vpop.f32.mrb[0].mxu0
      %v2519 = vadd.f32 0.0, %v2518
      %v2520 = vpop.f32.mrb[0].mxu0
      %2521 = vmatprep.mubr.f32.mxu0 0.0
      %2522 = vmatmul.mubr.f32.gmra.mrb[0].mxu0 %v2428
      %v2523 = vpop.f32.mrb[0].mxu0
      %v2524 = vadd.f32 0.0, %v2523
      %v2525 = vpop.f32.mrb[0].mxu0
      %2526 = vmatprep.mubr.f32.mxu0 0.0
      %2527 = vmatmul.mubr.f32.gmra.mrb[0].mxu0 %v2431
      %v2528 = vpop.f32.mrb[0].mxu0
      %v2529 = vadd.f32 0.0, %v2528
      %v2530 = vpop.f32.mrb[0].mxu0
      %2531 = vmatprep.mubr.f32.mxu0 0.0
      %2532 = vmatmul.mubr.f32.gmra.mrb[0].mxu0 %v2434
      %v2533 = vpop.f32.mrb[0].mxu0
      %v2534 = vadd.f32 0.0, %v2533
      %v2535 = vpop.f32.mrb[0].mxu0
      %2536 = vmatprep.mubr.f32.mxu0 0.0
      %2537 = vmatmul.mubr.f32.gmra.mrb[0].mxu0 %v2437
      %v2538 = vpop.f32.mrb[0].mxu0
      %v2539 = vadd.f32 0.0, %v2538
      %v2540 = vpop.f32.mrb[0].mxu0
      %2541 = vmatprep.mubr.f32.mxu0 0.0
      %2542 = vmatmul.mubr.f32.gmra.mrb[0].mxu0 %v2440
      %v2543 = vpop.f32.mrb[0].mxu0
      %v2544 = vadd.f32 0.0, %v2543
      %v2545 = vpop.f32.mrb[0].mxu0
      %2546 = vdwg.mxu0
      %v2547 = vadd.f32 %v2056, %v2509
      %v2548 = vadd.f32 %v2057, %v2514
      %v2549 = vadd.f32 %v2058, %v2519
      %v2550 = vadd.f32 %v2059, %v2524
      %v2551 = vadd.f32 %v2060, %v2529
      %v2552 = vadd.f32 %v2061, %v2534
      %v2553 = vadd.f32 %v2062, %v2539
      %v2554 = vadd.f32 %v2063, %v2544
      %v2555 = vld [vmem:[%s15] sm:$0x1]
      %v2557 = vlaneseq
      %v2558 = vshrl.u32 %v2557, 7
      %v2559 = vsub.s32 0, %v2558
      %v2560 = vrot.slane %v2555, %v2559
      %v2562 = vadd.f32 %v2547, %v2560
      %v2563 = vadd.f32 %v2548, %v2560
      %v2564 = vadd.f32 %v2549, %v2560
      %v2565 = vadd.f32 %v2550, %v2560
      %v2566 = vadd.f32 %v2551, %v2560
      %v2567 = vadd.f32 %v2552, %v2560
      %v2568 = vadd.f32 %v2553, %v2560
      %v2569 = vadd.f32 %v2554, %v2560
      %s2570 = scalar_lea.vmem %s4, 1
      %v2571 = vld [vmem:[%s2570] sm:$0x1]
      %s2572 = scalar_lea.vmem %s5, 1
      %v2573 = vld [vmem:[%s2572] sm:$0x1]
      %v2574 = vsel %vm691, %v2562, 0.0
      %2575 = vadd.xlane.f32.xlu0 %v2574
      %v2576 = vpop.xlane.xlu0 %2575
      %v2577 = vsel %vm691, %v2563, 0.0
      %2578 = vadd.xlane.f32.xlu0 %v2577
      %v2579 = vpop.xlane.xlu0 %2578
      %v2580 = vsel %vm691, %v2564, 0.0
      %2581 = vadd.xlane.f32.xlu0 %v2580
      %v2582 = vpop.xlane.xlu0 %2581
      %v2583 = vsel %vm691, %v2565, 0.0
      %2584 = vadd.xlane.f32.xlu0 %v2583
      %v2585 = vpop.xlane.xlu0 %2584
      %v2586 = vsel %vm691, %v2566, 0.0
      %2587 = vadd.xlane.f32.xlu0 %v2586
      %v2588 = vpop.xlane.xlu0 %2587
      %v2589 = vsel %vm691, %v2567, 0.0
      %2590 = vadd.xlane.f32.xlu0 %v2589
      %v2591 = vpop.xlane.xlu0 %2590
      %v2592 = vsel %vm691, %v2568, 0.0
      %2593 = vadd.xlane.f32.xlu0 %v2592
      %v2594 = vpop.xlane.xlu0 %2593
      %v2595 = vsel %vm691, %v2569, 0.0
      %2596 = vadd.xlane.f32.xlu0 %v2595
      %v2597 = vpop.xlane.xlu0 %2596
      %v2598 = vmul.f32 %v2576, %v716
      %v2599 = vmul.f32 %v2579, %v716
      %v2600 = vmul.f32 %v2582, %v716
      %v2601 = vmul.f32 %v2585, %v716
      %v2602 = vmul.f32 %v2588, %v716
      %v2603 = vmul.f32 %v2591, %v716
      %v2604 = vmul.f32 %v2594, %v716
      %v2605 = vmul.f32 %v2597, %v716
      %v2606 = vsub.f32 %v2562, %v2598
      %v2607 = vsub.f32 %v2563, %v2599
      %v2608 = vsub.f32 %v2564, %v2600
      %v2609 = vsub.f32 %v2565, %v2601
      %v2610 = vsub.f32 %v2566, %v2602
      %v2611 = vsub.f32 %v2567, %v2603
      %v2612 = vsub.f32 %v2568, %v2604
      %v2613 = vsub.f32 %v2569, %v2605
      %v2614 = vmul.f32 %v2606, %v2606
      %v2615 = vmul.f32 %v2607, %v2607
      %v2616 = vmul.f32 %v2608, %v2608
      %v2617 = vmul.f32 %v2609, %v2609
      %v2618 = vmul.f32 %v2610, %v2610
      %v2619 = vmul.f32 %v2611, %v2611
      %v2620 = vmul.f32 %v2612, %v2612
      %v2621 = vmul.f32 %v2613, %v2613
      %v2622 = vsel %vm691, %v2614, 0.0
      %2623 = vadd.xlane.f32.xlu0 %v2622
      %v2624 = vpop.xlane.xlu0 %2623
      %v2625 = vsel %vm691, %v2615, 0.0
      %2626 = vadd.xlane.f32.xlu0 %v2625
      %v2627 = vpop.xlane.xlu0 %2626
      %v2628 = vsel %vm691, %v2616, 0.0
      %2629 = vadd.xlane.f32.xlu0 %v2628
      %v2630 = vpop.xlane.xlu0 %2629
      %v2631 = vsel %vm691, %v2617, 0.0
      %2632 = vadd.xlane.f32.xlu0 %v2631
      %v2633 = vpop.xlane.xlu0 %2632
      %v2634 = vsel %vm691, %v2618, 0.0
      %2635 = vadd.xlane.f32.xlu0 %v2634
      %v2636 = vpop.xlane.xlu0 %2635
      %v2637 = vsel %vm691, %v2619, 0.0
      %2638 = vadd.xlane.f32.xlu0 %v2637
      %v2639 = vpop.xlane.xlu0 %2638
      %v2640 = vsel %vm691, %v2620, 0.0
      %2641 = vadd.xlane.f32.xlu0 %v2640
      %v2642 = vpop.xlane.xlu0 %2641
      %v2643 = vsel %vm691, %v2621, 0.0
      %2644 = vadd.xlane.f32.xlu0 %v2643
      %v2645 = vpop.xlane.xlu0 %2644
      %v2646 = vmul.f32 %v2624, %v716
      %v2647 = vmul.f32 %v2627, %v716
      %v2648 = vmul.f32 %v2630, %v716
      %v2649 = vmul.f32 %v2633, %v716
      %v2650 = vmul.f32 %v2636, %v716
      %v2651 = vmul.f32 %v2639, %v716
      %v2652 = vmul.f32 %v2642, %v716
      %v2653 = vmul.f32 %v2645, %v716
      %v2654 = vadd.f32 %v2646, 1e-06
      %v2655 = vadd.f32 %v2647, 1e-06
      %v2656 = vadd.f32 %v2648, 1e-06
      %v2657 = vadd.f32 %v2649, 1e-06
      %v2658 = vadd.f32 %v2650, 1e-06
      %v2659 = vadd.f32 %v2651, 1e-06
      %v2660 = vadd.f32 %v2652, 1e-06
      %v2661 = vadd.f32 %v2653, 1e-06
      %v2662 = vrsqrt.pop %v2654
      %v2663 = vrsqrt.pop %v2655
      %v2664 = vrsqrt.pop %v2656
      %v2665 = vrsqrt.pop %v2657
      %v2666 = vrsqrt.pop %v2658
      %v2667 = vrsqrt.pop %v2659
      %v2668 = vrsqrt.pop %v2660
      %v2669 = vrsqrt.pop %v2661
      %v2670 = vmul.f32 %v2606, %v2662
      %v2671 = vmul.f32 %v2607, %v2663
      %v2672 = vmul.f32 %v2608, %v2664
      %v2673 = vmul.f32 %v2609, %v2665
      %v2674 = vmul.f32 %v2610, %v2666
      %v2675 = vmul.f32 %v2611, %v2667
      %v2676 = vmul.f32 %v2612, %v2668
      %v2677 = vmul.f32 %v2613, %v2669
      %v2679 = vlaneseq
      %v2680 = vshrl.u32 %v2679, 7
      %v2681 = vsub.s32 0, %v2680
      %v2682 = vrot.slane %v2571, %v2681
      %v2684 = vmul.f32 %v2670, %v2682
      %v2685 = vmul.f32 %v2671, %v2682
      %v2686 = vmul.f32 %v2672, %v2682
      %v2687 = vmul.f32 %v2673, %v2682
      %v2688 = vmul.f32 %v2674, %v2682
      %v2689 = vmul.f32 %v2675, %v2682
      %v2690 = vmul.f32 %v2676, %v2682
      %v2691 = vmul.f32 %v2677, %v2682
      %v2693 = vlaneseq
      %v2694 = vshrl.u32 %v2693, 7
      %v2695 = vsub.s32 0, %v2694
      %v2696 = vrot.slane %v2573, %v2695
      %v2698 = vadd.f32 %v2684, %v2696
      %v2699 = vadd.f32 %v2685, %v2696
      %v2700 = vadd.f32 %v2686, %v2696
      %v2701 = vadd.f32 %v2687, %v2696
      %v2702 = vadd.f32 %v2688, %v2696
      %v2703 = vadd.f32 %v2689, %v2696
      %v2704 = vadd.f32 %v2690, %v2696
      %v2705 = vadd.f32 %v2691, %v2696
      %s2706 = scalar_lea.vmem %s6, 32
      %v2707 = vld [vmem:[%s2706] sm:$0xff]
      %v2708 = vld [vmem:[%s2706 + $0x8] sm:$0xff]
      %v2709 = vld [vmem:[%s2706 + $0x10] sm:$0xff]
      %v2710 = vld [vmem:[%s2706 + $0x18] sm:$0xff]
      %s2711 = scalar_lea.vmem %s7, 1
      %v2712 = vld [vmem:[%s2711] sm:$0x1]
      %v2714 = vlaneseq
      %v2715 = vshrl.u32 %v2714, 7
      %v2716 = vsub.s32 0, %v2715
      %v2717 = vrot.slane %v2712, %v2716
      %v2720 = vsel %vm691, %v2698, 0
      %v2723 = vsel %vm691, %v2699, 0
      %v2726 = vsel %vm691, %v2700, 0
      %v2729 = vsel %vm691, %v2701, 0
      %v2732 = vsel %vm691, %v2702, 0
      %v2735 = vsel %vm691, %v2703, 0
      %v2738 = vsel %vm691, %v2704, 0
      %v2741 = vsel %vm691, %v2705, 0
      %2743 = vmatprep.subr.mxu0 0.0
      %2744 = vmatpush1.msra.mxu0 %v2707
      %2745 = vmatprep.subr.mxu0 0.0
      %2746 = vmatpush1.msra.mxu0 %v2708
      %2747 = vmatprep.subr.mxu0 0.0
      %2748 = vmatpush1.msra.mxu0 %v2709
      %2749 = vmatprep.subr.mxu0 0.0
      %2750 = vmatpush1.msra.mxu0 %v2710
      %2751 = vmatprep.subr.mxu0 0.0
      %2752 = vmatpush1.msra.mxu0 0.0
      %2753 = vmatprep.subr.mxu0 0.0
      %2754 = vmatpush1.msra.mxu0 0.0
      %2755 = vmatprep.subr.mxu0 0.0
      %2756 = vmatpush1.msra.mxu0 0.0
      %2757 = vmatprep.subr.mxu0 0.0
      %2758 = vmatpush1.msra.mxu0 0.0
      %2759 = vmatprep.subr.mxu0 0.0
      %2760 = vmatpush1.msra.mxu0 0.0
      %2761 = vmatprep.subr.mxu0 0.0
      %2762 = vmatpush1.msra.mxu0 0.0
      %2763 = vmatprep.subr.mxu0 0.0
      %2764 = vmatpush1.msra.mxu0 0.0
      %2765 = vmatprep.subr.mxu0 0.0
      %2766 = vmatpush1.msra.mxu0 0.0
      %2767 = vmatprep.subr.mxu0 0.0
      %2768 = vmatpush1.msra.mxu0 0.0
      %2769 = vmatprep.subr.mxu0 0.0
      %2770 = vmatpush1.msra.mxu0 0.0
      %2771 = vmatprep.subr.mxu0 0.0
      %2772 = vmatpush1.msra.mxu0 0.0
      %2773 = vmatprep.subr.mxu0 0.0
      %2774 = vmatpush1.msra.mxu0 0.0
      %2775 = vmatprep.subr.mxu0 0.0
      %2776 = vmatpush1.msra.mxu0 0.0
      %2777 = vmatprep.subr.mxu0 0.0
      %2778 = vmatpush1.msra.mxu0 0.0
      %2779 = vmatprep.subr.mxu0 0.0
      %2780 = vmatpush1.msra.mxu0 0.0
      %2781 = vmatprep.subr.mxu0 0.0
      %2782 = vmatpush1.msra.mxu0 0.0
      %2783 = vmatprep.subr.mxu0 0.0
      %2784 = vmatpush1.msra.mxu0 0.0
      %2785 = vmatprep.subr.mxu0 0.0
      %2786 = vmatpush1.msra.mxu0 0.0
      %2787 = vmatprep.subr.mxu0 0.0
      %2788 = vmatpush1.msra.mxu0 0.0
      %2789 = vmatprep.subr.mxu0 0.0
      %2790 = vmatpush1.msra.mxu0 0.0
      %2791 = vmatprep.subr.mxu0 0.0
      %2792 = vmatpush1.msra.mxu0 0.0
      %2793 = vmatprep.subr.mxu0 0.0
      %2794 = vmatpush1.msra.mxu0 0.0
      %2795 = vmatprep.subr.mxu0 0.0
      %2796 = vmatpush1.msra.mxu0 0.0
      %2797 = vmatprep.subr.mxu0 0.0
      %2798 = vmatpush1.msra.mxu0 0.0
      %2799 = vmatprep.subr.mxu0 0.0
      %2800 = vmatpush1.msra.mxu0 0.0
      %2801 = vmatprep.subr.mxu0 0.0
      %2802 = vmatpush1.msra.mxu0 0.0
      %2803 = vmatprep.subr.mxu0 0.0
      %2804 = vmatpush1.msra.mxu0 0.0
      %2805 = vmatprep.subr.mxu0 0.0
      %2806 = vmatpush1.msra.mxu0 0.0
      %2807 = vmatprep.mubr.f32.mxu0 0.0
      %2808 = vmatmul.mubr.f32.gmra.mrb[0].mxu0 %v2720
      %v2809 = vpop.f32.mrb[0].mxu0
      %v2810 = vadd.f32 %v2717, %v2809
      %v2811 = vpop.f32.mrb[0].mxu0
      %2812 = vmatprep.mubr.f32.mxu0 0.0
      %2813 = vmatmul.mubr.f32.gmra.mrb[0].mxu0 %v2723
      %v2814 = vpop.f32.mrb[0].mxu0
      %v2815 = vadd.f32 %v2717, %v2814
      %v2816 = vpop.f32.mrb[0].mxu0
      %2817 = vmatprep.mubr.f32.mxu0 0.0
      %2818 = vmatmul.mubr.f32.gmra.mrb[0].mxu0 %v2726
      %v2819 = vpop.f32.mrb[0].mxu0
      %v2820 = vadd.f32 %v2717, %v2819
      %v2821 = vpop.f32.mrb[0].mxu0
      %2822 = vmatprep.mubr.f32.mxu0 0.0
      %2823 = vmatmul.mubr.f32.gmra.mrb[0].mxu0 %v2729
      %v2824 = vpop.f32.mrb[0].mxu0
      %v2825 = vadd.f32 %v2717, %v2824
      %v2826 = vpop.f32.mrb[0].mxu0
      %2827 = vmatprep.mubr.f32.mxu0 0.0
      %2828 = vmatmul.mubr.f32.gmra.mrb[0].mxu0 %v2732
      %v2829 = vpop.f32.mrb[0].mxu0
      %v2830 = vadd.f32 %v2717, %v2829
      %v2831 = vpop.f32.mrb[0].mxu0
      %2832 = vmatprep.mubr.f32.mxu0 0.0
      %2833 = vmatmul.mubr.f32.gmra.mrb[0].mxu0 %v2735
      %v2834 = vpop.f32.mrb[0].mxu0
      %v2835 = vadd.f32 %v2717, %v2834
      %v2836 = vpop.f32.mrb[0].mxu0
      %2837 = vmatprep.mubr.f32.mxu0 0.0
      %2838 = vmatmul.mubr.f32.gmra.mrb[0].mxu0 %v2738
      %v2839 = vpop.f32.mrb[0].mxu0
      %v2840 = vadd.f32 %v2717, %v2839
      %v2841 = vpop.f32.mrb[0].mxu0
      %2842 = vmatprep.mubr.f32.mxu0 0.0
      %2843 = vmatmul.mubr.f32.gmra.mrb[0].mxu0 %v2741
      %v2844 = vpop.f32.mrb[0].mxu0
      %v2845 = vadd.f32 %v2717, %v2844
      %v2846 = vpop.f32.mrb[0].mxu0
      %2847 = vdwg.mxu0
      %s2848 = scalar_lea.vmem %s8, 32
      %v2849 = vld [vmem:[%s2848] sm:$0xff]
      %v2850 = vld [vmem:[%s2848 + $0x8] sm:$0xff]
      %v2851 = vld [vmem:[%s2848 + $0x10] sm:$0xff]
      %v2852 = vld [vmem:[%s2848 + $0x18] sm:$0xff]
      %2861 = vrot.lane.b32.xlu0 %v2810, 96
      %v2862 = vpop.permute.xlu0 %2861
      %2863 = vrot.lane.b32.xlu0 %v2815, 96
      %v2864 = vpop.permute.xlu0 %2863
      %2865 = vrot.lane.b32.xlu0 %v2820, 96
      %v2866 = vpop.permute.xlu0 %2865
      %2867 = vrot.lane.b32.xlu0 %v2825, 96
      %v2868 = vpop.permute.xlu0 %2867
      %2869 = vrot.lane.b32.xlu0 %v2830, 96
      %v2870 = vpop.permute.xlu0 %2869
      %2871 = vrot.lane.b32.xlu0 %v2835, 96
      %v2872 = vpop.permute.xlu0 %2871
      %2873 = vrot.lane.b32.xlu0 %v2840, 96
      %v2874 = vpop.permute.xlu0 %2873
      %2875 = vrot.lane.b32.xlu0 %v2845, 96
      %v2876 = vpop.permute.xlu0 %2875
      %v2877 = vsel %vm993, %v2810, 0
      %v2879 = vsel %vm993, %v2815, 0
      %v2881 = vsel %vm993, %v2820, 0
      %v2883 = vsel %vm993, %v2825, 0
      %v2885 = vsel %vm993, %v2830, 0
      %v2887 = vsel %vm993, %v2835, 0
      %v2889 = vsel %vm993, %v2840, 0
      %v2891 = vsel %vm993, %v2845, 0
      %v2893 = vsel %vm993, %v2862, 0
      %v2895 = vsel %vm993, %v2864, 0
      %v2897 = vsel %vm993, %v2866, 0
      %v2899 = vsel %vm993, %v2868, 0
      %v2901 = vsel %vm993, %v2870, 0
      %v2903 = vsel %vm993, %v2872, 0
      %v2905 = vsel %vm993, %v2874, 0
      %v2907 = vsel %vm993, %v2876, 0
      %2909 = vmatprep.subr.mxu0 0.0
      %2910 = vmatpush1.xpose.msra.mxu0 %v2893
      %2911 = vmatprep.subr.mxu0 0.0
      %2912 = vmatpush1.xpose.msra.mxu0 %v2895
      %2913 = vmatprep.subr.mxu0 0.0
      %2914 = vmatpush1.xpose.msra.mxu0 %v2897
      %2915 = vmatprep.subr.mxu0 0.0
      %2916 = vmatpush1.xpose.msra.mxu0 %v2899
      %2917 = vmatprep.subr.mxu0 0.0
      %2918 = vmatpush1.xpose.msra.mxu0 %v2901
      %2919 = vmatprep.subr.mxu0 0.0
      %2920 = vmatpush1.xpose.msra.mxu0 %v2903
      %2921 = vmatprep.subr.mxu0 0.0
      %2922 = vmatpush1.xpose.msra.mxu0 %v2905
      %2923 = vmatprep.subr.mxu0 0.0
      %2924 = vmatpush1.xpose.msra.mxu0 %v2907
      %2925 = vmatprep.subr.mxu0 0.0
      %2926 = vmatpush1.xpose.msra.mxu0 0.0
      %2927 = vmatprep.subr.mxu0 0.0
      %2928 = vmatpush1.xpose.msra.mxu0 0.0
      %2929 = vmatprep.subr.mxu0 0.0
      %2930 = vmatpush1.xpose.msra.mxu0 0.0
      %2931 = vmatprep.subr.mxu0 0.0
      %2932 = vmatpush1.xpose.msra.mxu0 0.0
      %2933 = vmatprep.subr.mxu0 0.0
      %2934 = vmatpush1.xpose.msra.mxu0 0.0
      %2935 = vmatprep.subr.mxu0 0.0
      %2936 = vmatpush1.xpose.msra.mxu0 0.0
      %2937 = vmatprep.subr.mxu0 0.0
      %2938 = vmatpush1.xpose.msra.mxu0 0.0
      %2939 = vmatprep.subr.mxu0 0.0
      %2940 = vmatpush1.xpose.msra.mxu0 0.0
      %2941 = vmatprep.subr.mxu0 0.0
      %2942 = vmatpush1.xpose.msra.mxu0 0.0
      %2943 = vmatprep.subr.mxu0 0.0
      %2944 = vmatpush1.xpose.msra.mxu0 0.0
      %2945 = vmatprep.subr.mxu0 0.0
      %2946 = vmatpush1.xpose.msra.mxu0 0.0
      %2947 = vmatprep.subr.mxu0 0.0
      %2948 = vmatpush1.xpose.msra.mxu0 0.0
      %2949 = vmatprep.subr.mxu0 0.0
      %2950 = vmatpush1.xpose.msra.mxu0 0.0
      %2951 = vmatprep.subr.mxu0 0.0
      %2952 = vmatpush1.xpose.msra.mxu0 0.0
      %2953 = vmatprep.subr.mxu0 0.0
      %2954 = vmatpush1.xpose.msra.mxu0 0.0
      %2955 = vmatprep.subr.mxu0 0.0
      %2956 = vmatpush1.xpose.msra.mxu0 0.0
      %2957 = vmatprep.subr.mxu0 0.0
      %2958 = vmatpush1.xpose.msra.mxu0 0.0
      %2959 = vmatprep.subr.mxu0 0.0
      %2960 = vmatpush1.xpose.msra.mxu0 0.0
      %2961 = vmatprep.subr.mxu0 0.0
      %2962 = vmatpush1.xpose.msra.mxu0 0.0
      %2963 = vmatprep.subr.mxu0 0.0
      %2964 = vmatpush1.xpose.msra.mxu0 0.0
      %2965 = vmatprep.subr.mxu0 0.0
      %2966 = vmatpush1.xpose.msra.mxu0 0.0
      %2967 = vmatprep.subr.mxu0 0.0
      %2968 = vmatpush1.xpose.msra.mxu0 0.0
      %2969 = vmatprep.subr.mxu0 0.0
      %2970 = vmatpush1.xpose.msra.mxu0 0.0
      %2971 = vmatprep.subr.mxu0 0.0
      %2972 = vmatpush1.xpose.msra.mxu0 0.0
      %2973 = vmatprep.mubr.f32.mxu0 0.0
      %2974 = vmatmul.mubr.f32.gmra.mrb[0].mxu0 %v2877
      %v2975 = vpop.f32.mrb[0].mxu0
      %v2976 = vadd.f32 0.0, %v2975
      %v2977 = vpop.f32.mrb[0].mxu0
      %2978 = vmatprep.mubr.f32.mxu0 0.0
      %2979 = vmatmul.mubr.f32.gmra.mrb[0].mxu0 %v2879
      %v2980 = vpop.f32.mrb[0].mxu0
      %v2981 = vadd.f32 0.0, %v2980
      %v2982 = vpop.f32.mrb[0].mxu0
      %2983 = vmatprep.mubr.f32.mxu0 0.0
      %2984 = vmatmul.mubr.f32.gmra.mrb[0].mxu0 %v2881
      %v2985 = vpop.f32.mrb[0].mxu0
      %v2986 = vadd.f32 0.0, %v2985
      %v2987 = vpop.f32.mrb[0].mxu0
      %2988 = vmatprep.mubr.f32.mxu0 0.0
      %2989 = vmatmul.mubr.f32.gmra.mrb[0].mxu0 %v2883
      %v2990 = vpop.f32.mrb[0].mxu0
      %v2991 = vadd.f32 0.0, %v2990
      %v2992 = vpop.f32.mrb[0].mxu0
      %2993 = vmatprep.mubr.f32.mxu0 0.0
      %2994 = vmatmul.mubr.f32.gmra.mrb[0].mxu0 %v2885
      %v2995 = vpop.f32.mrb[0].mxu0
      %v2996 = vadd.f32 0.0, %v2995
      %v2997 = vpop.f32.mrb[0].mxu0
      %2998 = vmatprep.mubr.f32.mxu0 0.0
      %2999 = vmatmul.mubr.f32.gmra.mrb[0].mxu0 %v2887
      %v3000 = vpop.f32.mrb[0].mxu0
      %v3001 = vadd.f32 0.0, %v3000
      %v3002 = vpop.f32.mrb[0].mxu0
      %3003 = vmatprep.mubr.f32.mxu0 0.0
      %3004 = vmatmul.mubr.f32.gmra.mrb[0].mxu0 %v2889
      %v3005 = vpop.f32.mrb[0].mxu0
      %v3006 = vadd.f32 0.0, %v3005
      %v3007 = vpop.f32.mrb[0].mxu0
      %3008 = vmatprep.mubr.f32.mxu0 0.0
      %3009 = vmatmul.mubr.f32.gmra.mrb[0].mxu0 %v2891
      %v3010 = vpop.f32.mrb[0].mxu0
      %v3011 = vadd.f32 0.0, %v3010
      %v3012 = vpop.f32.mrb[0].mxu0
      %3013 = vdwg.mxu0
      %v3014 = vsel %vm1131, %v2976, -inf
      %3015 = vmax.xlane.f32.xlu0 %v3014
      %v3016 = vpop.xlane.xlu0 %3015
      %v3017 = vsel %vm1131, %v2981, -inf
      %3018 = vmax.xlane.f32.xlu0 %v3017
      %v3019 = vpop.xlane.xlu0 %3018
      %v3020 = vsel %vm1131, %v2986, -inf
      %3021 = vmax.xlane.f32.xlu0 %v3020
      %v3022 = vpop.xlane.xlu0 %3021
      %v3023 = vsel %vm1131, %v2991, -inf
      %3024 = vmax.xlane.f32.xlu0 %v3023
      %v3025 = vpop.xlane.xlu0 %3024
      %v3026 = vsel %vm1131, %v2996, -inf
      %3027 = vmax.xlane.f32.xlu0 %v3026
      %v3028 = vpop.xlane.xlu0 %3027
      %v3029 = vsel %vm1131, %v3001, -inf
      %3030 = vmax.xlane.f32.xlu0 %v3029
      %v3031 = vpop.xlane.xlu0 %3030
      %v3032 = vsel %vm1131, %v3006, -inf
      %3033 = vmax.xlane.f32.xlu0 %v3032
      %v3034 = vpop.xlane.xlu0 %3033
      %v3035 = vsel %vm1131, %v3011, -inf
      %3036 = vmax.xlane.f32.xlu0 %v3035
      %v3037 = vpop.xlane.xlu0 %3036
      %v3038 = vsub.f32 %v2976, %v3016
      %v3039 = vsub.f32 %v2981, %v3019
      %v3040 = vsub.f32 %v2986, %v3022
      %v3041 = vsub.f32 %v2991, %v3025
      %v3042 = vsub.f32 %v2996, %v3028
      %v3043 = vsub.f32 %v3001, %v3031
      %v3044 = vsub.f32 %v3006, %v3034
      %v3045 = vsub.f32 %v3011, %v3037
      %v3046 = vmul.f32 %v3038, 1.442695
      %v3047 = vpow.pop %v3046
      %v3048 = vmul.f32 %v3039, 1.442695
      %v3049 = vpow.pop %v3048
      %v3050 = vmul.f32 %v3040, 1.442695
      %v3051 = vpow.pop %v3050
      %v3052 = vmul.f32 %v3041, 1.442695
      %v3053 = vpow.pop %v3052
      %v3054 = vmul.f32 %v3042, 1.442695
      %v3055 = vpow.pop %v3054
      %v3056 = vmul.f32 %v3043, 1.442695
      %v3057 = vpow.pop %v3056
      %v3058 = vmul.f32 %v3044, 1.442695
      %v3059 = vpow.pop %v3058
      %v3060 = vmul.f32 %v3045, 1.442695
      %v3061 = vpow.pop %v3060
      %v3062 = vsel %vm1131, %v3047, 0.0
      %3063 = vadd.xlane.f32.xlu0 %v3062
      %v3064 = vpop.xlane.xlu0 %3063
      %v3065 = vsel %vm1131, %v3049, 0.0
      %3066 = vadd.xlane.f32.xlu0 %v3065
      %v3067 = vpop.xlane.xlu0 %3066
      %v3068 = vsel %vm1131, %v3051, 0.0
      %3069 = vadd.xlane.f32.xlu0 %v3068
      %v3070 = vpop.xlane.xlu0 %3069
      %v3071 = vsel %vm1131, %v3053, 0.0
      %3072 = vadd.xlane.f32.xlu0 %v3071
      %v3073 = vpop.xlane.xlu0 %3072
      %v3074 = vsel %vm1131, %v3055, 0.0
      %3075 = vadd.xlane.f32.xlu0 %v3074
      %v3076 = vpop.xlane.xlu0 %3075
      %v3077 = vsel %vm1131, %v3057, 0.0
      %3078 = vadd.xlane.f32.xlu0 %v3077
      %v3079 = vpop.xlane.xlu0 %3078
      %v3080 = vsel %vm1131, %v3059, 0.0
      %3081 = vadd.xlane.f32.xlu0 %v3080
      %v3082 = vpop.xlane.xlu0 %3081
      %v3083 = vsel %vm1131, %v3061, 0.0
      %3084 = vadd.xlane.f32.xlu0 %v3083
      %v3085 = vpop.xlane.xlu0 %3084
      %v3086 = vrcp.pop %v3064
      %v3087 = vmul.f32 %v3047, %v3086
      %v3088 = vrcp.pop %v3067
      %v3089 = vmul.f32 %v3049, %v3088
      %v3090 = vrcp.pop %v3070
      %v3091 = vmul.f32 %v3051, %v3090
      %v3092 = vrcp.pop %v3073
      %v3093 = vmul.f32 %v3053, %v3092
      %v3094 = vrcp.pop %v3076
      %v3095 = vmul.f32 %v3055, %v3094
      %v3096 = vrcp.pop %v3079
      %v3097 = vmul.f32 %v3057, %v3096
      %v3098 = vrcp.pop %v3082
      %v3099 = vmul.f32 %v3059, %v3098
      %v3100 = vrcp.pop %v3085
      %v3101 = vmul.f32 %v3061, %v3100
      %3102 = vrot.lane.b32.xlu0 %v2810, 64
      %v3103 = vpop.permute.xlu0 %3102
      %3104 = vrot.lane.b32.xlu0 %v2815, 64
      %v3105 = vpop.permute.xlu0 %3104
      %3106 = vrot.lane.b32.xlu0 %v2820, 64
      %v3107 = vpop.permute.xlu0 %3106
      %3108 = vrot.lane.b32.xlu0 %v2825, 64
      %v3109 = vpop.permute.xlu0 %3108
      %3110 = vrot.lane.b32.xlu0 %v2830, 64
      %v3111 = vpop.permute.xlu0 %3110
      %3112 = vrot.lane.b32.xlu0 %v2835, 64
      %v3113 = vpop.permute.xlu0 %3112
      %3114 = vrot.lane.b32.xlu0 %v2840, 64
      %v3115 = vpop.permute.xlu0 %3114
      %3116 = vrot.lane.b32.xlu0 %v2845, 64
      %v3117 = vpop.permute.xlu0 %3116
      %v3127 = vsel %vm1131, %v3087, 0
      %v3130 = vsel %vm1131, %v3089, 0
      %v3133 = vsel %vm1131, %v3091, 0
      %v3136 = vsel %vm1131, %v3093, 0
      %v3139 = vsel %vm1131, %v3095, 0
      %v3142 = vsel %vm1131, %v3097, 0
      %v3145 = vsel %vm1131, %v3099, 0
      %v3148 = vsel %vm1131, %v3101, 0
      %3150 = vmatprep.subr.mxu0 0.0
      %3151 = vmatpush1.msra.mxu0 %v3103
      %3152 = vmatprep.subr.mxu0 0.0
      %3153 = vmatpush1.msra.mxu0 %v3105
      %3154 = vmatprep.subr.mxu0 0.0
      %3155 = vmatpush1.msra.mxu0 %v3107
      %3156 = vmatprep.subr.mxu0 0.0
      %3157 = vmatpush1.msra.mxu0 %v3109
      %3158 = vmatprep.subr.mxu0 0.0
      %3159 = vmatpush1.msra.mxu0 %v3111
      %3160 = vmatprep.subr.mxu0 0.0
      %3161 = vmatpush1.msra.mxu0 %v3113
      %3162 = vmatprep.subr.mxu0 0.0
      %3163 = vmatpush1.msra.mxu0 %v3115
      %3164 = vmatprep.subr.mxu0 0.0
      %3165 = vmatpush1.msra.mxu0 %v3117
      %3166 = vmatprep.subr.mxu0 0.0
      %3167 = vmatpush1.msra.mxu0 0.0
      %3168 = vmatprep.subr.mxu0 0.0
      %3169 = vmatpush1.msra.mxu0 0.0
      %3170 = vmatprep.subr.mxu0 0.0
      %3171 = vmatpush1.msra.mxu0 0.0
      %3172 = vmatprep.subr.mxu0 0.0
      %3173 = vmatpush1.msra.mxu0 0.0
      %3174 = vmatprep.subr.mxu0 0.0
      %3175 = vmatpush1.msra.mxu0 0.0
      %3176 = vmatprep.subr.mxu0 0.0
      %3177 = vmatpush1.msra.mxu0 0.0
      %3178 = vmatprep.subr.mxu0 0.0
      %3179 = vmatpush1.msra.mxu0 0.0
      %3180 = vmatprep.subr.mxu0 0.0
      %3181 = vmatpush1.msra.mxu0 0.0
      %3182 = vmatprep.subr.mxu0 0.0
      %3183 = vmatpush1.msra.mxu0 0.0
      %3184 = vmatprep.subr.mxu0 0.0
      %3185 = vmatpush1.msra.mxu0 0.0
      %3186 = vmatprep.subr.mxu0 0.0
      %3187 = vmatpush1.msra.mxu0 0.0
      %3188 = vmatprep.subr.mxu0 0.0
      %3189 = vmatpush1.msra.mxu0 0.0
      %3190 = vmatprep.subr.mxu0 0.0
      %3191 = vmatpush1.msra.mxu0 0.0
      %3192 = vmatprep.subr.mxu0 0.0
      %3193 = vmatpush1.msra.mxu0 0.0
      %3194 = vmatprep.subr.mxu0 0.0
      %3195 = vmatpush1.msra.mxu0 0.0
      %3196 = vmatprep.subr.mxu0 0.0
      %3197 = vmatpush1.msra.mxu0 0.0
      %3198 = vmatprep.subr.mxu0 0.0
      %3199 = vmatpush1.msra.mxu0 0.0
      %3200 = vmatprep.subr.mxu0 0.0
      %3201 = vmatpush1.msra.mxu0 0.0
      %3202 = vmatprep.subr.mxu0 0.0
      %3203 = vmatpush1.msra.mxu0 0.0
      %3204 = vmatprep.subr.mxu0 0.0
      %3205 = vmatpush1.msra.mxu0 0.0
      %3206 = vmatprep.subr.mxu0 0.0
      %3207 = vmatpush1.msra.mxu0 0.0
      %3208 = vmatprep.subr.mxu0 0.0
      %3209 = vmatpush1.msra.mxu0 0.0
      %3210 = vmatprep.subr.mxu0 0.0
      %3211 = vmatpush1.msra.mxu0 0.0
      %3212 = vmatprep.subr.mxu0 0.0
      %3213 = vmatpush1.msra.mxu0 0.0
      %3214 = vmatprep.mubr.f32.mxu0 0.0
      %3215 = vmatmul.mubr.f32.gmra.mrb[0].mxu0 %v3127
      %v3216 = vpop.f32.mrb[0].mxu0
      %v3217 = vadd.f32 0.0, %v3216
      %v3218 = vpop.f32.mrb[0].mxu0
      %3219 = vmatprep.mubr.f32.mxu0 0.0
      %3220 = vmatmul.mubr.f32.gmra.mrb[0].mxu0 %v3130
      %v3221 = vpop.f32.mrb[0].mxu0
      %v3222 = vadd.f32 0.0, %v3221
      %v3223 = vpop.f32.mrb[0].mxu0
      %3224 = vmatprep.mubr.f32.mxu0 0.0
      %3225 = vmatmul.mubr.f32.gmra.mrb[0].mxu0 %v3133
      %v3226 = vpop.f32.mrb[0].mxu0
      %v3227 = vadd.f32 0.0, %v3226
      %v3228 = vpop.f32.mrb[0].mxu0
      %3229 = vmatprep.mubr.f32.mxu0 0.0
      %3230 = vmatmul.mubr.f32.gmra.mrb[0].mxu0 %v3136
      %v3231 = vpop.f32.mrb[0].mxu0
      %v3232 = vadd.f32 0.0, %v3231
      %v3233 = vpop.f32.mrb[0].mxu0
      %3234 = vmatprep.mubr.f32.mxu0 0.0
      %3235 = vmatmul.mubr.f32.gmra.mrb[0].mxu0 %v3139
      %v3236 = vpop.f32.mrb[0].mxu0
      %v3237 = vadd.f32 0.0, %v3236
      %v3238 = vpop.f32.mrb[0].mxu0
      %3239 = vmatprep.mubr.f32.mxu0 0.0
      %3240 = vmatmul.mubr.f32.gmra.mrb[0].mxu0 %v3142
      %v3241 = vpop.f32.mrb[0].mxu0
      %v3242 = vadd.f32 0.0, %v3241
      %v3243 = vpop.f32.mrb[0].mxu0
      %3244 = vmatprep.mubr.f32.mxu0 0.0
      %3245 = vmatmul.mubr.f32.gmra.mrb[0].mxu0 %v3145
      %v3246 = vpop.f32.mrb[0].mxu0
      %v3247 = vadd.f32 0.0, %v3246
      %v3248 = vpop.f32.mrb[0].mxu0
      %3249 = vmatprep.mubr.f32.mxu0 0.0
      %3250 = vmatmul.mubr.f32.gmra.mrb[0].mxu0 %v3148
      %v3251 = vpop.f32.mrb[0].mxu0
      %v3252 = vadd.f32 0.0, %v3251
      %v3253 = vpop.f32.mrb[0].mxu0
      %3254 = vdwg.mxu0
      %3255 = vrot.lane.b32.xlu0 %v2810, 112
      %v3256 = vpop.permute.xlu0 %3255
      %3257 = vrot.lane.b32.xlu0 %v2815, 112
      %v3258 = vpop.permute.xlu0 %3257
      %3259 = vrot.lane.b32.xlu0 %v2820, 112
      %v3260 = vpop.permute.xlu0 %3259
      %3261 = vrot.lane.b32.xlu0 %v2825, 112
      %v3262 = vpop.permute.xlu0 %3261
      %3263 = vrot.lane.b32.xlu0 %v2830, 112
      %v3264 = vpop.permute.xlu0 %3263
      %3265 = vrot.lane.b32.xlu0 %v2835, 112
      %v3266 = vpop.permute.xlu0 %3265
      %3267 = vrot.lane.b32.xlu0 %v2840, 112
      %v3268 = vpop.permute.xlu0 %3267
      %3269 = vrot.lane.b32.xlu0 %v2845, 112
      %v3270 = vpop.permute.xlu0 %3269
      %3271 = vrot.lane.b32.xlu0 %v2810, 80
      %v3272 = vpop.permute.xlu0 %3271
      %3273 = vrot.lane.b32.xlu0 %v2815, 80
      %v3274 = vpop.permute.xlu0 %3273
      %3275 = vrot.lane.b32.xlu0 %v2820, 80
      %v3276 = vpop.permute.xlu0 %3275
      %3277 = vrot.lane.b32.xlu0 %v2825, 80
      %v3278 = vpop.permute.xlu0 %3277
      %3279 = vrot.lane.b32.xlu0 %v2830, 80
      %v3280 = vpop.permute.xlu0 %3279
      %3281 = vrot.lane.b32.xlu0 %v2835, 80
      %v3282 = vpop.permute.xlu0 %3281
      %3283 = vrot.lane.b32.xlu0 %v2840, 80
      %v3284 = vpop.permute.xlu0 %3283
      %3285 = vrot.lane.b32.xlu0 %v2845, 80
      %v3286 = vpop.permute.xlu0 %3285
      %v3287 = vsel %vm993, %v3256, 0
      %v3289 = vsel %vm993, %v3258, 0
      %v3291 = vsel %vm993, %v3260, 0
      %v3293 = vsel %vm993, %v3262, 0
      %v3295 = vsel %vm993, %v3264, 0
      %v3297 = vsel %vm993, %v3266, 0
      %v3299 = vsel %vm993, %v3268, 0
      %v3301 = vsel %vm993, %v3270, 0
      %v3303 = vsel %vm993, %v3272, 0
      %v3305 = vsel %vm993, %v3274, 0
      %v3307 = vsel %vm993, %v3276, 0
      %v3309 = vsel %vm993, %v3278, 0
      %v3311 = vsel %vm993, %v3280, 0
      %v3313 = vsel %vm993, %v3282, 0
      %v3315 = vsel %vm993, %v3284, 0
      %v3317 = vsel %vm993, %v3286, 0
      %3319 = vmatprep.subr.mxu0 0.0
      %3320 = vmatpush1.xpose.msra.mxu0 %v3303
      %3321 = vmatprep.subr.mxu0 0.0
      %3322 = vmatpush1.xpose.msra.mxu0 %v3305
      %3323 = vmatprep.subr.mxu0 0.0
      %3324 = vmatpush1.xpose.msra.mxu0 %v3307
      %3325 = vmatprep.subr.mxu0 0.0
      %3326 = vmatpush1.xpose.msra.mxu0 %v3309
      %3327 = vmatprep.subr.mxu0 0.0
      %3328 = vmatpush1.xpose.msra.mxu0 %v3311
      %3329 = vmatprep.subr.mxu0 0.0
      %3330 = vmatpush1.xpose.msra.mxu0 %v3313
      %3331 = vmatprep.subr.mxu0 0.0
      %3332 = vmatpush1.xpose.msra.mxu0 %v3315
      %3333 = vmatprep.subr.mxu0 0.0
      %3334 = vmatpush1.xpose.msra.mxu0 %v3317
      %3335 = vmatprep.subr.mxu0 0.0
      %3336 = vmatpush1.xpose.msra.mxu0 0.0
      %3337 = vmatprep.subr.mxu0 0.0
      %3338 = vmatpush1.xpose.msra.mxu0 0.0
      %3339 = vmatprep.subr.mxu0 0.0
      %3340 = vmatpush1.xpose.msra.mxu0 0.0
      %3341 = vmatprep.subr.mxu0 0.0
      %3342 = vmatpush1.xpose.msra.mxu0 0.0
      %3343 = vmatprep.subr.mxu0 0.0
      %3344 = vmatpush1.xpose.msra.mxu0 0.0
      %3345 = vmatprep.subr.mxu0 0.0
      %3346 = vmatpush1.xpose.msra.mxu0 0.0
      %3347 = vmatprep.subr.mxu0 0.0
      %3348 = vmatpush1.xpose.msra.mxu0 0.0
      %3349 = vmatprep.subr.mxu0 0.0
      %3350 = vmatpush1.xpose.msra.mxu0 0.0
      %3351 = vmatprep.subr.mxu0 0.0
      %3352 = vmatpush1.xpose.msra.mxu0 0.0
      %3353 = vmatprep.subr.mxu0 0.0
      %3354 = vmatpush1.xpose.msra.mxu0 0.0
      %3355 = vmatprep.subr.mxu0 0.0
      %3356 = vmatpush1.xpose.msra.mxu0 0.0
      %3357 = vmatprep.subr.mxu0 0.0
      %3358 = vmatpush1.xpose.msra.mxu0 0.0
      %3359 = vmatprep.subr.mxu0 0.0
      %3360 = vmatpush1.xpose.msra.mxu0 0.0
      %3361 = vmatprep.subr.mxu0 0.0
      %3362 = vmatpush1.xpose.msra.mxu0 0.0
      %3363 = vmatprep.subr.mxu0 0.0
      %3364 = vmatpush1.xpose.msra.mxu0 0.0
      %3365 = vmatprep.subr.mxu0 0.0
      %3366 = vmatpush1.xpose.msra.mxu0 0.0
      %3367 = vmatprep.subr.mxu0 0.0
      %3368 = vmatpush1.xpose.msra.mxu0 0.0
      %3369 = vmatprep.subr.mxu0 0.0
      %3370 = vmatpush1.xpose.msra.mxu0 0.0
      %3371 = vmatprep.subr.mxu0 0.0
      %3372 = vmatpush1.xpose.msra.mxu0 0.0
      %3373 = vmatprep.subr.mxu0 0.0
      %3374 = vmatpush1.xpose.msra.mxu0 0.0
      %3375 = vmatprep.subr.mxu0 0.0
      %3376 = vmatpush1.xpose.msra.mxu0 0.0
      %3377 = vmatprep.subr.mxu0 0.0
      %3378 = vmatpush1.xpose.msra.mxu0 0.0
      %3379 = vmatprep.subr.mxu0 0.0
      %3380 = vmatpush1.xpose.msra.mxu0 0.0
      %3381 = vmatprep.subr.mxu0 0.0
      %3382 = vmatpush1.xpose.msra.mxu0 0.0
      %3383 = vmatprep.mubr.f32.mxu0 0.0
      %3384 = vmatmul.mubr.f32.gmra.mrb[0].mxu0 %v3287
      %v3385 = vpop.f32.mrb[0].mxu0
      %v3386 = vadd.f32 0.0, %v3385
      %v3387 = vpop.f32.mrb[0].mxu0
      %3388 = vmatprep.mubr.f32.mxu0 0.0
      %3389 = vmatmul.mubr.f32.gmra.mrb[0].mxu0 %v3289
      %v3390 = vpop.f32.mrb[0].mxu0
      %v3391 = vadd.f32 0.0, %v3390
      %v3392 = vpop.f32.mrb[0].mxu0
      %3393 = vmatprep.mubr.f32.mxu0 0.0
      %3394 = vmatmul.mubr.f32.gmra.mrb[0].mxu0 %v3291
      %v3395 = vpop.f32.mrb[0].mxu0
      %v3396 = vadd.f32 0.0, %v3395
      %v3397 = vpop.f32.mrb[0].mxu0
      %3398 = vmatprep.mubr.f32.mxu0 0.0
      %3399 = vmatmul.mubr.f32.gmra.mrb[0].mxu0 %v3293
      %v3400 = vpop.f32.mrb[0].mxu0
      %v3401 = vadd.f32 0.0, %v3400
      %v3402 = vpop.f32.mrb[0].mxu0
      %3403 = vmatprep.mubr.f32.mxu0 0.0
      %3404 = vmatmul.mubr.f32.gmra.mrb[0].mxu0 %v3295
      %v3405 = vpop.f32.mrb[0].mxu0
      %v3406 = vadd.f32 0.0, %v3405
      %v3407 = vpop.f32.mrb[0].mxu0
      %3408 = vmatprep.mubr.f32.mxu0 0.0
      %3409 = vmatmul.mubr.f32.gmra.mrb[0].mxu0 %v3297
      %v3410 = vpop.f32.mrb[0].mxu0
      %v3411 = vadd.f32 0.0, %v3410
      %v3412 = vpop.f32.mrb[0].mxu0
      %3413 = vmatprep.mubr.f32.mxu0 0.0
      %3414 = vmatmul.mubr.f32.gmra.mrb[0].mxu0 %v3299
      %v3415 = vpop.f32.mrb[0].mxu0
      %v3416 = vadd.f32 0.0, %v3415
      %v3417 = vpop.f32.mrb[0].mxu0
      %3418 = vmatprep.mubr.f32.mxu0 0.0
      %3419 = vmatmul.mubr.f32.gmra.mrb[0].mxu0 %v3301
      %v3420 = vpop.f32.mrb[0].mxu0
      %v3421 = vadd.f32 0.0, %v3420
      %v3422 = vpop.f32.mrb[0].mxu0
      %3423 = vdwg.mxu0
      %v3424 = vsel %vm1131, %v3386, -inf
      %3425 = vmax.xlane.f32.xlu0 %v3424
      %v3426 = vpop.xlane.xlu0 %3425
      %v3427 = vsel %vm1131, %v3391, -inf
      %3428 = vmax.xlane.f32.xlu0 %v3427
      %v3429 = vpop.xlane.xlu0 %3428
      %v3430 = vsel %vm1131, %v3396, -inf
      %3431 = vmax.xlane.f32.xlu0 %v3430
      %v3432 = vpop.xlane.xlu0 %3431
      %v3433 = vsel %vm1131, %v3401, -inf
      %3434 = vmax.xlane.f32.xlu0 %v3433
      %v3435 = vpop.xlane.xlu0 %3434
      %v3436 = vsel %vm1131, %v3406, -inf
      %3437 = vmax.xlane.f32.xlu0 %v3436
      %v3438 = vpop.xlane.xlu0 %3437
      %v3439 = vsel %vm1131, %v3411, -inf
      %3440 = vmax.xlane.f32.xlu0 %v3439
      %v3441 = vpop.xlane.xlu0 %3440
      %v3442 = vsel %vm1131, %v3416, -inf
      %3443 = vmax.xlane.f32.xlu0 %v3442
      %v3444 = vpop.xlane.xlu0 %3443
      %v3445 = vsel %vm1131, %v3421, -inf
      %3446 = vmax.xlane.f32.xlu0 %v3445
      %v3447 = vpop.xlane.xlu0 %3446
      %v3448 = vsub.f32 %v3386, %v3426
      %v3449 = vsub.f32 %v3391, %v3429
      %v3450 = vsub.f32 %v3396, %v3432
      %v3451 = vsub.f32 %v3401, %v3435
      %v3452 = vsub.f32 %v3406, %v3438
      %v3453 = vsub.f32 %v3411, %v3441
      %v3454 = vsub.f32 %v3416, %v3444
      %v3455 = vsub.f32 %v3421, %v3447
      %v3456 = vmul.f32 %v3448, 1.442695
      %v3457 = vpow.pop %v3456
      %v3458 = vmul.f32 %v3449, 1.442695
      %v3459 = vpow.pop %v3458
      %v3460 = vmul.f32 %v3450, 1.442695
      %v3461 = vpow.pop %v3460
      %v3462 = vmul.f32 %v3451, 1.442695
      %v3463 = vpow.pop %v3462
      %v3464 = vmul.f32 %v3452, 1.442695
      %v3465 = vpow.pop %v3464
      %v3466 = vmul.f32 %v3453, 1.442695
      %v3467 = vpow.pop %v3466
      %v3468 = vmul.f32 %v3454, 1.442695
      %v3469 = vpow.pop %v3468
      %v3470 = vmul.f32 %v3455, 1.442695
      %v3471 = vpow.pop %v3470
      %v3472 = vsel %vm1131, %v3457, 0.0
      %3473 = vadd.xlane.f32.xlu0 %v3472
      %v3474 = vpop.xlane.xlu0 %3473
      %v3475 = vsel %vm1131, %v3459, 0.0
      %3476 = vadd.xlane.f32.xlu0 %v3475
      %v3477 = vpop.xlane.xlu0 %3476
      %v3478 = vsel %vm1131, %v3461, 0.0
      %3479 = vadd.xlane.f32.xlu0 %v3478
      %v3480 = vpop.xlane.xlu0 %3479
      %v3481 = vsel %vm1131, %v3463, 0.0
      %3482 = vadd.xlane.f32.xlu0 %v3481
      %v3483 = vpop.xlane.xlu0 %3482
      %v3484 = vsel %vm1131, %v3465, 0.0
      %3485 = vadd.xlane.f32.xlu0 %v3484
      %v3486 = vpop.xlane.xlu0 %3485
      %v3487 = vsel %vm1131, %v3467, 0.0
      %3488 = vadd.xlane.f32.xlu0 %v3487
      %v3489 = vpop.xlane.xlu0 %3488
      %v3490 = vsel %vm1131, %v3469, 0.0
      %3491 = vadd.xlane.f32.xlu0 %v3490
      %v3492 = vpop.xlane.xlu0 %3491
      %v3493 = vsel %vm1131, %v3471, 0.0
      %3494 = vadd.xlane.f32.xlu0 %v3493
      %v3495 = vpop.xlane.xlu0 %3494
      %v3496 = vrcp.pop %v3474
      %v3497 = vmul.f32 %v3457, %v3496
      %v3498 = vrcp.pop %v3477
      %v3499 = vmul.f32 %v3459, %v3498
      %v3500 = vrcp.pop %v3480
      %v3501 = vmul.f32 %v3461, %v3500
      %v3502 = vrcp.pop %v3483
      %v3503 = vmul.f32 %v3463, %v3502
      %v3504 = vrcp.pop %v3486
      %v3505 = vmul.f32 %v3465, %v3504
      %v3506 = vrcp.pop %v3489
      %v3507 = vmul.f32 %v3467, %v3506
      %v3508 = vrcp.pop %v3492
      %v3509 = vmul.f32 %v3469, %v3508
      %v3510 = vrcp.pop %v3495
      %v3511 = vmul.f32 %v3471, %v3510
      %3512 = vrot.lane.b32.xlu0 %v2810, 48
      %v3513 = vpop.permute.xlu0 %3512
      %3514 = vrot.lane.b32.xlu0 %v2815, 48
      %v3515 = vpop.permute.xlu0 %3514
      %3516 = vrot.lane.b32.xlu0 %v2820, 48
      %v3517 = vpop.permute.xlu0 %3516
      %3518 = vrot.lane.b32.xlu0 %v2825, 48
      %v3519 = vpop.permute.xlu0 %3518
      %3520 = vrot.lane.b32.xlu0 %v2830, 48
      %v3521 = vpop.permute.xlu0 %3520
      %3522 = vrot.lane.b32.xlu0 %v2835, 48
      %v3523 = vpop.permute.xlu0 %3522
      %3524 = vrot.lane.b32.xlu0 %v2840, 48
      %v3525 = vpop.permute.xlu0 %3524
      %3526 = vrot.lane.b32.xlu0 %v2845, 48
      %v3527 = vpop.permute.xlu0 %3526
      %v3537 = vsel %vm1131, %v3497, 0
      %v3540 = vsel %vm1131, %v3499, 0
      %v3543 = vsel %vm1131, %v3501, 0
      %v3546 = vsel %vm1131, %v3503, 0
      %v3549 = vsel %vm1131, %v3505, 0
      %v3552 = vsel %vm1131, %v3507, 0
      %v3555 = vsel %vm1131, %v3509, 0
      %v3558 = vsel %vm1131, %v3511, 0
      %3560 = vmatprep.subr.mxu0 0.0
      %3561 = vmatpush1.msra.mxu0 %v3513
      %3562 = vmatprep.subr.mxu0 0.0
      %3563 = vmatpush1.msra.mxu0 %v3515
      %3564 = vmatprep.subr.mxu0 0.0
      %3565 = vmatpush1.msra.mxu0 %v3517
      %3566 = vmatprep.subr.mxu0 0.0
      %3567 = vmatpush1.msra.mxu0 %v3519
      %3568 = vmatprep.subr.mxu0 0.0
      %3569 = vmatpush1.msra.mxu0 %v3521
      %3570 = vmatprep.subr.mxu0 0.0
      %3571 = vmatpush1.msra.mxu0 %v3523
      %3572 = vmatprep.subr.mxu0 0.0
      %3573 = vmatpush1.msra.mxu0 %v3525
      %3574 = vmatprep.subr.mxu0 0.0
      %3575 = vmatpush1.msra.mxu0 %v3527
      %3576 = vmatprep.subr.mxu0 0.0
      %3577 = vmatpush1.msra.mxu0 0.0
      %3578 = vmatprep.subr.mxu0 0.0
      %3579 = vmatpush1.msra.mxu0 0.0
      %3580 = vmatprep.subr.mxu0 0.0
      %3581 = vmatpush1.msra.mxu0 0.0
      %3582 = vmatprep.subr.mxu0 0.0
      %3583 = vmatpush1.msra.mxu0 0.0
      %3584 = vmatprep.subr.mxu0 0.0
      %3585 = vmatpush1.msra.mxu0 0.0
      %3586 = vmatprep.subr.mxu0 0.0
      %3587 = vmatpush1.msra.mxu0 0.0
      %3588 = vmatprep.subr.mxu0 0.0
      %3589 = vmatpush1.msra.mxu0 0.0
      %3590 = vmatprep.subr.mxu0 0.0
      %3591 = vmatpush1.msra.mxu0 0.0
      %3592 = vmatprep.subr.mxu0 0.0
      %3593 = vmatpush1.msra.mxu0 0.0
      %3594 = vmatprep.subr.mxu0 0.0
      %3595 = vmatpush1.msra.mxu0 0.0
      %3596 = vmatprep.subr.mxu0 0.0
      %3597 = vmatpush1.msra.mxu0 0.0
      %3598 = vmatprep.subr.mxu0 0.0
      %3599 = vmatpush1.msra.mxu0 0.0
      %3600 = vmatprep.subr.mxu0 0.0
      %3601 = vmatpush1.msra.mxu0 0.0
      %3602 = vmatprep.subr.mxu0 0.0
      %3603 = vmatpush1.msra.mxu0 0.0
      %3604 = vmatprep.subr.mxu0 0.0
      %3605 = vmatpush1.msra.mxu0 0.0
      %3606 = vmatprep.subr.mxu0 0.0
      %3607 = vmatpush1.msra.mxu0 0.0
      %3608 = vmatprep.subr.mxu0 0.0
      %3609 = vmatpush1.msra.mxu0 0.0
      %3610 = vmatprep.subr.mxu0 0.0
      %3611 = vmatpush1.msra.mxu0 0.0
      %3612 = vmatprep.subr.mxu0 0.0
      %3613 = vmatpush1.msra.mxu0 0.0
      %3614 = vmatprep.subr.mxu0 0.0
      %3615 = vmatpush1.msra.mxu0 0.0
      %3616 = vmatprep.subr.mxu0 0.0
      %3617 = vmatpush1.msra.mxu0 0.0
      %3618 = vmatprep.subr.mxu0 0.0
      %3619 = vmatpush1.msra.mxu0 0.0
      %3620 = vmatprep.subr.mxu0 0.0
      %3621 = vmatpush1.msra.mxu0 0.0
      %3622 = vmatprep.subr.mxu0 0.0
      %3623 = vmatpush1.msra.mxu0 0.0
      %3624 = vmatprep.mubr.f32.mxu0 0.0
      %3625 = vmatmul.mubr.f32.gmra.mrb[0].mxu0 %v3537
      %v3626 = vpop.f32.mrb[0].mxu0
      %v3627 = vadd.f32 0.0, %v3626
      %v3628 = vpop.f32.mrb[0].mxu0
      %3629 = vmatprep.mubr.f32.mxu0 0.0
      %3630 = vmatmul.mubr.f32.gmra.mrb[0].mxu0 %v3540
      %v3631 = vpop.f32.mrb[0].mxu0
      %v3632 = vadd.f32 0.0, %v3631
      %v3633 = vpop.f32.mrb[0].mxu0
      %3634 = vmatprep.mubr.f32.mxu0 0.0
      %3635 = vmatmul.mubr.f32.gmra.mrb[0].mxu0 %v3543
      %v3636 = vpop.f32.mrb[0].mxu0
      %v3637 = vadd.f32 0.0, %v3636
      %v3638 = vpop.f32.mrb[0].mxu0
      %3639 = vmatprep.mubr.f32.mxu0 0.0
      %3640 = vmatmul.mubr.f32.gmra.mrb[0].mxu0 %v3546
      %v3641 = vpop.f32.mrb[0].mxu0
      %v3642 = vadd.f32 0.0, %v3641
      %v3643 = vpop.f32.mrb[0].mxu0
      %3644 = vmatprep.mubr.f32.mxu0 0.0
      %3645 = vmatmul.mubr.f32.gmra.mrb[0].mxu0 %v3549
      %v3646 = vpop.f32.mrb[0].mxu0
      %v3647 = vadd.f32 0.0, %v3646
      %v3648 = vpop.f32.mrb[0].mxu0
      %3649 = vmatprep.mubr.f32.mxu0 0.0
      %3650 = vmatmul.mubr.f32.gmra.mrb[0].mxu0 %v3552
      %v3651 = vpop.f32.mrb[0].mxu0
      %v3652 = vadd.f32 0.0, %v3651
      %v3653 = vpop.f32.mrb[0].mxu0
      %3654 = vmatprep.mubr.f32.mxu0 0.0
      %3655 = vmatmul.mubr.f32.gmra.mrb[0].mxu0 %v3555
      %v3656 = vpop.f32.mrb[0].mxu0
      %v3657 = vadd.f32 0.0, %v3656
      %v3658 = vpop.f32.mrb[0].mxu0
      %3659 = vmatprep.mubr.f32.mxu0 0.0
      %3660 = vmatmul.mubr.f32.gmra.mrb[0].mxu0 %v3558
      %v3661 = vpop.f32.mrb[0].mxu0
      %v3662 = vadd.f32 0.0, %v3661
      %v3663 = vpop.f32.mrb[0].mxu0
      %3664 = vdwg.mxu0
      %v3666 = vsel %vm993, %v3627, 0
      %v3669 = vsel %vm993, %v3632, 0
      %v3672 = vsel %vm993, %v3637, 0
      %v3675 = vsel %vm993, %v3642, 0
      %v3678 = vsel %vm993, %v3647, 0
      %v3681 = vsel %vm993, %v3652, 0
      %v3684 = vsel %vm993, %v3657, 0
      %v3687 = vsel %vm993, %v3662, 0
      %3689 = vmatprep.subr.mxu0 0.0
      %3690 = vmatpush1.msra.mxu0 %v2851
      %3691 = vmatprep.subr.mxu0 0.0
      %3692 = vmatpush1.msra.mxu0 %v2852
      %3693 = vmatprep.subr.mxu0 0.0
      %3694 = vmatpush1.msra.mxu0 0.0
      %3695 = vmatprep.subr.mxu0 0.0
      %3696 = vmatpush1.msra.mxu0 0.0
      %3697 = vmatprep.subr.mxu0 0.0
      %3698 = vmatpush1.msra.mxu0 0.0
      %3699 = vmatprep.subr.mxu0 0.0
      %3700 = vmatpush1.msra.mxu0 0.0
      %3701 = vmatprep.subr.mxu0 0.0
      %3702 = vmatpush1.msra.mxu0 0.0
      %3703 = vmatprep.subr.mxu0 0.0
      %3704 = vmatpush1.msra.mxu0 0.0
      %3705 = vmatprep.subr.mxu0 0.0
      %3706 = vmatpush1.msra.mxu0 0.0
      %3707 = vmatprep.subr.mxu0 0.0
      %3708 = vmatpush1.msra.mxu0 0.0
      %3709 = vmatprep.subr.mxu0 0.0
      %3710 = vmatpush1.msra.mxu0 0.0
      %3711 = vmatprep.subr.mxu0 0.0
      %3712 = vmatpush1.msra.mxu0 0.0
      %3713 = vmatprep.subr.mxu0 0.0
      %3714 = vmatpush1.msra.mxu0 0.0
      %3715 = vmatprep.subr.mxu0 0.0
      %3716 = vmatpush1.msra.mxu0 0.0
      %3717 = vmatprep.subr.mxu0 0.0
      %3718 = vmatpush1.msra.mxu0 0.0
      %3719 = vmatprep.subr.mxu0 0.0
      %3720 = vmatpush1.msra.mxu0 0.0
      %3721 = vmatprep.subr.mxu0 0.0
      %3722 = vmatpush1.msra.mxu0 0.0
      %3723 = vmatprep.subr.mxu0 0.0
      %3724 = vmatpush1.msra.mxu0 0.0
      %3725 = vmatprep.subr.mxu0 0.0
      %3726 = vmatpush1.msra.mxu0 0.0
      %3727 = vmatprep.subr.mxu0 0.0
      %3728 = vmatpush1.msra.mxu0 0.0
      %3729 = vmatprep.subr.mxu0 0.0
      %3730 = vmatpush1.msra.mxu0 0.0
      %3731 = vmatprep.subr.mxu0 0.0
      %3732 = vmatpush1.msra.mxu0 0.0
      %3733 = vmatprep.subr.mxu0 0.0
      %3734 = vmatpush1.msra.mxu0 0.0
      %3735 = vmatprep.subr.mxu0 0.0
      %3736 = vmatpush1.msra.mxu0 0.0
      %3737 = vmatprep.subr.mxu0 0.0
      %3738 = vmatpush1.msra.mxu0 0.0
      %3739 = vmatprep.subr.mxu0 0.0
      %3740 = vmatpush1.msra.mxu0 0.0
      %3741 = vmatprep.subr.mxu0 0.0
      %3742 = vmatpush1.msra.mxu0 0.0
      %3743 = vmatprep.subr.mxu0 0.0
      %3744 = vmatpush1.msra.mxu0 0.0
      %3745 = vmatprep.subr.mxu0 0.0
      %3746 = vmatpush1.msra.mxu0 0.0
      %3747 = vmatprep.subr.mxu0 0.0
      %3748 = vmatpush1.msra.mxu0 0.0
      %3749 = vmatprep.subr.mxu0 0.0
      %3750 = vmatpush1.msra.mxu0 0.0
      %3751 = vmatprep.subr.mxu0 0.0
      %3752 = vmatpush1.msra.mxu0 0.0
      %3753 = vmatprep.mubr.f32.mxu0 0.0
      %3754 = vmatmul.mubr.f32.gmra.mrb[0].mxu0 %v3666
      %v3755 = vpop.f32.mrb[0].mxu0
      %v3756 = vadd.f32 0.0, %v3755
      %v3757 = vpop.f32.mrb[0].mxu0
      %3758 = vmatprep.mubr.f32.mxu0 0.0
      %3759 = vmatmul.mubr.f32.gmra.mrb[0].mxu0 %v3669
      %v3760 = vpop.f32.mrb[0].mxu0
      %v3761 = vadd.f32 0.0, %v3760
      %v3762 = vpop.f32.mrb[0].mxu0
      %3763 = vmatprep.mubr.f32.mxu0 0.0
      %3764 = vmatmul.mubr.f32.gmra.mrb[0].mxu0 %v3672
      %v3765 = vpop.f32.mrb[0].mxu0
      %v3766 = vadd.f32 0.0, %v3765
      %v3767 = vpop.f32.mrb[0].mxu0
      %3768 = vmatprep.mubr.f32.mxu0 0.0
      %3769 = vmatmul.mubr.f32.gmra.mrb[0].mxu0 %v3675
      %v3770 = vpop.f32.mrb[0].mxu0
      %v3771 = vadd.f32 0.0, %v3770
      %v3772 = vpop.f32.mrb[0].mxu0
      %3773 = vmatprep.mubr.f32.mxu0 0.0
      %3774 = vmatmul.mubr.f32.gmra.mrb[0].mxu0 %v3678
      %v3775 = vpop.f32.mrb[0].mxu0
      %v3776 = vadd.f32 0.0, %v3775
      %v3777 = vpop.f32.mrb[0].mxu0
      %3778 = vmatprep.mubr.f32.mxu0 0.0
      %3779 = vmatmul.mubr.f32.gmra.mrb[0].mxu0 %v3681
      %v3780 = vpop.f32.mrb[0].mxu0
      %v3781 = vadd.f32 0.0, %v3780
      %v3782 = vpop.f32.mrb[0].mxu0
      %3783 = vmatprep.mubr.f32.mxu0 0.0
      %3784 = vmatmul.mubr.f32.gmra.mrb[0].mxu0 %v3684
      %v3785 = vpop.f32.mrb[0].mxu0
      %v3786 = vadd.f32 0.0, %v3785
      %v3787 = vpop.f32.mrb[0].mxu0
      %3788 = vmatprep.mubr.f32.mxu0 0.0
      %3789 = vmatmul.mubr.f32.gmra.mrb[0].mxu0 %v3687
      %v3790 = vpop.f32.mrb[0].mxu0
      %v3791 = vadd.f32 0.0, %v3790
      %v3792 = vpop.f32.mrb[0].mxu0
      %3793 = vdwg.mxu0
      %v3795 = vsel %vm993, %v3217, 0
      %v3798 = vsel %vm993, %v3222, 0
      %v3801 = vsel %vm993, %v3227, 0
      %v3804 = vsel %vm993, %v3232, 0
      %v3807 = vsel %vm993, %v3237, 0
      %v3810 = vsel %vm993, %v3242, 0
      %v3813 = vsel %vm993, %v3247, 0
      %v3816 = vsel %vm993, %v3252, 0
      %3818 = vmatprep.subr.mxu0 0.0
      %3819 = vmatpush1.msra.mxu0 %v2849
      %3820 = vmatprep.subr.mxu0 0.0
      %3821 = vmatpush1.msra.mxu0 %v2850
      %3822 = vmatprep.subr.mxu0 0.0
      %3823 = vmatpush1.msra.mxu0 0.0
      %3824 = vmatprep.subr.mxu0 0.0
      %3825 = vmatpush1.msra.mxu0 0.0
      %3826 = vmatprep.subr.mxu0 0.0
      %3827 = vmatpush1.msra.mxu0 0.0
      %3828 = vmatprep.subr.mxu0 0.0
      %3829 = vmatpush1.msra.mxu0 0.0
      %3830 = vmatprep.subr.mxu0 0.0
      %3831 = vmatpush1.msra.mxu0 0.0
      %3832 = vmatprep.subr.mxu0 0.0
      %3833 = vmatpush1.msra.mxu0 0.0
      %3834 = vmatprep.subr.mxu0 0.0
      %3835 = vmatpush1.msra.mxu0 0.0
      %3836 = vmatprep.subr.mxu0 0.0
      %3837 = vmatpush1.msra.mxu0 0.0
      %3838 = vmatprep.subr.mxu0 0.0
      %3839 = vmatpush1.msra.mxu0 0.0
      %3840 = vmatprep.subr.mxu0 0.0
      %3841 = vmatpush1.msra.mxu0 0.0
      %3842 = vmatprep.subr.mxu0 0.0
      %3843 = vmatpush1.msra.mxu0 0.0
      %3844 = vmatprep.subr.mxu0 0.0
      %3845 = vmatpush1.msra.mxu0 0.0
      %3846 = vmatprep.subr.mxu0 0.0
      %3847 = vmatpush1.msra.mxu0 0.0
      %3848 = vmatprep.subr.mxu0 0.0
      %3849 = vmatpush1.msra.mxu0 0.0
      %3850 = vmatprep.subr.mxu0 0.0
      %3851 = vmatpush1.msra.mxu0 0.0
      %3852 = vmatprep.subr.mxu0 0.0
      %3853 = vmatpush1.msra.mxu0 0.0
      %3854 = vmatprep.subr.mxu0 0.0
      %3855 = vmatpush1.msra.mxu0 0.0
      %3856 = vmatprep.subr.mxu0 0.0
      %3857 = vmatpush1.msra.mxu0 0.0
      %3858 = vmatprep.subr.mxu0 0.0
      %3859 = vmatpush1.msra.mxu0 0.0
      %3860 = vmatprep.subr.mxu0 0.0
      %3861 = vmatpush1.msra.mxu0 0.0
      %3862 = vmatprep.subr.mxu0 0.0
      %3863 = vmatpush1.msra.mxu0 0.0
      %3864 = vmatprep.subr.mxu0 0.0
      %3865 = vmatpush1.msra.mxu0 0.0
      %3866 = vmatprep.subr.mxu0 0.0
      %3867 = vmatpush1.msra.mxu0 0.0
      %3868 = vmatprep.subr.mxu0 0.0
      %3869 = vmatpush1.msra.mxu0 0.0
      %3870 = vmatprep.subr.mxu0 0.0
      %3871 = vmatpush1.msra.mxu0 0.0
      %3872 = vmatprep.subr.mxu0 0.0
      %3873 = vmatpush1.msra.mxu0 0.0
      %3874 = vmatprep.subr.mxu0 0.0
      %3875 = vmatpush1.msra.mxu0 0.0
      %3876 = vmatprep.subr.mxu0 0.0
      %3877 = vmatpush1.msra.mxu0 0.0
      %3878 = vmatprep.subr.mxu0 0.0
      %3879 = vmatpush1.msra.mxu0 0.0
      %3880 = vmatprep.subr.mxu0 0.0
      %3881 = vmatpush1.msra.mxu0 0.0
      %3882 = vmatprep.mubr.f32.mxu0 0.0
      %3883 = vmatmul.mubr.f32.gmra.mrb[0].mxu0 %v3795
      %v3884 = vpop.f32.mrb[0].mxu0
      %v3885 = vadd.f32 %v3756, %v3884
      %v3886 = vpop.f32.mrb[0].mxu0
      %3887 = vmatprep.mubr.f32.mxu0 0.0
      %3888 = vmatmul.mubr.f32.gmra.mrb[0].mxu0 %v3798
      %v3889 = vpop.f32.mrb[0].mxu0
      %v3890 = vadd.f32 %v3761, %v3889
      %v3891 = vpop.f32.mrb[0].mxu0
      %3892 = vmatprep.mubr.f32.mxu0 0.0
      %3893 = vmatmul.mubr.f32.gmra.mrb[0].mxu0 %v3801
      %v3894 = vpop.f32.mrb[0].mxu0
      %v3895 = vadd.f32 %v3766, %v3894
      %v3896 = vpop.f32.mrb[0].mxu0
      %3897 = vmatprep.mubr.f32.mxu0 0.0
      %3898 = vmatmul.mubr.f32.gmra.mrb[0].mxu0 %v3804
      %v3899 = vpop.f32.mrb[0].mxu0
      %v3900 = vadd.f32 %v3771, %v3899
      %v3901 = vpop.f32.mrb[0].mxu0
      %3902 = vmatprep.mubr.f32.mxu0 0.0
      %3903 = vmatmul.mubr.f32.gmra.mrb[0].mxu0 %v3807
      %v3904 = vpop.f32.mrb[0].mxu0
      %v3905 = vadd.f32 %v3776, %v3904
      %v3906 = vpop.f32.mrb[0].mxu0
      %3907 = vmatprep.mubr.f32.mxu0 0.0
      %3908 = vmatmul.mubr.f32.gmra.mrb[0].mxu0 %v3810
      %v3909 = vpop.f32.mrb[0].mxu0
      %v3910 = vadd.f32 %v3781, %v3909
      %v3911 = vpop.f32.mrb[0].mxu0
      %3912 = vmatprep.mubr.f32.mxu0 0.0
      %3913 = vmatmul.mubr.f32.gmra.mrb[0].mxu0 %v3813
      %v3914 = vpop.f32.mrb[0].mxu0
      %v3915 = vadd.f32 %v3786, %v3914
      %v3916 = vpop.f32.mrb[0].mxu0
      %3917 = vmatprep.mubr.f32.mxu0 0.0
      %3918 = vmatmul.mubr.f32.gmra.mrb[0].mxu0 %v3816
      %v3919 = vpop.f32.mrb[0].mxu0
      %v3920 = vadd.f32 %v3791, %v3919
      %v3921 = vpop.f32.mrb[0].mxu0
      %3922 = vdwg.mxu0
      %v3923 = vadd.f32 %v2562, %v3885
      %v3924 = vadd.f32 %v2563, %v3890
      %v3925 = vadd.f32 %v2564, %v3895
      %v3926 = vadd.f32 %v2565, %v3900
      %v3927 = vadd.f32 %v2566, %v3905
      %v3928 = vadd.f32 %v2567, %v3910
      %v3929 = vadd.f32 %v2568, %v3915
      %v3930 = vadd.f32 %v2569, %v3920
      %s3931 = scalar_lea.vmem %s9, 1
      %v3932 = vld [vmem:[%s3931] sm:$0x1]
      %v3934 = vlaneseq
      %v3935 = vshrl.u32 %v3934, 7
      %v3936 = vsub.s32 0, %v3935
      %v3937 = vrot.slane %v3932, %v3936
      %v3939 = vadd.f32 %v3923, %v3937
      %v3940 = vadd.f32 %v3924, %v3937
      %v3941 = vadd.f32 %v3925, %v3937
      %v3942 = vadd.f32 %v3926, %v3937
      %v3943 = vadd.f32 %v3927, %v3937
      %v3944 = vadd.f32 %v3928, %v3937
      %v3945 = vadd.f32 %v3929, %v3937
      %v3946 = vadd.f32 %v3930, %v3937
      %s3947 = scalar_lea.vmem %s10, 1
      %v3948 = vld [vmem:[%s3947] sm:$0x1]
      %s3949 = scalar_lea.vmem %s11, 1
      %v3950 = vld [vmem:[%s3949] sm:$0x1]
      %v3951 = vsel %vm691, %v3939, 0.0
      %3952 = vadd.xlane.f32.xlu0 %v3951
      %v3953 = vpop.xlane.xlu0 %3952
      %v3954 = vsel %vm691, %v3940, 0.0
      %3955 = vadd.xlane.f32.xlu0 %v3954
      %v3956 = vpop.xlane.xlu0 %3955
      %v3957 = vsel %vm691, %v3941, 0.0
      %3958 = vadd.xlane.f32.xlu0 %v3957
      %v3959 = vpop.xlane.xlu0 %3958
      %v3960 = vsel %vm691, %v3942, 0.0
      %3961 = vadd.xlane.f32.xlu0 %v3960
      %v3962 = vpop.xlane.xlu0 %3961
      %v3963 = vsel %vm691, %v3943, 0.0
      %3964 = vadd.xlane.f32.xlu0 %v3963
      %v3965 = vpop.xlane.xlu0 %3964
      %v3966 = vsel %vm691, %v3944, 0.0
      %3967 = vadd.xlane.f32.xlu0 %v3966
      %v3968 = vpop.xlane.xlu0 %3967
      %v3969 = vsel %vm691, %v3945, 0.0
      %3970 = vadd.xlane.f32.xlu0 %v3969
      %v3971 = vpop.xlane.xlu0 %3970
      %v3972 = vsel %vm691, %v3946, 0.0
      %3973 = vadd.xlane.f32.xlu0 %v3972
      %v3974 = vpop.xlane.xlu0 %3973
      %v3975 = vmul.f32 %v3953, %v716
      %v3976 = vmul.f32 %v3956, %v716
      %v3977 = vmul.f32 %v3959, %v716
      %v3978 = vmul.f32 %v3962, %v716
      %v3979 = vmul.f32 %v3965, %v716
      %v3980 = vmul.f32 %v3968, %v716
      %v3981 = vmul.f32 %v3971, %v716
      %v3982 = vmul.f32 %v3974, %v716
      %v3983 = vsub.f32 %v3939, %v3975
      %v3984 = vsub.f32 %v3940, %v3976
      %v3985 = vsub.f32 %v3941, %v3977
      %v3986 = vsub.f32 %v3942, %v3978
      %v3987 = vsub.f32 %v3943, %v3979
      %v3988 = vsub.f32 %v3944, %v3980
      %v3989 = vsub.f32 %v3945, %v3981
      %v3990 = vsub.f32 %v3946, %v3982
      %v3991 = vmul.f32 %v3983, %v3983
      %v3992 = vmul.f32 %v3984, %v3984
      %v3993 = vmul.f32 %v3985, %v3985
      %v3994 = vmul.f32 %v3986, %v3986
      %v3995 = vmul.f32 %v3987, %v3987
      %v3996 = vmul.f32 %v3988, %v3988
      %v3997 = vmul.f32 %v3989, %v3989
      %v3998 = vmul.f32 %v3990, %v3990
      %v3999 = vsel %vm691, %v3991, 0.0
      %4000 = vadd.xlane.f32.xlu0 %v3999
      %v4001 = vpop.xlane.xlu0 %4000
      %v4002 = vsel %vm691, %v3992, 0.0
      %4003 = vadd.xlane.f32.xlu0 %v4002
      %v4004 = vpop.xlane.xlu0 %4003
      %v4005 = vsel %vm691, %v3993, 0.0
      %4006 = vadd.xlane.f32.xlu0 %v4005
      %v4007 = vpop.xlane.xlu0 %4006
      %v4008 = vsel %vm691, %v3994, 0.0
      %4009 = vadd.xlane.f32.xlu0 %v4008
      %v4010 = vpop.xlane.xlu0 %4009
      %v4011 = vsel %vm691, %v3995, 0.0
      %4012 = vadd.xlane.f32.xlu0 %v4011
      %v4013 = vpop.xlane.xlu0 %4012
      %v4014 = vsel %vm691, %v3996, 0.0
      %4015 = vadd.xlane.f32.xlu0 %v4014
      %v4016 = vpop.xlane.xlu0 %4015
      %v4017 = vsel %vm691, %v3997, 0.0
      %4018 = vadd.xlane.f32.xlu0 %v4017
      %v4019 = vpop.xlane.xlu0 %4018
      %v4020 = vsel %vm691, %v3998, 0.0
      %4021 = vadd.xlane.f32.xlu0 %v4020
      %v4022 = vpop.xlane.xlu0 %4021
      %v4023 = vmul.f32 %v4001, %v716
      %v4024 = vmul.f32 %v4004, %v716
      %v4025 = vmul.f32 %v4007, %v716
      %v4026 = vmul.f32 %v4010, %v716
      %v4027 = vmul.f32 %v4013, %v716
      %v4028 = vmul.f32 %v4016, %v716
      %v4029 = vmul.f32 %v4019, %v716
      %v4030 = vmul.f32 %v4022, %v716
      %v4031 = vadd.f32 %v4023, 1e-06
      %v4032 = vadd.f32 %v4024, 1e-06
      %v4033 = vadd.f32 %v4025, 1e-06
      %v4034 = vadd.f32 %v4026, 1e-06
      %v4035 = vadd.f32 %v4027, 1e-06
      %v4036 = vadd.f32 %v4028, 1e-06
      %v4037 = vadd.f32 %v4029, 1e-06
      %v4038 = vadd.f32 %v4030, 1e-06
      %v4039 = vrsqrt.pop %v4031
      %v4040 = vrsqrt.pop %v4032
      %v4041 = vrsqrt.pop %v4033
      %v4042 = vrsqrt.pop %v4034
      %v4043 = vrsqrt.pop %v4035
      %v4044 = vrsqrt.pop %v4036
      %v4045 = vrsqrt.pop %v4037
      %v4046 = vrsqrt.pop %v4038
      %v4047 = vmul.f32 %v3983, %v4039
      %v4048 = vmul.f32 %v3984, %v4040
      %v4049 = vmul.f32 %v3985, %v4041
      %v4050 = vmul.f32 %v3986, %v4042
      %v4051 = vmul.f32 %v3987, %v4043
      %v4052 = vmul.f32 %v3988, %v4044
      %v4053 = vmul.f32 %v3989, %v4045
      %v4054 = vmul.f32 %v3990, %v4046
      %v4056 = vlaneseq
      %v4057 = vshrl.u32 %v4056, 7
      %v4058 = vsub.s32 0, %v4057
      %v4059 = vrot.slane %v3948, %v4058
      %v4061 = vmul.f32 %v4047, %v4059
      %v4062 = vmul.f32 %v4048, %v4059
      %v4063 = vmul.f32 %v4049, %v4059
      %v4064 = vmul.f32 %v4050, %v4059
      %v4065 = vmul.f32 %v4051, %v4059
      %v4066 = vmul.f32 %v4052, %v4059
      %v4067 = vmul.f32 %v4053, %v4059
      %v4068 = vmul.f32 %v4054, %v4059
      %v4070 = vlaneseq
      %v4071 = vshrl.u32 %v4070, 7
      %v4072 = vsub.s32 0, %v4071
      %v4073 = vrot.slane %v3950, %v4072
      %v4075 = vadd.f32 %v4061, %v4073
      %v4076 = vadd.f32 %v4062, %v4073
      %v4077 = vadd.f32 %v4063, %v4073
      %v4078 = vadd.f32 %v4064, %v4073
      %v4079 = vadd.f32 %v4065, %v4073
      %v4080 = vadd.f32 %v4066, %v4073
      %v4081 = vadd.f32 %v4067, %v4073
      %v4082 = vadd.f32 %v4068, %v4073
      %s4083 = scalar_lea.vmem %s12, 32
      %v4084 = vld [vmem:[%s4083] sm:$0xff]
      %v4085 = vld [vmem:[%s4083 + $0x8] sm:$0xff]
      %v4086 = vld [vmem:[%s4083 + $0x10] sm:$0xff]
      %v4087 = vld [vmem:[%s4083 + $0x18] sm:$0xff]
      %s4088 = scalar_lea.vmem %s13, 1
      %v4089 = vld [vmem:[%s4088] sm:$0x1]
      %v4091 = vlaneseq
      %v4092 = vshrl.u32 %v4091, 7
      %v4093 = vsub.s32 0, %v4092
      %v4094 = vrot.slane %v4089, %v4093
      %v4097 = vsel %vm691, %v4075, 0
      %v4100 = vsel %vm691, %v4076, 0
      %v4103 = vsel %vm691, %v4077, 0
      %v4106 = vsel %vm691, %v4078, 0
      %v4109 = vsel %vm691, %v4079, 0
      %v4112 = vsel %vm691, %v4080, 0
      %v4115 = vsel %vm691, %v4081, 0
      %v4118 = vsel %vm691, %v4082, 0
      %4120 = vmatprep.subr.mxu0 0.0
      %4121 = vmatpush1.msra.mxu0 %v4084
      %4122 = vmatprep.subr.mxu0 0.0
      %4123 = vmatpush1.msra.mxu0 %v4085
      %4124 = vmatprep.subr.mxu0 0.0
      %4125 = vmatpush1.msra.mxu0 %v4086
      %4126 = vmatprep.subr.mxu0 0.0
      %4127 = vmatpush1.msra.mxu0 %v4087
      %4128 = vmatprep.subr.mxu0 0.0
      %4129 = vmatpush1.msra.mxu0 0.0
      %4130 = vmatprep.subr.mxu0 0.0
      %4131 = vmatpush1.msra.mxu0 0.0
      %4132 = vmatprep.subr.mxu0 0.0
      %4133 = vmatpush1.msra.mxu0 0.0
      %4134 = vmatprep.subr.mxu0 0.0
      %4135 = vmatpush1.msra.mxu0 0.0
      %4136 = vmatprep.subr.mxu0 0.0
      %4137 = vmatpush1.msra.mxu0 0.0
      %4138 = vmatprep.subr.mxu0 0.0
      %4139 = vmatpush1.msra.mxu0 0.0
      %4140 = vmatprep.subr.mxu0 0.0
      %4141 = vmatpush1.msra.mxu0 0.0
      %4142 = vmatprep.subr.mxu0 0.0
      %4143 = vmatpush1.msra.mxu0 0.0
      %4144 = vmatprep.subr.mxu0 0.0
      %4145 = vmatpush1.msra.mxu0 0.0
      %4146 = vmatprep.subr.mxu0 0.0
      %4147 = vmatpush1.msra.mxu0 0.0
      %4148 = vmatprep.subr.mxu0 0.0
      %4149 = vmatpush1.msra.mxu0 0.0
      %4150 = vmatprep.subr.mxu0 0.0
      %4151 = vmatpush1.msra.mxu0 0.0
      %4152 = vmatprep.subr.mxu0 0.0
      %4153 = vmatpush1.msra.mxu0 0.0
      %4154 = vmatprep.subr.mxu0 0.0
      %4155 = vmatpush1.msra.mxu0 0.0
      %4156 = vmatprep.subr.mxu0 0.0
      %4157 = vmatpush1.msra.mxu0 0.0
      %4158 = vmatprep.subr.mxu0 0.0
      %4159 = vmatpush1.msra.mxu0 0.0
      %4160 = vmatprep.subr.mxu0 0.0
      %4161 = vmatpush1.msra.mxu0 0.0
      %4162 = vmatprep.subr.mxu0 0.0
      %4163 = vmatpush1.msra.mxu0 0.0
      %4164 = vmatprep.subr.mxu0 0.0
      %4165 = vmatpush1.msra.mxu0 0.0
      %4166 = vmatprep.subr.mxu0 0.0
      %4167 = vmatpush1.msra.mxu0 0.0
      %4168 = vmatprep.subr.mxu0 0.0
      %4169 = vmatpush1.msra.mxu0 0.0
      %4170 = vmatprep.subr.mxu0 0.0
      %4171 = vmatpush1.msra.mxu0 0.0
      %4172 = vmatprep.subr.mxu0 0.0
      %4173 = vmatpush1.msra.mxu0 0.0
      %4174 = vmatprep.subr.mxu0 0.0
      %4175 = vmatpush1.msra.mxu0 0.0
      %4176 = vmatprep.subr.mxu0 0.0
      %4177 = vmatpush1.msra.mxu0 0.0
      %4178 = vmatprep.subr.mxu0 0.0
      %4179 = vmatpush1.msra.mxu0 0.0
      %4180 = vmatprep.subr.mxu0 0.0
      %4181 = vmatpush1.msra.mxu0 0.0
      %4182 = vmatprep.subr.mxu0 0.0
      %4183 = vmatpush1.msra.mxu0 0.0
      %4184 = vmatprep.mubr.f32.mxu0 0.0
      %4185 = vmatmul.mubr.f32.gmra.mrb[0].mxu0 %v4097
      %v4186 = vpop.f32.mrb[0].mxu0
      %v4187 = vadd.f32 %v4094, %v4186
      %v4188 = vpop.f32.mrb[0].mxu0
      %4189 = vmatprep.mubr.f32.mxu0 0.0
      %4190 = vmatmul.mubr.f32.gmra.mrb[0].mxu0 %v4100
      %v4191 = vpop.f32.mrb[0].mxu0
      %v4192 = vadd.f32 %v4094, %v4191
      %v4193 = vpop.f32.mrb[0].mxu0
      %4194 = vmatprep.mubr.f32.mxu0 0.0
      %4195 = vmatmul.mubr.f32.gmra.mrb[0].mxu0 %v4103
      %v4196 = vpop.f32.mrb[0].mxu0
      %v4197 = vadd.f32 %v4094, %v4196
      %v4198 = vpop.f32.mrb[0].mxu0
      %4199 = vmatprep.mubr.f32.mxu0 0.0
      %4200 = vmatmul.mubr.f32.gmra.mrb[0].mxu0 %v4106
      %v4201 = vpop.f32.mrb[0].mxu0
      %v4202 = vadd.f32 %v4094, %v4201
      %v4203 = vpop.f32.mrb[0].mxu0
      %4204 = vmatprep.mubr.f32.mxu0 0.0
      %4205 = vmatmul.mubr.f32.gmra.mrb[0].mxu0 %v4109
      %v4206 = vpop.f32.mrb[0].mxu0
      %v4207 = vadd.f32 %v4094, %v4206
      %v4208 = vpop.f32.mrb[0].mxu0
      %4209 = vmatprep.mubr.f32.mxu0 0.0
      %4210 = vmatmul.mubr.f32.gmra.mrb[0].mxu0 %v4112
      %v4211 = vpop.f32.mrb[0].mxu0
      %v4212 = vadd.f32 %v4094, %v4211
      %v4213 = vpop.f32.mrb[0].mxu0
      %4214 = vmatprep.mubr.f32.mxu0 0.0
      %4215 = vmatmul.mubr.f32.gmra.mrb[0].mxu0 %v4115
      %v4216 = vpop.f32.mrb[0].mxu0
      %v4217 = vadd.f32 %v4094, %v4216
      %v4218 = vpop.f32.mrb[0].mxu0
      %4219 = vmatprep.mubr.f32.mxu0 0.0
      %4220 = vmatmul.mubr.f32.gmra.mrb[0].mxu0 %v4118
      %v4221 = vpop.f32.mrb[0].mxu0
      %v4222 = vadd.f32 %v4094, %v4221
      %v4223 = vpop.f32.mrb[0].mxu0
      %4224 = vdwg.mxu0
      %v4225 = vmul.f32 %v4187, 0.5
      %v4226 = vmul.f32 %v4192, 0.5
      %v4227 = vmul.f32 %v4197, 0.5
      %v4228 = vmul.f32 %v4202, 0.5
      %v4229 = vmul.f32 %v4207, 0.5
      %v4230 = vmul.f32 %v4212, 0.5
      %v4231 = vmul.f32 %v4217, 0.5
      %v4232 = vmul.f32 %v4222, 0.5
      %v4233 = vmul.f32 %v4187, 0.044715
      %v4234 = vmul.f32 %v4192, 0.044715
      %v4235 = vmul.f32 %v4197, 0.044715
      %v4236 = vmul.f32 %v4202, 0.044715
      %v4237 = vmul.f32 %v4207, 0.044715
      %v4238 = vmul.f32 %v4212, 0.044715
      %v4239 = vmul.f32 %v4217, 0.044715
      %v4240 = vmul.f32 %v4222, 0.044715
      %v4241 = vmul.f32 %v4233, %v4187
      %v4242 = vmul.f32 %v4234, %v4192
      %v4243 = vmul.f32 %v4235, %v4197
      %v4244 = vmul.f32 %v4236, %v4202
      %v4245 = vmul.f32 %v4237, %v4207
      %v4246 = vmul.f32 %v4238, %v4212
      %v4247 = vmul.f32 %v4239, %v4217
      %v4248 = vmul.f32 %v4240, %v4222
      %v4249 = vmul.f32 %v4241, %v4187
      %v4250 = vmul.f32 %v4242, %v4192
      %v4251 = vmul.f32 %v4243, %v4197
      %v4252 = vmul.f32 %v4244, %v4202
      %v4253 = vmul.f32 %v4245, %v4207
      %v4254 = vmul.f32 %v4246, %v4212
      %v4255 = vmul.f32 %v4247, %v4217
      %v4256 = vmul.f32 %v4248, %v4222
      %v4257 = vadd.f32 %v4187, %v4249
      %v4258 = vadd.f32 %v4192, %v4250
      %v4259 = vadd.f32 %v4197, %v4251
      %v4260 = vadd.f32 %v4202, %v4252
      %v4261 = vadd.f32 %v4207, %v4253
      %v4262 = vadd.f32 %v4212, %v4254
      %v4263 = vadd.f32 %v4217, %v4255
      %v4264 = vadd.f32 %v4222, %v4256
      %v4265 = vmul.f32 %v4257, 0.7978846
      %v4266 = vmul.f32 %v4258, 0.7978846
      %v4267 = vmul.f32 %v4259, 0.7978846
      %v4268 = vmul.f32 %v4260, 0.7978846
      %v4269 = vmul.f32 %v4261, 0.7978846
      %v4270 = vmul.f32 %v4262, 0.7978846
      %v4271 = vmul.f32 %v4263, 0.7978846
      %v4272 = vmul.f32 %v4264, 0.7978846
      %v4273 = vtanh.pop %v4265
      %v4274 = vtanh.pop %v4266
      %v4275 = vtanh.pop %v4267
      %v4276 = vtanh.pop %v4268
      %v4277 = vtanh.pop %v4269
      %v4278 = vtanh.pop %v4270
      %v4279 = vtanh.pop %v4271
      %v4280 = vtanh.pop %v4272
      %v4281 = vadd.f32 %v4273, 1.0
      %v4282 = vadd.f32 %v4274, 1.0
      %v4283 = vadd.f32 %v4275, 1.0
      %v4284 = vadd.f32 %v4276, 1.0
      %v4285 = vadd.f32 %v4277, 1.0
      %v4286 = vadd.f32 %v4278, 1.0
      %v4287 = vadd.f32 %v4279, 1.0
      %v4288 = vadd.f32 %v4280, 1.0
      %v4289 = vmul.f32 %v4225, %v4281
      %v4290 = vmul.f32 %v4226, %v4282
      %v4291 = vmul.f32 %v4227, %v4283
      %v4292 = vmul.f32 %v4228, %v4284
      %v4293 = vmul.f32 %v4229, %v4285
      %v4294 = vmul.f32 %v4230, %v4286
      %v4295 = vmul.f32 %v4231, %v4287
      %v4296 = vmul.f32 %v4232, %v4288
      %s4297 = scalar_lea.vmem %s14, 64
      %v4298 = vld [vmem:[%s4297] sm:$0xff]
      %v4299 = vld [vmem:[%s4297 + $0x8] sm:$0xff]
      %v4300 = vld [vmem:[%s4297 + $0x10] sm:$0xff]
      %v4301 = vld [vmem:[%s4297 + $0x18] sm:$0xff]
      %v4302 = vld [vmem:[%s4297 + $0x20] sm:$0xff]
      %v4303 = vld [vmem:[%s4297 + $0x28] sm:$0xff]
      %v4304 = vld [vmem:[%s4297 + $0x30] sm:$0xff]
      %v4305 = vld [vmem:[%s4297 + $0x38] sm:$0xff]
      %v4307 = vsel %vm1131, %v4289, 0
      %v4310 = vsel %vm1131, %v4290, 0
      %v4313 = vsel %vm1131, %v4291, 0
      %v4316 = vsel %vm1131, %v4292, 0
      %v4319 = vsel %vm1131, %v4293, 0
      %v4322 = vsel %vm1131, %v4294, 0
      %v4325 = vsel %vm1131, %v4295, 0
      %v4328 = vsel %vm1131, %v4296, 0
      %4330 = vmatprep.subr.mxu0 0.0
      %4331 = vmatpush1.msra.mxu0 %v4298
      %4332 = vmatprep.subr.mxu0 0.0
      %4333 = vmatpush1.msra.mxu0 %v4299
      %4334 = vmatprep.subr.mxu0 0.0
      %4335 = vmatpush1.msra.mxu0 %v4300
      %4336 = vmatprep.subr.mxu0 0.0
      %4337 = vmatpush1.msra.mxu0 %v4301
      %4338 = vmatprep.subr.mxu0 0.0
      %4339 = vmatpush1.msra.mxu0 %v4302
      %4340 = vmatprep.subr.mxu0 0.0
      %4341 = vmatpush1.msra.mxu0 %v4303
      %4342 = vmatprep.subr.mxu0 0.0
      %4343 = vmatpush1.msra.mxu0 %v4304
      %4344 = vmatprep.subr.mxu0 0.0
      %4345 = vmatpush1.msra.mxu0 %v4305
      %4346 = vmatprep.subr.mxu0 0.0
      %4347 = vmatpush1.msra.mxu0 0.0
      %4348 = vmatprep.subr.mxu0 0.0
      %4349 = vmatpush1.msra.mxu0 0.0
      %4350 = vmatprep.subr.mxu0 0.0
      %4351 = vmatpush1.msra.mxu0 0.0
      %4352 = vmatprep.subr.mxu0 0.0
      %4353 = vmatpush1.msra.mxu0 0.0
      %4354 = vmatprep.subr.mxu0 0.0
      %4355 = vmatpush1.msra.mxu0 0.0
      %4356 = vmatprep.subr.mxu0 0.0
      %4357 = vmatpush1.msra.mxu0 0.0
      %4358 = vmatprep.subr.mxu0 0.0
      %4359 = vmatpush1.msra.mxu0 0.0
      %4360 = vmatprep.subr.mxu0 0.0
      %4361 = vmatpush1.msra.mxu0 0.0
      %4362 = vmatprep.subr.mxu0 0.0
      %4363 = vmatpush1.msra.mxu0 0.0
      %4364 = vmatprep.subr.mxu0 0.0
      %4365 = vmatpush1.msra.mxu0 0.0
      %4366 = vmatprep.subr.mxu0 0.0
      %4367 = vmatpush1.msra.mxu0 0.0
      %4368 = vmatprep.subr.mxu0 0.0
      %4369 = vmatpush1.msra.mxu0 0.0
      %4370 = vmatprep.subr.mxu0 0.0
      %4371 = vmatpush1.msra.mxu0 0.0
      %4372 = vmatprep.subr.mxu0 0.0
      %4373 = vmatpush1.msra.mxu0 0.0
      %4374 = vmatprep.subr.mxu0 0.0
      %4375 = vmatpush1.msra.mxu0 0.0
      %4376 = vmatprep.subr.mxu0 0.0
      %4377 = vmatpush1.msra.mxu0 0.0
      %4378 = vmatprep.subr.mxu0 0.0
      %4379 = vmatpush1.msra.mxu0 0.0
      %4380 = vmatprep.subr.mxu0 0.0
      %4381 = vmatpush1.msra.mxu0 0.0
      %4382 = vmatprep.subr.mxu0 0.0
      %4383 = vmatpush1.msra.mxu0 0.0
      %4384 = vmatprep.subr.mxu0 0.0
      %4385 = vmatpush1.msra.mxu0 0.0
      %4386 = vmatprep.subr.mxu0 0.0
      %4387 = vmatpush1.msra.mxu0 0.0
      %4388 = vmatprep.subr.mxu0 0.0
      %4389 = vmatpush1.msra.mxu0 0.0
      %4390 = vmatprep.subr.mxu0 0.0
      %4391 = vmatpush1.msra.mxu0 0.0
      %4392 = vmatprep.subr.mxu0 0.0
      %4393 = vmatpush1.msra.mxu0 0.0
      %4394 = vmatprep.mubr.f32.mxu0 0.0
      %4395 = vmatmul.mubr.f32.gmra.mrb[0].mxu0 %v4307
      %v4396 = vpop.f32.mrb[0].mxu0
      %v4397 = vadd.f32 0.0, %v4396
      %v4398 = vpop.f32.mrb[0].mxu0
      %4399 = vmatprep.mubr.f32.mxu0 0.0
      %4400 = vmatmul.mubr.f32.gmra.mrb[0].mxu0 %v4310
      %v4401 = vpop.f32.mrb[0].mxu0
      %v4402 = vadd.f32 0.0, %v4401
      %v4403 = vpop.f32.mrb[0].mxu0
      %4404 = vmatprep.mubr.f32.mxu0 0.0
      %4405 = vmatmul.mubr.f32.gmra.mrb[0].mxu0 %v4313
      %v4406 = vpop.f32.mrb[0].mxu0
      %v4407 = vadd.f32 0.0, %v4406
      %v4408 = vpop.f32.mrb[0].mxu0
      %4409 = vmatprep.mubr.f32.mxu0 0.0
      %4410 = vmatmul.mubr.f32.gmra.mrb[0].mxu0 %v4316
      %v4411 = vpop.f32.mrb[0].mxu0
      %v4412 = vadd.f32 0.0, %v4411
      %v4413 = vpop.f32.mrb[0].mxu0
      %4414 = vmatprep.mubr.f32.mxu0 0.0
      %4415 = vmatmul.mubr.f32.gmra.mrb[0].mxu0 %v4319
      %v4416 = vpop.f32.mrb[0].mxu0
      %v4417 = vadd.f32 0.0, %v4416
      %v4418 = vpop.f32.mrb[0].mxu0
      %4419 = vmatprep.mubr.f32.mxu0 0.0
      %4420 = vmatmul.mubr.f32.gmra.mrb[0].mxu0 %v4322
      %v4421 = vpop.f32.mrb[0].mxu0
      %v4422 = vadd.f32 0.0, %v4421
      %v4423 = vpop.f32.mrb[0].mxu0
      %4424 = vmatprep.mubr.f32.mxu0 0.0
      %4425 = vmatmul.mubr.f32.gmra.mrb[0].mxu0 %v4325
      %v4426 = vpop.f32.mrb[0].mxu0
      %v4427 = vadd.f32 0.0, %v4426
      %v4428 = vpop.f32.mrb[0].mxu0
      %4429 = vmatprep.mubr.f32.mxu0 0.0
      %4430 = vmatmul.mubr.f32.gmra.mrb[0].mxu0 %v4328
      %v4431 = vpop.f32.mrb[0].mxu0
      %v4432 = vadd.f32 0.0, %v4431
      %v4433 = vpop.f32.mrb[0].mxu0
      %4434 = vdwg.mxu0
      %v4435 = vadd.f32 %v3939, %v4397
      %v4436 = vadd.f32 %v3940, %v4402
      %v4437 = vadd.f32 %v3941, %v4407
      %v4438 = vadd.f32 %v3942, %v4412
      %v4439 = vadd.f32 %v3943, %v4417
      %v4440 = vadd.f32 %v3944, %v4422
      %v4441 = vadd.f32 %v3945, %v4427
      %v4442 = vadd.f32 %v3946, %v4432
      %s4443 = scalar_lea.vmem %s15, 1
      %v4444 = vld [vmem:[%s4443] sm:$0x1]
      %v4446 = vlaneseq
      %v4447 = vshrl.u32 %v4446, 7
      %v4448 = vsub.s32 0, %v4447
      %v4449 = vrot.slane %v4444, %v4448
      %v4451 = vadd.f32 %v4435, %v4449
      %v4452 = vadd.f32 %v4436, %v4449
      %v4453 = vadd.f32 %v4437, %v4449
      %v4454 = vadd.f32 %v4438, %v4449
      %v4455 = vadd.f32 %v4439, %v4449
      %v4456 = vadd.f32 %v4440, %v4449
      %v4457 = vadd.f32 %v4441, %v4449
      %v4458 = vadd.f32 %v4442, %v4449
      %4459 = vst.msk [vmem:[%s521] sm:$0xff] %vm691, %v4451
      %4460 = vst.msk [vmem:[%s521 + $0x8] sm:$0xff] %vm691, %v4452
      %4461 = vst.msk [vmem:[%s521 + $0x10] sm:$0xff] %vm691, %v4453
      %4462 = vst.msk [vmem:[%s521 + $0x18] sm:$0xff] %vm691, %v4454
      %4463 = vst.msk [vmem:[%s521 + $0x20] sm:$0xff] %vm691, %v4455
      %4464 = vst.msk [vmem:[%s521 + $0x28] sm:$0xff] %vm691, %v4456
      %4465 = vst.msk [vmem:[%s521 + $0x30] sm:$0xff] %vm691, %v4457
      %4466 = vst.msk [vmem:[%s521 + $0x38] sm:$0xff] %vm691, %v4458
      %p4467 = scmp.lt.s32.totalorder %s27, 1
      %s4468 = scalar_select %p4467, %s27, 1
      %s4469 = smul.addr %s4468, 8
      %s4470 = smul.addr %s4469, 8
      %s4471 = scalar_lea.vmem %s16, %s4470
      // Predicated region
      $region85: #{tpu_custom_call.1} parent=83 // pred_check
        %p4472 = pneg %p386
      $region86: #{tpu_custom_call.1} parent=83 // pred_check_branch
        %4474 = sbr.rel (%p4472) target = $region88
      $region87: #{tpu_custom_call.1} parent=83 // pred_region
        _
      $region88: #{tpu_custom_call.1} parent=83 // pred_fallthru
        _
    $region84: #{tpu_custom_call.1} parent=5 // pred_fallthru
      _
    %p4475 = scmp.le.s32.totalorder 2, %s22
    // Predicated region
    $region89: #{tpu_custom_call.1} parent=5 // pred_check
      %p4476 = pneg %p4475
    $region90: #{tpu_custom_call.1} parent=5 // pred_check_branch
      %4478 = sbr.rel (%p4476) target = $region92
    $region91: #{tpu_custom_call.1} parent=5 // pred_region
      %s4479 = ssub.s32 %s22, 2
      // Predicated region
      $region93: #{tpu_custom_call.1} parent=91 // pred_check
        %p4480 = pneg %p392
      $region94: #{tpu_custom_call.1} parent=91 // pred_check_branch
        %4482 = sbr.rel (%p4480) target = $region96
      $region95: #{tpu_custom_call.1} parent=91 // pred_region
        %p4483 = scmp.lt.s32.totalorder %s28, 1
        %s4484 = scalar_select %p4483, %s28, 1
        %s4485 = smul.addr %s4484, 8
        %s4486 = smul.addr %s4485, 8
        %s4487 = scalar_lea.vmem %s16, %s4486
      $region96: #{tpu_custom_call.1} parent=91 // pred_fallthru
        _
    $region92: #{tpu_custom_call.1} parent=5 // pred_fallthru
      _
  $region6: #{tpu_custom_call.1} parent=0 // loop_footer
    %s26 = sadd.s32 1, %s22
  $region7: #{tpu_custom_call.1} parent=0 // loop_footer_branch
    %21 = sbr.rel target = $region3
  $region8: #{tpu_custom_call.1} parent=0 // loop_exit
    _

</llo_original>
